<compile_context>
chip_gen: v5e
topology: v5e:2x2
jax: 0.10.0
libtpu: 0.0.40
codegen_flags: <defaults>
</compile_context>

<pallas_src>
import math
from functools import partial

import jax
import jax.numpy as jnp
from jax import lax
from jax.experimental import pallas as pl
from jax.experimental.pallas import tpu as pltpu

VMEM = pl.BlockSpec(memory_space=pltpu.MemorySpace.VMEM)


# ------------------------------ fused kernel -------------------------------


def _fused_transformer_kernel(
    x_ref,                      # (B*S, E) f32, rows ordered b*S + s
    emb_w_ref, emb_b_ref,       # (E, E) bf16, (1, E) f32
    in_w_ref, in_b_ref,         # (L, E, 3E) bf16, (L, 1, 3E) f32
    out_w_ref, out_b_ref,       # (L, E, E) bf16, (L, 1, E) f32
    l1_w_ref, l1_b_ref,         # (L, E, F) bf16, (L, 1, F) f32
    l2_w_ref, l2_b_ref,         # (L, F, E) bf16, (L, 1, E) f32
    ln1_g_ref, ln1_b_ref,       # (L, 1, E) f32
    ln2_g_ref, ln2_b_ref,       # (L, 1, E) f32
    fc_w_ref, fc_b_ref,         # (E, OP) bf16, (1, OP) f32   (OP = O padded to 128)
    o_ref,                      # (S, OP) f32
    *, S, B, H, L,
):
    f32 = jnp.float32
    bf16 = jnp.bfloat16
    E = x_ref.shape[-1]
    Dh = E // H
    scale = 1.0 / math.sqrt(Dh)

    def matmul(a_f32, w_bf16, b_f32):
        # bf16 operands -> MXU, f32 accumulation, f32 bias add.
        return jnp.dot(a_f32.astype(bf16), w_bf16,
                       preferred_element_type=f32) + b_f32

    def add_layernorm(x, y, g, b):
        z = x + y                                      # residual (dropout = id, eval)
        mu = jnp.mean(z, axis=-1, keepdims=True)
        var = jnp.mean(jnp.square(z - mu), axis=-1, keepdims=True)
        return (z - mu) * lax.rsqrt(var + 1e-5) * g + b

    # ---- embedding linear ----
    h = matmul(x_ref[...], emb_w_ref[...], emb_b_ref[...])          # (B*S, E) f32

    # ---- encoder layers (post-norm, ReLU FFN — PyTorch defaults) ----
    for l in range(L):
        qkv = matmul(h, in_w_ref[l], in_b_ref[l])                   # (B*S, 3E)
        q = qkv[:, :E]
        k = qkv[:, E:2 * E]
        v = qkv[:, 2 * E:]

        batch_rows = []
        for b in range(B):                       # static loops: B, H are tiny
            rb = slice(b * S, (b + 1) * S)       # contiguous rows for batch b
            head_cols = []
            for hh in range(H):
                cs = slice(hh * Dh, (hh + 1) * Dh)
                qh = q[rb, cs].astype(bf16)
                kh = k[rb, cs].astype(bf16)
                vh = v[rb, cs].astype(bf16)
                # scores = q @ k^T, f32 accumulation
                s = lax.dot_general(qh, kh, (((1,), (1,)), ((), ())),
                                    preferred_element_type=f32) * scale
                m = jnp.max(s, axis=-1, keepdims=True)
                p = jnp.exp(s - m)
                denom = jnp.sum(p, axis=-1, keepdims=True)
                p = p * pl.reciprocal(denom, approx=True)           # EUP slot
                head_cols.append(jnp.dot(p.astype(bf16), vh,
                                         preferred_element_type=f32))
            batch_rows.append(jnp.concatenate(head_cols, axis=-1))  # (S, E)
        attn = jnp.concatenate(batch_rows, axis=0)                  # (B*S, E)

        attn = matmul(attn, out_w_ref[l], out_b_ref[l])
        h = add_layernorm(h, attn, ln1_g_ref[l], ln1_b_ref[l])

        ff = jnp.maximum(matmul(h, l1_w_ref[l], l1_b_ref[l]), 0.0)  # (B*S, F)
        ff = matmul(ff, l2_w_ref[l], l2_b_ref[l])                   # (B*S, E)
        h = add_layernorm(h, ff, ln2_g_ref[l], ln2_b_ref[l])

    # ---- mean over batch dim (dim=1 of (S,B,E)) + final fc, lane-padded ----
    hm = jnp.zeros((S, E), f32)
    for b in range(B):
        hm = hm + h[b * S:(b + 1) * S, :]
    hm = hm * (1.0 / B)                                             # (S, E)
    y = matmul(hm, fc_w_ref[...], fc_b_ref[...])                    # (S, OP)
    o_ref[...] = y.astype(o_ref.dtype)


# --------------------------- parameters / forward ---------------------------


def make_params(key, input_size, output_size, n_heads=4, n_layers=2, dff=2048,
                weight_dtype=jnp.bfloat16):
    E = input_size
    OP = ((output_size + 127) // 128) * 128     # lane-pad fc output to 128

    def dense(k, fan_in, fan_out):
        kw, kb = jax.random.split(k)
        bound = 1.0 / math.sqrt(fan_in)
        w = jax.random.uniform(kw, (fan_in, fan_out), jnp.float32, -bound, bound)
        b = jax.random.uniform(kb, (fan_out,), jnp.float32, -bound, bound)
        return w, b

    keys = jax.random.split(key, 2 + n_layers)
    emb_w, emb_b = dense(keys[0], E, E)
    fc_w, fc_b = dense(keys[1], E, output_size)
    fc_w = jnp.pad(fc_w, ((0, 0), (0, OP - output_size)))
    fc_b = jnp.pad(fc_b, ((0, OP - output_size),))

    in_w, in_b, out_w, out_b = [], [], [], []
    l1_w, l1_b, l2_w, l2_b = [], [], [], []
    ln1_g, ln1_bb, ln2_g, ln2_bb = [], [], [], []
    for i in range(n_layers):
        lk = jax.random.split(keys[2 + i], 4)
        w, b = dense(lk[0], E, 3 * E); in_w.append(w); in_b.append(b)     # packed qkv
        w, b = dense(lk[1], E, E); out_w.append(w); out_b.append(b)
        w, b = dense(lk[2], E, dff); l1_w.append(w); l1_b.append(b)
        w, b = dense(lk[3], dff, E); l2_w.append(w); l2_b.append(b)
        ln1_g.append(jnp.ones((E,), jnp.float32)); ln1_bb.append(jnp.zeros((E,), jnp.float32))
        ln2_g.append(jnp.ones((E,), jnp.float32)); ln2_bb.append(jnp.zeros((E,), jnp.float32))

    st = lambda xs: jnp.stack(xs, axis=0)
    wd = weight_dtype
    return dict(
        emb_w=emb_w.astype(wd), emb_b=emb_b.reshape(1, E),
        in_w=st(in_w).astype(wd), in_b=st(in_b).reshape(n_layers, 1, 3 * E),
        out_w=st(out_w).astype(wd), out_b=st(out_b).reshape(n_layers, 1, E),
        l1_w=st(l1_w).astype(wd), l1_b=st(l1_b).reshape(n_layers, 1, dff),
        l2_w=st(l2_w).astype(wd), l2_b=st(l2_b).reshape(n_layers, 1, E),
        ln1_g=st(ln1_g).reshape(n_layers, 1, E), ln1_b=st(ln1_bb).reshape(n_layers, 1, E),
        ln2_g=st(ln2_g).reshape(n_layers, 1, E), ln2_b=st(ln2_bb).reshape(n_layers, 1, E),
        fc_w=fc_w.astype(wd), fc_b=fc_b.reshape(1, OP),
    )


@partial(jax.jit, static_argnames=("n_heads", "output_size"))
def transformer_forward(x, params, *, n_heads, output_size):
    """x: (S, B, E)  ->  (S, output_size). Whole forward in one pallas_call."""
    S, B, E = x.shape
    assert E % n_heads == 0
    L = params["in_w"].shape[0]
    OP = params["fc_w"].shape[1]

    # One tiny host relayout so that per-batch attention rows are contiguous
    # inside the kernel: row index = b*S + s.
    xt = jnp.transpose(x, (1, 0, 2)).reshape(B * S, E)

    kern = partial(_fused_transformer_kernel, S=S, B=B, H=n_heads, L=L)
    out_padded = pl.pallas_call(
        kern,
        out_shape=jax.ShapeDtypeStruct((S, OP), jnp.float32),
        in_specs=[VMEM] * 17,
        out_specs=VMEM,
    )(xt,
      params["emb_w"], params["emb_b"],
      params["in_w"], params["in_b"], params["out_w"], params["out_b"],
      params["l1_w"], params["l1_b"], params["l2_w"], params["l2_b"],
      params["ln1_g"], params["ln1_b"], params["ln2_g"], params["ln2_b"],
      params["fc_w"], params["fc_b"])
    return out_padded[:, :output_size]


# ----------------------------------- main -----------------------------------

if __name__ == "__main__":
    S, B, E, O, H, L = 8, 2, 32, 16, 4, 2
    key = jax.random.PRNGKey(0)
    pkey, xkey = jax.random.split(key)

    params = make_params(pkey, input_size=E, output_size=O, n_heads=H, n_layers=L)
    x = jax.random.normal(xkey, (S, B, E), jnp.float32)

    out = transformer_forward(x, params, n_heads=H, output_size=O)
    out = jax.block_until_ready(out)
    assert out.shape == (S, O), out.shape
    assert bool(jnp.all(jnp.isfinite(out)))
    print("KERNEL_OK")
</pallas_src>

<mosaic_0001>
module attributes {stable_mosaic.version = 11 : i64} {
  func.func @_fused_transformer_kernel(%arg0: memref<16x32xf32, #tpu.memory_space<vmem>>, %arg1: memref<32x32xbf16, #tpu.memory_space<vmem>>, %arg2: memref<1x32xf32, #tpu.memory_space<vmem>>, %arg3: memref<2x32x96xbf16, #tpu.memory_space<vmem>>, %arg4: memref<2x1x96xf32, #tpu.memory_space<vmem>>, %arg5: memref<2x32x32xbf16, #tpu.memory_space<vmem>>, %arg6: memref<2x1x32xf32, #tpu.memory_space<vmem>>, %arg7: memref<2x32x2048xbf16, #tpu.memory_space<vmem>>, %arg8: memref<2x1x2048xf32, #tpu.memory_space<vmem>>, %arg9: memref<2x2048x32xbf16, #tpu.memory_space<vmem>>, %arg10: memref<2x1x32xf32, #tpu.memory_space<vmem>>, %arg11: memref<2x1x32xf32, #tpu.memory_space<vmem>>, %arg12: memref<2x1x32xf32, #tpu.memory_space<vmem>>, %arg13: memref<2x1x32xf32, #tpu.memory_space<vmem>>, %arg14: memref<2x1x32xf32, #tpu.memory_space<vmem>>, %arg15: memref<32x128xbf16, #tpu.memory_space<vmem>>, %arg16: memref<1x128xf32, #tpu.memory_space<vmem>>, %arg17: memref<8x128xf32, #tpu.memory_space<vmem>>) attributes {dimension_semantics = [], scalar_prefetch = 0 : i64, scratch_operands = 0 : i64, tpu.core_type = #tpu.core_type<tc>} {
    %c0 = arith.constant 0 : index
    %c0_0 = arith.constant 0 : index
    %0 = vector.load %arg0[%c0, %c0_0] : memref<16x32xf32, #tpu.memory_space<vmem>>, vector<16x32xf32>
    %c0_1 = arith.constant 0 : index
    %c0_2 = arith.constant 0 : index
    %1 = vector.load %arg1[%c0_1, %c0_2] : memref<32x32xbf16, #tpu.memory_space<vmem>>, vector<32x32xbf16>
    %c0_3 = arith.constant 0 : index
    %c0_4 = arith.constant 0 : index
    %2 = vector.load %arg2[%c0_3, %c0_4] : memref<1x32xf32, #tpu.memory_space<vmem>>, vector<1x32xf32>
    %3 = arith.truncf %0 : vector<16x32xf32> to vector<16x32xbf16>
    %cst = arith.constant dense<0.000000e+00> : vector<16x32xf32>
    %4 = tpu.matmul %3, %1, %cst {dimension_numbers = #tpu.dot_dimension_numbers<[1], [0], [0], [1], [0, 0, 1, 1], [], []>} : vector<16x32xbf16>, vector<32x32xbf16>, vector<16x32xf32> -> vector<16x32xf32>
    %5 = vector.broadcast %2 : vector<1x32xf32> to vector<16x32xf32>
    %6 = arith.addf %4, %5 : vector<16x32xf32>
    %c0_5 = arith.constant 0 : index
    %c0_6 = arith.constant 0 : index
    %c0_7 = arith.constant 0 : index
    %7 = vector.load %arg3[%c0_5, %c0_6, %c0_7] : memref<2x32x96xbf16, #tpu.memory_space<vmem>>, vector<1x32x96xbf16>
    %8 = vector.shape_cast %7 : vector<1x32x96xbf16> to vector<32x96xbf16>
    %c0_8 = arith.constant 0 : index
    %c0_9 = arith.constant 0 : index
    %c0_10 = arith.constant 0 : index
    %9 = vector.load %arg4[%c0_8, %c0_9, %c0_10] : memref<2x1x96xf32, #tpu.memory_space<vmem>>, vector<1x1x96xf32>
    %10 = vector.shape_cast %9 : vector<1x1x96xf32> to vector<1x96xf32>
    %11 = arith.truncf %6 : vector<16x32xf32> to vector<16x32xbf16>
    %cst_11 = arith.constant dense<0.000000e+00> : vector<16x96xf32>
    %12 = tpu.matmul %11, %8, %cst_11 {dimension_numbers = #tpu.dot_dimension_numbers<[1], [0], [0], [1], [0, 0, 1, 1], [], []>} : vector<16x32xbf16>, vector<32x96xbf16>, vector<16x96xf32> -> vector<16x96xf32>
    %13 = vector.broadcast %10 : vector<1x96xf32> to vector<16x96xf32>
    %14 = arith.addf %12, %13 : vector<16x96xf32>
    %15 = vector.extract_strided_slice %14 {offsets = [0, 0], sizes = [16, 32], strides = [1, 1]} : vector<16x96xf32> to vector<16x32xf32>
    %16 = vector.extract_strided_slice %14 {offsets = [0, 32], sizes = [16, 32], strides = [1, 1]} : vector<16x96xf32> to vector<16x32xf32>
    %17 = vector.extract_strided_slice %14 {offsets = [0, 64], sizes = [16, 32], strides = [1, 1]} : vector<16x96xf32> to vector<16x32xf32>
    %18 = vector.extract_strided_slice %15 {offsets = [0, 0], sizes = [8, 8], strides = [1, 1]} : vector<16x32xf32> to vector<8x8xf32>
    %19 = arith.truncf %18 : vector<8x8xf32> to vector<8x8xbf16>
    %20 = vector.extract_strided_slice %16 {offsets = [0, 0], sizes = [8, 8], strides = [1, 1]} : vector<16x32xf32> to vector<8x8xf32>
    %21 = arith.truncf %20 : vector<8x8xf32> to vector<8x8xbf16>
    %22 = vector.extract_strided_slice %17 {offsets = [0, 0], sizes = [8, 8], strides = [1, 1]} : vector<16x32xf32> to vector<8x8xf32>
    %23 = arith.truncf %22 : vector<8x8xf32> to vector<8x8xbf16>
    %cst_12 = arith.constant dense<0.000000e+00> : vector<8x8xf32>
    %24 = tpu.matmul %19, %21, %cst_12 {dimension_numbers = #tpu.dot_dimension_numbers<[1], [1], [0], [0], [0, 0, 1, 0], [], []>} : vector<8x8xbf16>, vector<8x8xbf16>, vector<8x8xf32> -> vector<8x8xf32>
    %cst_13 = arith.constant 0.353553385 : f32
    %25 = vector.broadcast %cst_13 : f32 to vector<8x8xf32>
    %26 = arith.mulf %24, %25 : vector<8x8xf32>
    %cst_14 = arith.constant dense<0xFF800000> : vector<8xf32>
    %27 = vector.multi_reduction <maximumf>, %26, %cst_14 [1] : vector<8x8xf32> to vector<8xf32>
    %28 = vector.shape_cast %27 : vector<8xf32> to vector<8x1xf32>
    %29 = vector.broadcast %28 : vector<8x1xf32> to vector<8x8xf32>
    %30 = arith.subf %26, %29 : vector<8x8xf32>
    %31 = math.exp %30 : vector<8x8xf32>
    %cst_15 = arith.constant dense<0.000000e+00> : vector<8xf32>
    %32 = vector.multi_reduction <add>, %31, %cst_15 [1] : vector<8x8xf32> to vector<8xf32>
    %33 = vector.shape_cast %32 : vector<8xf32> to vector<8x1xf32>
    %34 = tpu.reciprocal %33 {approx = true} : vector<8x1xf32> -> vector<8x1xf32>
    %35 = vector.broadcast %34 : vector<8x1xf32> to vector<8x8xf32>
    %36 = arith.mulf %31, %35 : vector<8x8xf32>
    %37 = arith.truncf %36 : vector<8x8xf32> to vector<8x8xbf16>
    %cst_16 = arith.constant dense<0.000000e+00> : vector<8x8xf32>
    %38 = tpu.matmul %37, %23, %cst_16 {dimension_numbers = #tpu.dot_dimension_numbers<[1], [0], [0], [1], [0, 0, 1, 1], [], []>} : vector<8x8xbf16>, vector<8x8xbf16>, vector<8x8xf32> -> vector<8x8xf32>
    %39 = vector.extract_strided_slice %15 {offsets = [0, 8], sizes = [8, 8], strides = [1, 1]} : vector<16x32xf32> to vector<8x8xf32>
    %40 = arith.truncf %39 : vector<8x8xf32> to vector<8x8xbf16>
    %41 = vector.extract_strided_slice %16 {offsets = [0, 8], sizes = [8, 8], strides = [1, 1]} : vector<16x32xf32> to vector<8x8xf32>
    %42 = arith.truncf %41 : vector<8x8xf32> to vector<8x8xbf16>
    %43 = vector.extract_strided_slice %17 {offsets = [0, 8], sizes = [8, 8], strides = [1, 1]} : vector<16x32xf32> to vector<8x8xf32>
    %44 = arith.truncf %43 : vector<8x8xf32> to vector<8x8xbf16>
    %cst_17 = arith.constant dense<0.000000e+00> : vector<8x8xf32>
    %45 = tpu.matmul %40, %42, %cst_17 {dimension_numbers = #tpu.dot_dimension_numbers<[1], [1], [0], [0], [0, 0, 1, 0], [], []>} : vector<8x8xbf16>, vector<8x8xbf16>, vector<8x8xf32> -> vector<8x8xf32>
    %cst_18 = arith.constant 0.353553385 : f32
    %46 = vector.broadcast %cst_18 : f32 to vector<8x8xf32>
    %47 = arith.mulf %45, %46 : vector<8x8xf32>
    %cst_19 = arith.constant dense<0xFF800000> : vector<8xf32>
    %48 = vector.multi_reduction <maximumf>, %47, %cst_19 [1] : vector<8x8xf32> to vector<8xf32>
    %49 = vector.shape_cast %48 : vector<8xf32> to vector<8x1xf32>
    %50 = vector.broadcast %49 : vector<8x1xf32> to vector<8x8xf32>
    %51 = arith.subf %47, %50 : vector<8x8xf32>
    %52 = math.exp %51 : vector<8x8xf32>
    %cst_20 = arith.constant dense<0.000000e+00> : vector<8xf32>
    %53 = vector.multi_reduction <add>, %52, %cst_20 [1] : vector<8x8xf32> to vector<8xf32>
    %54 = vector.shape_cast %53 : vector<8xf32> to vector<8x1xf32>
    %55 = tpu.reciprocal %54 {approx = true} : vector<8x1xf32> -> vector<8x1xf32>
    %56 = vector.broadcast %55 : vector<8x1xf32> to vector<8x8xf32>
    %57 = arith.mulf %52, %56 : vector<8x8xf32>
    %58 = arith.truncf %57 : vector<8x8xf32> to vector<8x8xbf16>
    %cst_21 = arith.constant dense<0.000000e+00> : vector<8x8xf32>
    %59 = tpu.matmul %58, %44, %cst_21 {dimension_numbers = #tpu.dot_dimension_numbers<[1], [0], [0], [1], [0, 0, 1, 1], [], []>} : vector<8x8xbf16>, vector<8x8xbf16>, vector<8x8xf32> -> vector<8x8xf32>
    %60 = vector.extract_strided_slice %15 {offsets = [0, 16], sizes = [8, 8], strides = [1, 1]} : vector<16x32xf32> to vector<8x8xf32>
    %61 = arith.truncf %60 : vector<8x8xf32> to vector<8x8xbf16>
    %62 = vector.extract_strided_slice %16 {offsets = [0, 16], sizes = [8, 8], strides = [1, 1]} : vector<16x32xf32> to vector<8x8xf32>
    %63 = arith.truncf %62 : vector<8x8xf32> to vector<8x8xbf16>
    %64 = vector.extract_strided_slice %17 {offsets = [0, 16], sizes = [8, 8], strides = [1, 1]} : vector<16x32xf32> to vector<8x8xf32>
    %65 = arith.truncf %64 : vector<8x8xf32> to vector<8x8xbf16>
    %cst_22 = arith.constant dense<0.000000e+00> : vector<8x8xf32>
    %66 = tpu.matmul %61, %63, %cst_22 {dimension_numbers = #tpu.dot_dimension_numbers<[1], [1], [0], [0], [0, 0, 1, 0], [], []>} : vector<8x8xbf16>, vector<8x8xbf16>, vector<8x8xf32> -> vector<8x8xf32>
    %cst_23 = arith.constant 0.353553385 : f32
    %67 = vector.broadcast %cst_23 : f32 to vector<8x8xf32>
    %68 = arith.mulf %66, %67 : vector<8x8xf32>
    %cst_24 = arith.constant dense<0xFF800000> : vector<8xf32>
    %69 = vector.multi_reduction <maximumf>, %68, %cst_24 [1] : vector<8x8xf32> to vector<8xf32>
    %70 = vector.shape_cast %69 : vector<8xf32> to vector<8x1xf32>
    %71 = vector.broadcast %70 : vector<8x1xf32> to vector<8x8xf32>
    %72 = arith.subf %68, %71 : vector<8x8xf32>
    %73 = math.exp %72 : vector<8x8xf32>
    %cst_25 = arith.constant dense<0.000000e+00> : vector<8xf32>
    %74 = vector.multi_reduction <add>, %73, %cst_25 [1] : vector<8x8xf32> to vector<8xf32>
    %75 = vector.shape_cast %74 : vector<8xf32> to vector<8x1xf32>
    %76 = tpu.reciprocal %75 {approx = true} : vector<8x1xf32> -> vector<8x1xf32>
    %77 = vector.broadcast %76 : vector<8x1xf32> to vector<8x8xf32>
    %78 = arith.mulf %73, %77 : vector<8x8xf32>
    %79 = arith.truncf %78 : vector<8x8xf32> to vector<8x8xbf16>
    %cst_26 = arith.constant dense<0.000000e+00> : vector<8x8xf32>
    %80 = tpu.matmul %79, %65, %cst_26 {dimension_numbers = #tpu.dot_dimension_numbers<[1], [0], [0], [1], [0, 0, 1, 1], [], []>} : vector<8x8xbf16>, vector<8x8xbf16>, vector<8x8xf32> -> vector<8x8xf32>
    %81 = vector.extract_strided_slice %15 {offsets = [0, 24], sizes = [8, 8], strides = [1, 1]} : vector<16x32xf32> to vector<8x8xf32>
    %82 = arith.truncf %81 : vector<8x8xf32> to vector<8x8xbf16>
    %83 = vector.extract_strided_slice %16 {offsets = [0, 24], sizes = [8, 8], strides = [1, 1]} : vector<16x32xf32> to vector<8x8xf32>
    %84 = arith.truncf %83 : vector<8x8xf32> to vector<8x8xbf16>
    %85 = vector.extract_strided_slice %17 {offsets = [0, 24], sizes = [8, 8], strides = [1, 1]} : vector<16x32xf32> to vector<8x8xf32>
    %86 = arith.truncf %85 : vector<8x8xf32> to vector<8x8xbf16>
    %cst_27 = arith.constant dense<0.000000e+00> : vector<8x8xf32>
    %87 = tpu.matmul %82, %84, %cst_27 {dimension_numbers = #tpu.dot_dimension_numbers<[1], [1], [0], [0], [0, 0, 1, 0], [], []>} : vector<8x8xbf16>, vector<8x8xbf16>, vector<8x8xf32> -> vector<8x8xf32>
    %cst_28 = arith.constant 0.353553385 : f32
    %88 = vector.broadcast %cst_28 : f32 to vector<8x8xf32>
    %89 = arith.mulf %87, %88 : vector<8x8xf32>
    %cst_29 = arith.constant dense<0xFF800000> : vector<8xf32>
    %90 = vector.multi_reduction <maximumf>, %89, %cst_29 [1] : vector<8x8xf32> to vector<8xf32>
    %91 = vector.shape_cast %90 : vector<8xf32> to vector<8x1xf32>
    %92 = vector.broadcast %91 : vector<8x1xf32> to vector<8x8xf32>
    %93 = arith.subf %89, %92 : vector<8x8xf32>
    %94 = math.exp %93 : vector<8x8xf32>
    %cst_30 = arith.constant dense<0.000000e+00> : vector<8xf32>
    %95 = vector.multi_reduction <add>, %94, %cst_30 [1] : vector<8x8xf32> to vector<8xf32>
    %96 = vector.shape_cast %95 : vector<8xf32> to vector<8x1xf32>
    %97 = tpu.reciprocal %96 {approx = true} : vector<8x1xf32> -> vector<8x1xf32>
    %98 = vector.broadcast %97 : vector<8x1xf32> to vector<8x8xf32>
    %99 = arith.mulf %94, %98 : vector<8x8xf32>
    %100 = arith.truncf %99 : vector<8x8xf32> to vector<8x8xbf16>
    %cst_31 = arith.constant dense<0.000000e+00> : vector<8x8xf32>
    %101 = tpu.matmul %100, %86, %cst_31 {dimension_numbers = #tpu.dot_dimension_numbers<[1], [0], [0], [1], [0, 0, 1, 1], [], []>} : vector<8x8xbf16>, vector<8x8xbf16>, vector<8x8xf32> -> vector<8x8xf32>
    %102 = tpu.concatenate %38, %59, %80, %101 in 1 : vector<8x8xf32>, vector<8x8xf32>, vector<8x8xf32>, vector<8x8xf32> -> vector<8x32xf32>
    %103 = vector.extract_strided_slice %15 {offsets = [8, 0], sizes = [8, 8], strides = [1, 1]} : vector<16x32xf32> to vector<8x8xf32>
    %104 = arith.truncf %103 : vector<8x8xf32> to vector<8x8xbf16>
    %105 = vector.extract_strided_slice %16 {offsets = [8, 0], sizes = [8, 8], strides = [1, 1]} : vector<16x32xf32> to vector<8x8xf32>
    %106 = arith.truncf %105 : vector<8x8xf32> to vector<8x8xbf16>
    %107 = vector.extract_strided_slice %17 {offsets = [8, 0], sizes = [8, 8], strides = [1, 1]} : vector<16x32xf32> to vector<8x8xf32>
    %108 = arith.truncf %107 : vector<8x8xf32> to vector<8x8xbf16>
    %cst_32 = arith.constant dense<0.000000e+00> : vector<8x8xf32>
    %109 = tpu.matmul %104, %106, %cst_32 {dimension_numbers = #tpu.dot_dimension_numbers<[1], [1], [0], [0], [0, 0, 1, 0], [], []>} : vector<8x8xbf16>, vector<8x8xbf16>, vector<8x8xf32> -> vector<8x8xf32>
    %cst_33 = arith.constant 0.353553385 : f32
    %110 = vector.broadcast %cst_33 : f32 to vector<8x8xf32>
    %111 = arith.mulf %109, %110 : vector<8x8xf32>
    %cst_34 = arith.constant dense<0xFF800000> : vector<8xf32>
    %112 = vector.multi_reduction <maximumf>, %111, %cst_34 [1] : vector<8x8xf32> to vector<8xf32>
    %113 = vector.shape_cast %112 : vector<8xf32> to vector<8x1xf32>
    %114 = vector.broadcast %113 : vector<8x1xf32> to vector<8x8xf32>
    %115 = arith.subf %111, %114 : vector<8x8xf32>
    %116 = math.exp %115 : vector<8x8xf32>
    %cst_35 = arith.constant dense<0.000000e+00> : vector<8xf32>
    %117 = vector.multi_reduction <add>, %116, %cst_35 [1] : vector<8x8xf32> to vector<8xf32>
    %118 = vector.shape_cast %117 : vector<8xf32> to vector<8x1xf32>
    %119 = tpu.reciprocal %118 {approx = true} : vector<8x1xf32> -> vector<8x1xf32>
    %120 = vector.broadcast %119 : vector<8x1xf32> to vector<8x8xf32>
    %121 = arith.mulf %116, %120 : vector<8x8xf32>
    %122 = arith.truncf %121 : vector<8x8xf32> to vector<8x8xbf16>
    %cst_36 = arith.constant dense<0.000000e+00> : vector<8x8xf32>
    %123 = tpu.matmul %122, %108, %cst_36 {dimension_numbers = #tpu.dot_dimension_numbers<[1], [0], [0], [1], [0, 0, 1, 1], [], []>} : vector<8x8xbf16>, vector<8x8xbf16>, vector<8x8xf32> -> vector<8x8xf32>
    %124 = vector.extract_strided_slice %15 {offsets = [8, 8], sizes = [8, 8], strides = [1, 1]} : vector<16x32xf32> to vector<8x8xf32>
    %125 = arith.truncf %124 : vector<8x8xf32> to vector<8x8xbf16>
    %126 = vector.extract_strided_slice %16 {offsets = [8, 8], sizes = [8, 8], strides = [1, 1]} : vector<16x32xf32> to vector<8x8xf32>
    %127 = arith.truncf %126 : vector<8x8xf32> to vector<8x8xbf16>
    %128 = vector.extract_strided_slice %17 {offsets = [8, 8], sizes = [8, 8], strides = [1, 1]} : vector<16x32xf32> to vector<8x8xf32>
    %129 = arith.truncf %128 : vector<8x8xf32> to vector<8x8xbf16>
    %cst_37 = arith.constant dense<0.000000e+00> : vector<8x8xf32>
    %130 = tpu.matmul %125, %127, %cst_37 {dimension_numbers = #tpu.dot_dimension_numbers<[1], [1], [0], [0], [0, 0, 1, 0], [], []>} : vector<8x8xbf16>, vector<8x8xbf16>, vector<8x8xf32> -> vector<8x8xf32>
    %cst_38 = arith.constant 0.353553385 : f32
    %131 = vector.broadcast %cst_38 : f32 to vector<8x8xf32>
    %132 = arith.mulf %130, %131 : vector<8x8xf32>
    %cst_39 = arith.constant dense<0xFF800000> : vector<8xf32>
    %133 = vector.multi_reduction <maximumf>, %132, %cst_39 [1] : vector<8x8xf32> to vector<8xf32>
    %134 = vector.shape_cast %133 : vector<8xf32> to vector<8x1xf32>
    %135 = vector.broadcast %134 : vector<8x1xf32> to vector<8x8xf32>
    %136 = arith.subf %132, %135 : vector<8x8xf32>
    %137 = math.exp %136 : vector<8x8xf32>
    %cst_40 = arith.constant dense<0.000000e+00> : vector<8xf32>
    %138 = vector.multi_reduction <add>, %137, %cst_40 [1] : vector<8x8xf32> to vector<8xf32>
    %139 = vector.shape_cast %138 : vector<8xf32> to vector<8x1xf32>
    %140 = tpu.reciprocal %139 {approx = true} : vector<8x1xf32> -> vector<8x1xf32>
    %141 = vector.broadcast %140 : vector<8x1xf32> to vector<8x8xf32>
    %142 = arith.mulf %137, %141 : vector<8x8xf32>
    %143 = arith.truncf %142 : vector<8x8xf32> to vector<8x8xbf16>
    %cst_41 = arith.constant dense<0.000000e+00> : vector<8x8xf32>
    %144 = tpu.matmul %143, %129, %cst_41 {dimension_numbers = #tpu.dot_dimension_numbers<[1], [0], [0], [1], [0, 0, 1, 1], [], []>} : vector<8x8xbf16>, vector<8x8xbf16>, vector<8x8xf32> -> vector<8x8xf32>
    %145 = vector.extract_strided_slice %15 {offsets = [8, 16], sizes = [8, 8], strides = [1, 1]} : vector<16x32xf32> to vector<8x8xf32>
    %146 = arith.truncf %145 : vector<8x8xf32> to vector<8x8xbf16>
    %147 = vector.extract_strided_slice %16 {offsets = [8, 16], sizes = [8, 8], strides = [1, 1]} : vector<16x32xf32> to vector<8x8xf32>
    %148 = arith.truncf %147 : vector<8x8xf32> to vector<8x8xbf16>
    %149 = vector.extract_strided_slice %17 {offsets = [8, 16], sizes = [8, 8], strides = [1, 1]} : vector<16x32xf32> to vector<8x8xf32>
    %150 = arith.truncf %149 : vector<8x8xf32> to vector<8x8xbf16>
    %cst_42 = arith.constant dense<0.000000e+00> : vector<8x8xf32>
    %151 = tpu.matmul %146, %148, %cst_42 {dimension_numbers = #tpu.dot_dimension_numbers<[1], [1], [0], [0], [0, 0, 1, 0], [], []>} : vector<8x8xbf16>, vector<8x8xbf16>, vector<8x8xf32> -> vector<8x8xf32>
    %cst_43 = arith.constant 0.353553385 : f32
    %152 = vector.broadcast %cst_43 : f32 to vector<8x8xf32>
    %153 = arith.mulf %151, %152 : vector<8x8xf32>
    %cst_44 = arith.constant dense<0xFF800000> : vector<8xf32>
    %154 = vector.multi_reduction <maximumf>, %153, %cst_44 [1] : vector<8x8xf32> to vector<8xf32>
    %155 = vector.shape_cast %154 : vector<8xf32> to vector<8x1xf32>
    %156 = vector.broadcast %155 : vector<8x1xf32> to vector<8x8xf32>
    %157 = arith.subf %153, %156 : vector<8x8xf32>
    %158 = math.exp %157 : vector<8x8xf32>
    %cst_45 = arith.constant dense<0.000000e+00> : vector<8xf32>
    %159 = vector.multi_reduction <add>, %158, %cst_45 [1] : vector<8x8xf32> to vector<8xf32>
    %160 = vector.shape_cast %159 : vector<8xf32> to vector<8x1xf32>
    %161 = tpu.reciprocal %160 {approx = true} : vector<8x1xf32> -> vector<8x1xf32>
    %162 = vector.broadcast %161 : vector<8x1xf32> to vector<8x8xf32>
    %163 = arith.mulf %158, %162 : vector<8x8xf32>
    %164 = arith.truncf %163 : vector<8x8xf32> to vector<8x8xbf16>
    %cst_46 = arith.constant dense<0.000000e+00> : vector<8x8xf32>
    %165 = tpu.matmul %164, %150, %cst_46 {dimension_numbers = #tpu.dot_dimension_numbers<[1], [0], [0], [1], [0, 0, 1, 1], [], []>} : vector<8x8xbf16>, vector<8x8xbf16>, vector<8x8xf32> -> vector<8x8xf32>
    %166 = vector.extract_strided_slice %15 {offsets = [8, 24], sizes = [8, 8], strides = [1, 1]} : vector<16x32xf32> to vector<8x8xf32>
    %167 = arith.truncf %166 : vector<8x8xf32> to vector<8x8xbf16>
    %168 = vector.extract_strided_slice %16 {offsets = [8, 24], sizes = [8, 8], strides = [1, 1]} : vector<16x32xf32> to vector<8x8xf32>
    %169 = arith.truncf %168 : vector<8x8xf32> to vector<8x8xbf16>
    %170 = vector.extract_strided_slice %17 {offsets = [8, 24], sizes = [8, 8], strides = [1, 1]} : vector<16x32xf32> to vector<8x8xf32>
    %171 = arith.truncf %170 : vector<8x8xf32> to vector<8x8xbf16>
    %cst_47 = arith.constant dense<0.000000e+00> : vector<8x8xf32>
    %172 = tpu.matmul %167, %169, %cst_47 {dimension_numbers = #tpu.dot_dimension_numbers<[1], [1], [0], [0], [0, 0, 1, 0], [], []>} : vector<8x8xbf16>, vector<8x8xbf16>, vector<8x8xf32> -> vector<8x8xf32>
    %cst_48 = arith.constant 0.353553385 : f32
    %173 = vector.broadcast %cst_48 : f32 to vector<8x8xf32>
    %174 = arith.mulf %172, %173 : vector<8x8xf32>
    %cst_49 = arith.constant dense<0xFF800000> : vector<8xf32>
    %175 = vector.multi_reduction <maximumf>, %174, %cst_49 [1] : vector<8x8xf32> to vector<8xf32>
    %176 = vector.shape_cast %175 : vector<8xf32> to vector<8x1xf32>
    %177 = vector.broadcast %176 : vector<8x1xf32> to vector<8x8xf32>
    %178 = arith.subf %174, %177 : vector<8x8xf32>
    %179 = math.exp %178 : vector<8x8xf32>
    %cst_50 = arith.constant dense<0.000000e+00> : vector<8xf32>
    %180 = vector.multi_reduction <add>, %179, %cst_50 [1] : vector<8x8xf32> to vector<8xf32>
    %181 = vector.shape_cast %180 : vector<8xf32> to vector<8x1xf32>
    %182 = tpu.reciprocal %181 {approx = true} : vector<8x1xf32> -> vector<8x1xf32>
    %183 = vector.broadcast %182 : vector<8x1xf32> to vector<8x8xf32>
    %184 = arith.mulf %179, %183 : vector<8x8xf32>
    %185 = arith.truncf %184 : vector<8x8xf32> to vector<8x8xbf16>
    %cst_51 = arith.constant dense<0.000000e+00> : vector<8x8xf32>
    %186 = tpu.matmul %185, %171, %cst_51 {dimension_numbers = #tpu.dot_dimension_numbers<[1], [0], [0], [1], [0, 0, 1, 1], [], []>} : vector<8x8xbf16>, vector<8x8xbf16>, vector<8x8xf32> -> vector<8x8xf32>
    %187 = tpu.concatenate %123, %144, %165, %186 in 1 : vector<8x8xf32>, vector<8x8xf32>, vector<8x8xf32>, vector<8x8xf32> -> vector<8x32xf32>
    %188 = tpu.concatenate %102, %187 in 0 : vector<8x32xf32>, vector<8x32xf32> -> vector<16x32xf32>
    %c0_52 = arith.constant 0 : index
    %c0_53 = arith.constant 0 : index
    %c0_54 = arith.constant 0 : index
    %189 = vector.load %arg5[%c0_52, %c0_53, %c0_54] : memref<2x32x32xbf16, #tpu.memory_space<vmem>>, vector<1x32x32xbf16>
    %190 = vector.shape_cast %189 : vector<1x32x32xbf16> to vector<32x32xbf16>
    %c0_55 = arith.constant 0 : index
    %c0_56 = arith.constant 0 : index
    %c0_57 = arith.constant 0 : index
    %191 = vector.load %arg6[%c0_55, %c0_56, %c0_57] : memref<2x1x32xf32, #tpu.memory_space<vmem>>, vector<1x1x32xf32>
    %192 = vector.shape_cast %191 : vector<1x1x32xf32> to vector<1x32xf32>
    %193 = arith.truncf %188 : vector<16x32xf32> to vector<16x32xbf16>
    %cst_58 = arith.constant dense<0.000000e+00> : vector<16x32xf32>
    %194 = tpu.matmul %193, %190, %cst_58 {dimension_numbers = #tpu.dot_dimension_numbers<[1], [0], [0], [1], [0, 0, 1, 1], [], []>} : vector<16x32xbf16>, vector<32x32xbf16>, vector<16x32xf32> -> vector<16x32xf32>
    %195 = vector.broadcast %192 : vector<1x32xf32> to vector<16x32xf32>
    %196 = arith.addf %194, %195 : vector<16x32xf32>
    %c0_59 = arith.constant 0 : index
    %c0_60 = arith.constant 0 : index
    %c0_61 = arith.constant 0 : index
    %197 = vector.load %arg11[%c0_59, %c0_60, %c0_61] : memref<2x1x32xf32, #tpu.memory_space<vmem>>, vector<1x1x32xf32>
    %198 = vector.shape_cast %197 : vector<1x1x32xf32> to vector<1x32xf32>
    %c0_62 = arith.constant 0 : index
    %c0_63 = arith.constant 0 : index
    %c0_64 = arith.constant 0 : index
    %199 = vector.load %arg12[%c0_62, %c0_63, %c0_64] : memref<2x1x32xf32, #tpu.memory_space<vmem>>, vector<1x1x32xf32>
    %200 = vector.shape_cast %199 : vector<1x1x32xf32> to vector<1x32xf32>
    %201 = arith.addf %6, %196 : vector<16x32xf32>
    %cst_65 = arith.constant dense<0.000000e+00> : vector<16xf32>
    %202 = vector.multi_reduction <add>, %201, %cst_65 [1] : vector<16x32xf32> to vector<16xf32>
    %203 = vector.shape_cast %202 : vector<16xf32> to vector<16x1xf32>
    %cst_66 = arith.constant 3.200000e+01 : f32
    %204 = vector.broadcast %cst_66 : f32 to vector<16x1xf32>
    %205 = arith.divf %203, %204 : vector<16x1xf32>
    %206 = vector.broadcast %205 : vector<16x1xf32> to vector<16x32xf32>
    %207 = arith.subf %201, %206 : vector<16x32xf32>
    %208 = arith.mulf %207, %207 : vector<16x32xf32>
    %cst_67 = arith.constant dense<0.000000e+00> : vector<16xf32>
    %209 = vector.multi_reduction <add>, %208, %cst_67 [1] : vector<16x32xf32> to vector<16xf32>
    %210 = vector.shape_cast %209 : vector<16xf32> to vector<16x1xf32>
    %cst_68 = arith.constant 3.200000e+01 : f32
    %211 = vector.broadcast %cst_68 : f32 to vector<16x1xf32>
    %212 = arith.divf %210, %211 : vector<16x1xf32>
    %213 = vector.broadcast %205 : vector<16x1xf32> to vector<16x32xf32>
    %214 = arith.subf %201, %213 : vector<16x32xf32>
    %cst_69 = arith.constant 9.99999974E-6 : f32
    %215 = vector.broadcast %cst_69 : f32 to vector<16x1xf32>
    %216 = arith.addf %212, %215 : vector<16x1xf32>
    %217 = math.rsqrt %216 : vector<16x1xf32>
    %218 = vector.broadcast %217 : vector<16x1xf32> to vector<16x32xf32>
    %219 = arith.mulf %214, %218 : vector<16x32xf32>
    %220 = vector.broadcast %198 : vector<1x32xf32> to vector<16x32xf32>
    %221 = arith.mulf %219, %220 : vector<16x32xf32>
    %222 = vector.broadcast %200 : vector<1x32xf32> to vector<16x32xf32>
    %223 = arith.addf %221, %222 : vector<16x32xf32>
    %c0_70 = arith.constant 0 : index
    %c0_71 = arith.constant 0 : index
    %c0_72 = arith.constant 0 : index
    %224 = vector.load %arg7[%c0_70, %c0_71, %c0_72] : memref<2x32x2048xbf16, #tpu.memory_space<vmem>>, vector<1x32x2048xbf16>
    %225 = vector.shape_cast %224 : vector<1x32x2048xbf16> to vector<32x2048xbf16>
    %c0_73 = arith.constant 0 : index
    %c0_74 = arith.constant 0 : index
    %c0_75 = arith.constant 0 : index
    %226 = vector.load %arg8[%c0_73, %c0_74, %c0_75] : memref<2x1x2048xf32, #tpu.memory_space<vmem>>, vector<1x1x2048xf32>
    %227 = vector.shape_cast %226 : vector<1x1x2048xf32> to vector<1x2048xf32>
    %228 = arith.truncf %223 : vector<16x32xf32> to vector<16x32xbf16>
    %cst_76 = arith.constant dense<0.000000e+00> : vector<16x2048xf32>
    %229 = tpu.matmul %228, %225, %cst_76 {dimension_numbers = #tpu.dot_dimension_numbers<[1], [0], [0], [1], [0, 0, 1, 1], [], []>} : vector<16x32xbf16>, vector<32x2048xbf16>, vector<16x2048xf32> -> vector<16x2048xf32>
    %230 = vector.broadcast %227 : vector<1x2048xf32> to vector<16x2048xf32>
    %231 = arith.addf %229, %230 : vector<16x2048xf32>
    %cst_77 = arith.constant 0.000000e+00 : f32
    %232 = vector.broadcast %cst_77 : f32 to vector<16x2048xf32>
    %233 = arith.maximumf %231, %232 : vector<16x2048xf32>
    %c0_78 = arith.constant 0 : index
    %c0_79 = arith.constant 0 : index
    %c0_80 = arith.constant 0 : index
    %234 = vector.load %arg9[%c0_78, %c0_79, %c0_80] : memref<2x2048x32xbf16, #tpu.memory_space<vmem>>, vector<1x2048x32xbf16>
    %235 = vector.shape_cast %234 : vector<1x2048x32xbf16> to vector<2048x32xbf16>
    %c0_81 = arith.constant 0 : index
    %c0_82 = arith.constant 0 : index
    %c0_83 = arith.constant 0 : index
    %236 = vector.load %arg10[%c0_81, %c0_82, %c0_83] : memref<2x1x32xf32, #tpu.memory_space<vmem>>, vector<1x1x32xf32>
    %237 = vector.shape_cast %236 : vector<1x1x32xf32> to vector<1x32xf32>
    %238 = arith.truncf %233 : vector<16x2048xf32> to vector<16x2048xbf16>
    %cst_84 = arith.constant dense<0.000000e+00> : vector<16x32xf32>
    %239 = tpu.matmul %238, %235, %cst_84 {dimension_numbers = #tpu.dot_dimension_numbers<[1], [0], [0], [1], [0, 0, 1, 1], [], []>} : vector<16x2048xbf16>, vector<2048x32xbf16>, vector<16x32xf32> -> vector<16x32xf32>
    %240 = vector.broadcast %237 : vector<1x32xf32> to vector<16x32xf32>
    %241 = arith.addf %239, %240 : vector<16x32xf32>
    %c0_85 = arith.constant 0 : index
    %c0_86 = arith.constant 0 : index
    %c0_87 = arith.constant 0 : index
    %242 = vector.load %arg13[%c0_85, %c0_86, %c0_87] : memref<2x1x32xf32, #tpu.memory_space<vmem>>, vector<1x1x32xf32>
    %243 = vector.shape_cast %242 : vector<1x1x32xf32> to vector<1x32xf32>
    %c0_88 = arith.constant 0 : index
    %c0_89 = arith.constant 0 : index
    %c0_90 = arith.constant 0 : index
    %244 = vector.load %arg14[%c0_88, %c0_89, %c0_90] : memref<2x1x32xf32, #tpu.memory_space<vmem>>, vector<1x1x32xf32>
    %245 = vector.shape_cast %244 : vector<1x1x32xf32> to vector<1x32xf32>
    %246 = arith.addf %223, %241 : vector<16x32xf32>
    %cst_91 = arith.constant dense<0.000000e+00> : vector<16xf32>
    %247 = vector.multi_reduction <add>, %246, %cst_91 [1] : vector<16x32xf32> to vector<16xf32>
    %248 = vector.shape_cast %247 : vector<16xf32> to vector<16x1xf32>
    %cst_92 = arith.constant 3.200000e+01 : f32
    %249 = vector.broadcast %cst_92 : f32 to vector<16x1xf32>
    %250 = arith.divf %248, %249 : vector<16x1xf32>
    %251 = vector.broadcast %250 : vector<16x1xf32> to vector<16x32xf32>
    %252 = arith.subf %246, %251 : vector<16x32xf32>
    %253 = arith.mulf %252, %252 : vector<16x32xf32>
    %cst_93 = arith.constant dense<0.000000e+00> : vector<16xf32>
    %254 = vector.multi_reduction <add>, %253, %cst_93 [1] : vector<16x32xf32> to vector<16xf32>
    %255 = vector.shape_cast %254 : vector<16xf32> to vector<16x1xf32>
    %cst_94 = arith.constant 3.200000e+01 : f32
    %256 = vector.broadcast %cst_94 : f32 to vector<16x1xf32>
    %257 = arith.divf %255, %256 : vector<16x1xf32>
    %258 = vector.broadcast %250 : vector<16x1xf32> to vector<16x32xf32>
    %259 = arith.subf %246, %258 : vector<16x32xf32>
    %cst_95 = arith.constant 9.99999974E-6 : f32
    %260 = vector.broadcast %cst_95 : f32 to vector<16x1xf32>
    %261 = arith.addf %257, %260 : vector<16x1xf32>
    %262 = math.rsqrt %261 : vector<16x1xf32>
    %263 = vector.broadcast %262 : vector<16x1xf32> to vector<16x32xf32>
    %264 = arith.mulf %259, %263 : vector<16x32xf32>
    %265 = vector.broadcast %243 : vector<1x32xf32> to vector<16x32xf32>
    %266 = arith.mulf %264, %265 : vector<16x32xf32>
    %267 = vector.broadcast %245 : vector<1x32xf32> to vector<16x32xf32>
    %268 = arith.addf %266, %267 : vector<16x32xf32>
    %c1 = arith.constant 1 : index
    %c0_96 = arith.constant 0 : index
    %c0_97 = arith.constant 0 : index
    %269 = vector.load %arg3[%c1, %c0_96, %c0_97] : memref<2x32x96xbf16, #tpu.memory_space<vmem>>, vector<1x32x96xbf16>
    %270 = vector.shape_cast %269 : vector<1x32x96xbf16> to vector<32x96xbf16>
    %c1_98 = arith.constant 1 : index
    %c0_99 = arith.constant 0 : index
    %c0_100 = arith.constant 0 : index
    %271 = vector.load %arg4[%c1_98, %c0_99, %c0_100] : memref<2x1x96xf32, #tpu.memory_space<vmem>>, vector<1x1x96xf32>
    %272 = vector.shape_cast %271 : vector<1x1x96xf32> to vector<1x96xf32>
    %273 = arith.truncf %268 : vector<16x32xf32> to vector<16x32xbf16>
    %cst_101 = arith.constant dense<0.000000e+00> : vector<16x96xf32>
    %274 = tpu.matmul %273, %270, %cst_101 {dimension_numbers = #tpu.dot_dimension_numbers<[1], [0], [0], [1], [0, 0, 1, 1], [], []>} : vector<16x32xbf16>, vector<32x96xbf16>, vector<16x96xf32> -> vector<16x96xf32>
    %275 = vector.broadcast %272 : vector<1x96xf32> to vector<16x96xf32>
    %276 = arith.addf %274, %275 : vector<16x96xf32>
    %277 = vector.extract_strided_slice %276 {offsets = [0, 0], sizes = [16, 32], strides = [1, 1]} : vector<16x96xf32> to vector<16x32xf32>
    %278 = vector.extract_strided_slice %276 {offsets = [0, 32], sizes = [16, 32], strides = [1, 1]} : vector<16x96xf32> to vector<16x32xf32>
    %279 = vector.extract_strided_slice %276 {offsets = [0, 64], sizes = [16, 32], strides = [1, 1]} : vector<16x96xf32> to vector<16x32xf32>
    %280 = vector.extract_strided_slice %277 {offsets = [0, 0], sizes = [8, 8], strides = [1, 1]} : vector<16x32xf32> to vector<8x8xf32>
    %281 = arith.truncf %280 : vector<8x8xf32> to vector<8x8xbf16>
    %282 = vector.extract_strided_slice %278 {offsets = [0, 0], sizes = [8, 8], strides = [1, 1]} : vector<16x32xf32> to vector<8x8xf32>
    %283 = arith.truncf %282 : vector<8x8xf32> to vector<8x8xbf16>
    %284 = vector.extract_strided_slice %279 {offsets = [0, 0], sizes = [8, 8], strides = [1, 1]} : vector<16x32xf32> to vector<8x8xf32>
    %285 = arith.truncf %284 : vector<8x8xf32> to vector<8x8xbf16>
    %cst_102 = arith.constant dense<0.000000e+00> : vector<8x8xf32>
    %286 = tpu.matmul %281, %283, %cst_102 {dimension_numbers = #tpu.dot_dimension_numbers<[1], [1], [0], [0], [0, 0, 1, 0], [], []>} : vector<8x8xbf16>, vector<8x8xbf16>, vector<8x8xf32> -> vector<8x8xf32>
    %cst_103 = arith.constant 0.353553385 : f32
    %287 = vector.broadcast %cst_103 : f32 to vector<8x8xf32>
    %288 = arith.mulf %286, %287 : vector<8x8xf32>
    %cst_104 = arith.constant dense<0xFF800000> : vector<8xf32>
    %289 = vector.multi_reduction <maximumf>, %288, %cst_104 [1] : vector<8x8xf32> to vector<8xf32>
    %290 = vector.shape_cast %289 : vector<8xf32> to vector<8x1xf32>
    %291 = vector.broadcast %290 : vector<8x1xf32> to vector<8x8xf32>
    %292 = arith.subf %288, %291 : vector<8x8xf32>
    %293 = math.exp %292 : vector<8x8xf32>
    %cst_105 = arith.constant dense<0.000000e+00> : vector<8xf32>
    %294 = vector.multi_reduction <add>, %293, %cst_105 [1] : vector<8x8xf32> to vector<8xf32>
    %295 = vector.shape_cast %294 : vector<8xf32> to vector<8x1xf32>
    %296 = tpu.reciprocal %295 {approx = true} : vector<8x1xf32> -> vector<8x1xf32>
    %297 = vector.broadcast %296 : vector<8x1xf32> to vector<8x8xf32>
    %298 = arith.mulf %293, %297 : vector<8x8xf32>
    %299 = arith.truncf %298 : vector<8x8xf32> to vector<8x8xbf16>
    %cst_106 = arith.constant dense<0.000000e+00> : vector<8x8xf32>
    %300 = tpu.matmul %299, %285, %cst_106 {dimension_numbers = #tpu.dot_dimension_numbers<[1], [0], [0], [1], [0, 0, 1, 1], [], []>} : vector<8x8xbf16>, vector<8x8xbf16>, vector<8x8xf32> -> vector<8x8xf32>
    %301 = vector.extract_strided_slice %277 {offsets = [0, 8], sizes = [8, 8], strides = [1, 1]} : vector<16x32xf32> to vector<8x8xf32>
    %302 = arith.truncf %301 : vector<8x8xf32> to vector<8x8xbf16>
    %303 = vector.extract_strided_slice %278 {offsets = [0, 8], sizes = [8, 8], strides = [1, 1]} : vector<16x32xf32> to vector<8x8xf32>
    %304 = arith.truncf %303 : vector<8x8xf32> to vector<8x8xbf16>
    %305 = vector.extract_strided_slice %279 {offsets = [0, 8], sizes = [8, 8], strides = [1, 1]} : vector<16x32xf32> to vector<8x8xf32>
    %306 = arith.truncf %305 : vector<8x8xf32> to vector<8x8xbf16>
    %cst_107 = arith.constant dense<0.000000e+00> : vector<8x8xf32>
    %307 = tpu.matmul %302, %304, %cst_107 {dimension_numbers = #tpu.dot_dimension_numbers<[1], [1], [0], [0], [0, 0, 1, 0], [], []>} : vector<8x8xbf16>, vector<8x8xbf16>, vector<8x8xf32> -> vector<8x8xf32>
    %cst_108 = arith.constant 0.353553385 : f32
    %308 = vector.broadcast %cst_108 : f32 to vector<8x8xf32>
    %309 = arith.mulf %307, %308 : vector<8x8xf32>
    %cst_109 = arith.constant dense<0xFF800000> : vector<8xf32>
    %310 = vector.multi_reduction <maximumf>, %309, %cst_109 [1] : vector<8x8xf32> to vector<8xf32>
    %311 = vector.shape_cast %310 : vector<8xf32> to vector<8x1xf32>
    %312 = vector.broadcast %311 : vector<8x1xf32> to vector<8x8xf32>
    %313 = arith.subf %309, %312 : vector<8x8xf32>
    %314 = math.exp %313 : vector<8x8xf32>
    %cst_110 = arith.constant dense<0.000000e+00> : vector<8xf32>
    %315 = vector.multi_reduction <add>, %314, %cst_110 [1] : vector<8x8xf32> to vector<8xf32>
    %316 = vector.shape_cast %315 : vector<8xf32> to vector<8x1xf32>
    %317 = tpu.reciprocal %316 {approx = true} : vector<8x1xf32> -> vector<8x1xf32>
    %318 = vector.broadcast %317 : vector<8x1xf32> to vector<8x8xf32>
    %319 = arith.mulf %314, %318 : vector<8x8xf32>
    %320 = arith.truncf %319 : vector<8x8xf32> to vector<8x8xbf16>
    %cst_111 = arith.constant dense<0.000000e+00> : vector<8x8xf32>
    %321 = tpu.matmul %320, %306, %cst_111 {dimension_numbers = #tpu.dot_dimension_numbers<[1], [0], [0], [1], [0, 0, 1, 1], [], []>} : vector<8x8xbf16>, vector<8x8xbf16>, vector<8x8xf32> -> vector<8x8xf32>
    %322 = vector.extract_strided_slice %277 {offsets = [0, 16], sizes = [8, 8], strides = [1, 1]} : vector<16x32xf32> to vector<8x8xf32>
    %323 = arith.truncf %322 : vector<8x8xf32> to vector<8x8xbf16>
    %324 = vector.extract_strided_slice %278 {offsets = [0, 16], sizes = [8, 8], strides = [1, 1]} : vector<16x32xf32> to vector<8x8xf32>
    %325 = arith.truncf %324 : vector<8x8xf32> to vector<8x8xbf16>
    %326 = vector.extract_strided_slice %279 {offsets = [0, 16], sizes = [8, 8], strides = [1, 1]} : vector<16x32xf32> to vector<8x8xf32>
    %327 = arith.truncf %326 : vector<8x8xf32> to vector<8x8xbf16>
    %cst_112 = arith.constant dense<0.000000e+00> : vector<8x8xf32>
    %328 = tpu.matmul %323, %325, %cst_112 {dimension_numbers = #tpu.dot_dimension_numbers<[1], [1], [0], [0], [0, 0, 1, 0], [], []>} : vector<8x8xbf16>, vector<8x8xbf16>, vector<8x8xf32> -> vector<8x8xf32>
    %cst_113 = arith.constant 0.353553385 : f32
    %329 = vector.broadcast %cst_113 : f32 to vector<8x8xf32>
    %330 = arith.mulf %328, %329 : vector<8x8xf32>
    %cst_114 = arith.constant dense<0xFF800000> : vector<8xf32>
    %331 = vector.multi_reduction <maximumf>, %330, %cst_114 [1] : vector<8x8xf32> to vector<8xf32>
    %332 = vector.shape_cast %331 : vector<8xf32> to vector<8x1xf32>
    %333 = vector.broadcast %332 : vector<8x1xf32> to vector<8x8xf32>
    %334 = arith.subf %330, %333 : vector<8x8xf32>
    %335 = math.exp %334 : vector<8x8xf32>
    %cst_115 = arith.constant dense<0.000000e+00> : vector<8xf32>
    %336 = vector.multi_reduction <add>, %335, %cst_115 [1] : vector<8x8xf32> to vector<8xf32>
    %337 = vector.shape_cast %336 : vector<8xf32> to vector<8x1xf32>
    %338 = tpu.reciprocal %337 {approx = true} : vector<8x1xf32> -> vector<8x1xf32>
    %339 = vector.broadcast %338 : vector<8x1xf32> to vector<8x8xf32>
    %340 = arith.mulf %335, %339 : vector<8x8xf32>
    %341 = arith.truncf %340 : vector<8x8xf32> to vector<8x8xbf16>
    %cst_116 = arith.constant dense<0.000000e+00> : vector<8x8xf32>
    %342 = tpu.matmul %341, %327, %cst_116 {dimension_numbers = #tpu.dot_dimension_numbers<[1], [0], [0], [1], [0, 0, 1, 1], [], []>} : vector<8x8xbf16>, vector<8x8xbf16>, vector<8x8xf32> -> vector<8x8xf32>
    %343 = vector.extract_strided_slice %277 {offsets = [0, 24], sizes = [8, 8], strides = [1, 1]} : vector<16x32xf32> to vector<8x8xf32>
    %344 = arith.truncf %343 : vector<8x8xf32> to vector<8x8xbf16>
    %345 = vector.extract_strided_slice %278 {offsets = [0, 24], sizes = [8, 8], strides = [1, 1]} : vector<16x32xf32> to vector<8x8xf32>
    %346 = arith.truncf %345 : vector<8x8xf32> to vector<8x8xbf16>
    %347 = vector.extract_strided_slice %279 {offsets = [0, 24], sizes = [8, 8], strides = [1, 1]} : vector<16x32xf32> to vector<8x8xf32>
    %348 = arith.truncf %347 : vector<8x8xf32> to vector<8x8xbf16>
    %cst_117 = arith.constant dense<0.000000e+00> : vector<8x8xf32>
    %349 = tpu.matmul %344, %346, %cst_117 {dimension_numbers = #tpu.dot_dimension_numbers<[1], [1], [0], [0], [0, 0, 1, 0], [], []>} : vector<8x8xbf16>, vector<8x8xbf16>, vector<8x8xf32> -> vector<8x8xf32>
    %cst_118 = arith.constant 0.353553385 : f32
    %350 = vector.broadcast %cst_118 : f32 to vector<8x8xf32>
    %351 = arith.mulf %349, %350 : vector<8x8xf32>
    %cst_119 = arith.constant dense<0xFF800000> : vector<8xf32>
    %352 = vector.multi_reduction <maximumf>, %351, %cst_119 [1] : vector<8x8xf32> to vector<8xf32>
    %353 = vector.shape_cast %352 : vector<8xf32> to vector<8x1xf32>
    %354 = vector.broadcast %353 : vector<8x1xf32> to vector<8x8xf32>
    %355 = arith.subf %351, %354 : vector<8x8xf32>
    %356 = math.exp %355 : vector<8x8xf32>
    %cst_120 = arith.constant dense<0.000000e+00> : vector<8xf32>
    %357 = vector.multi_reduction <add>, %356, %cst_120 [1] : vector<8x8xf32> to vector<8xf32>
    %358 = vector.shape_cast %357 : vector<8xf32> to vector<8x1xf32>
    %359 = tpu.reciprocal %358 {approx = true} : vector<8x1xf32> -> vector<8x1xf32>
    %360 = vector.broadcast %359 : vector<8x1xf32> to vector<8x8xf32>
    %361 = arith.mulf %356, %360 : vector<8x8xf32>
    %362 = arith.truncf %361 : vector<8x8xf32> to vector<8x8xbf16>
    %cst_121 = arith.constant dense<0.000000e+00> : vector<8x8xf32>
    %363 = tpu.matmul %362, %348, %cst_121 {dimension_numbers = #tpu.dot_dimension_numbers<[1], [0], [0], [1], [0, 0, 1, 1], [], []>} : vector<8x8xbf16>, vector<8x8xbf16>, vector<8x8xf32> -> vector<8x8xf32>
    %364 = tpu.concatenate %300, %321, %342, %363 in 1 : vector<8x8xf32>, vector<8x8xf32>, vector<8x8xf32>, vector<8x8xf32> -> vector<8x32xf32>
    %365 = vector.extract_strided_slice %277 {offsets = [8, 0], sizes = [8, 8], strides = [1, 1]} : vector<16x32xf32> to vector<8x8xf32>
    %366 = arith.truncf %365 : vector<8x8xf32> to vector<8x8xbf16>
    %367 = vector.extract_strided_slice %278 {offsets = [8, 0], sizes = [8, 8], strides = [1, 1]} : vector<16x32xf32> to vector<8x8xf32>
    %368 = arith.truncf %367 : vector<8x8xf32> to vector<8x8xbf16>
    %369 = vector.extract_strided_slice %279 {offsets = [8, 0], sizes = [8, 8], strides = [1, 1]} : vector<16x32xf32> to vector<8x8xf32>
    %370 = arith.truncf %369 : vector<8x8xf32> to vector<8x8xbf16>
    %cst_122 = arith.constant dense<0.000000e+00> : vector<8x8xf32>
    %371 = tpu.matmul %366, %368, %cst_122 {dimension_numbers = #tpu.dot_dimension_numbers<[1], [1], [0], [0], [0, 0, 1, 0], [], []>} : vector<8x8xbf16>, vector<8x8xbf16>, vector<8x8xf32> -> vector<8x8xf32>
    %cst_123 = arith.constant 0.353553385 : f32
    %372 = vector.broadcast %cst_123 : f32 to vector<8x8xf32>
    %373 = arith.mulf %371, %372 : vector<8x8xf32>
    %cst_124 = arith.constant dense<0xFF800000> : vector<8xf32>
    %374 = vector.multi_reduction <maximumf>, %373, %cst_124 [1] : vector<8x8xf32> to vector<8xf32>
    %375 = vector.shape_cast %374 : vector<8xf32> to vector<8x1xf32>
    %376 = vector.broadcast %375 : vector<8x1xf32> to vector<8x8xf32>
    %377 = arith.subf %373, %376 : vector<8x8xf32>
    %378 = math.exp %377 : vector<8x8xf32>
    %cst_125 = arith.constant dense<0.000000e+00> : vector<8xf32>
    %379 = vector.multi_reduction <add>, %378, %cst_125 [1] : vector<8x8xf32> to vector<8xf32>
    %380 = vector.shape_cast %379 : vector<8xf32> to vector<8x1xf32>
    %381 = tpu.reciprocal %380 {approx = true} : vector<8x1xf32> -> vector<8x1xf32>
    %382 = vector.broadcast %381 : vector<8x1xf32> to vector<8x8xf32>
    %383 = arith.mulf %378, %382 : vector<8x8xf32>
    %384 = arith.truncf %383 : vector<8x8xf32> to vector<8x8xbf16>
    %cst_126 = arith.constant dense<0.000000e+00> : vector<8x8xf32>
    %385 = tpu.matmul %384, %370, %cst_126 {dimension_numbers = #tpu.dot_dimension_numbers<[1], [0], [0], [1], [0, 0, 1, 1], [], []>} : vector<8x8xbf16>, vector<8x8xbf16>, vector<8x8xf32> -> vector<8x8xf32>
    %386 = vector.extract_strided_slice %277 {offsets = [8, 8], sizes = [8, 8], strides = [1, 1]} : vector<16x32xf32> to vector<8x8xf32>
    %387 = arith.truncf %386 : vector<8x8xf32> to vector<8x8xbf16>
    %388 = vector.extract_strided_slice %278 {offsets = [8, 8], sizes = [8, 8], strides = [1, 1]} : vector<16x32xf32> to vector<8x8xf32>
    %389 = arith.truncf %388 : vector<8x8xf32> to vector<8x8xbf16>
    %390 = vector.extract_strided_slice %279 {offsets = [8, 8], sizes = [8, 8], strides = [1, 1]} : vector<16x32xf32> to vector<8x8xf32>
    %391 = arith.truncf %390 : vector<8x8xf32> to vector<8x8xbf16>
    %cst_127 = arith.constant dense<0.000000e+00> : vector<8x8xf32>
    %392 = tpu.matmul %387, %389, %cst_127 {dimension_numbers = #tpu.dot_dimension_numbers<[1], [1], [0], [0], [0, 0, 1, 0], [], []>} : vector<8x8xbf16>, vector<8x8xbf16>, vector<8x8xf32> -> vector<8x8xf32>
    %cst_128 = arith.constant 0.353553385 : f32
    %393 = vector.broadcast %cst_128 : f32 to vector<8x8xf32>
    %394 = arith.mulf %392, %393 : vector<8x8xf32>
    %cst_129 = arith.constant dense<0xFF800000> : vector<8xf32>
    %395 = vector.multi_reduction <maximumf>, %394, %cst_129 [1] : vector<8x8xf32> to vector<8xf32>
    %396 = vector.shape_cast %395 : vector<8xf32> to vector<8x1xf32>
    %397 = vector.broadcast %396 : vector<8x1xf32> to vector<8x8xf32>
    %398 = arith.subf %394, %397 : vector<8x8xf32>
    %399 = math.exp %398 : vector<8x8xf32>
    %cst_130 = arith.constant dense<0.000000e+00> : vector<8xf32>
    %400 = vector.multi_reduction <add>, %399, %cst_130 [1] : vector<8x8xf32> to vector<8xf32>
    %401 = vector.shape_cast %400 : vector<8xf32> to vector<8x1xf32>
    %402 = tpu.reciprocal %401 {approx = true} : vector<8x1xf32> -> vector<8x1xf32>
    %403 = vector.broadcast %402 : vector<8x1xf32> to vector<8x8xf32>
    %404 = arith.mulf %399, %403 : vector<8x8xf32>
    %405 = arith.truncf %404 : vector<8x8xf32> to vector<8x8xbf16>
    %cst_131 = arith.constant dense<0.000000e+00> : vector<8x8xf32>
    %406 = tpu.matmul %405, %391, %cst_131 {dimension_numbers = #tpu.dot_dimension_numbers<[1], [0], [0], [1], [0, 0, 1, 1], [], []>} : vector<8x8xbf16>, vector<8x8xbf16>, vector<8x8xf32> -> vector<8x8xf32>
    %407 = vector.extract_strided_slice %277 {offsets = [8, 16], sizes = [8, 8], strides = [1, 1]} : vector<16x32xf32> to vector<8x8xf32>
    %408 = arith.truncf %407 : vector<8x8xf32> to vector<8x8xbf16>
    %409 = vector.extract_strided_slice %278 {offsets = [8, 16], sizes = [8, 8], strides = [1, 1]} : vector<16x32xf32> to vector<8x8xf32>
    %410 = arith.truncf %409 : vector<8x8xf32> to vector<8x8xbf16>
    %411 = vector.extract_strided_slice %279 {offsets = [8, 16], sizes = [8, 8], strides = [1, 1]} : vector<16x32xf32> to vector<8x8xf32>
    %412 = arith.truncf %411 : vector<8x8xf32> to vector<8x8xbf16>
    %cst_132 = arith.constant dense<0.000000e+00> : vector<8x8xf32>
    %413 = tpu.matmul %408, %410, %cst_132 {dimension_numbers = #tpu.dot_dimension_numbers<[1], [1], [0], [0], [0, 0, 1, 0], [], []>} : vector<8x8xbf16>, vector<8x8xbf16>, vector<8x8xf32> -> vector<8x8xf32>
    %cst_133 = arith.constant 0.353553385 : f32
    %414 = vector.broadcast %cst_133 : f32 to vector<8x8xf32>
    %415 = arith.mulf %413, %414 : vector<8x8xf32>
    %cst_134 = arith.constant dense<0xFF800000> : vector<8xf32>
    %416 = vector.multi_reduction <maximumf>, %415, %cst_134 [1] : vector<8x8xf32> to vector<8xf32>
    %417 = vector.shape_cast %416 : vector<8xf32> to vector<8x1xf32>
    %418 = vector.broadcast %417 : vector<8x1xf32> to vector<8x8xf32>
    %419 = arith.subf %415, %418 : vector<8x8xf32>
    %420 = math.exp %419 : vector<8x8xf32>
    %cst_135 = arith.constant dense<0.000000e+00> : vector<8xf32>
    %421 = vector.multi_reduction <add>, %420, %cst_135 [1] : vector<8x8xf32> to vector<8xf32>
    %422 = vector.shape_cast %421 : vector<8xf32> to vector<8x1xf32>
    %423 = tpu.reciprocal %422 {approx = true} : vector<8x1xf32> -> vector<8x1xf32>
    %424 = vector.broadcast %423 : vector<8x1xf32> to vector<8x8xf32>
    %425 = arith.mulf %420, %424 : vector<8x8xf32>
    %426 = arith.truncf %425 : vector<8x8xf32> to vector<8x8xbf16>
    %cst_136 = arith.constant dense<0.000000e+00> : vector<8x8xf32>
    %427 = tpu.matmul %426, %412, %cst_136 {dimension_numbers = #tpu.dot_dimension_numbers<[1], [0], [0], [1], [0, 0, 1, 1], [], []>} : vector<8x8xbf16>, vector<8x8xbf16>, vector<8x8xf32> -> vector<8x8xf32>
    %428 = vector.extract_strided_slice %277 {offsets = [8, 24], sizes = [8, 8], strides = [1, 1]} : vector<16x32xf32> to vector<8x8xf32>
    %429 = arith.truncf %428 : vector<8x8xf32> to vector<8x8xbf16>
    %430 = vector.extract_strided_slice %278 {offsets = [8, 24], sizes = [8, 8], strides = [1, 1]} : vector<16x32xf32> to vector<8x8xf32>
    %431 = arith.truncf %430 : vector<8x8xf32> to vector<8x8xbf16>
    %432 = vector.extract_strided_slice %279 {offsets = [8, 24], sizes = [8, 8], strides = [1, 1]} : vector<16x32xf32> to vector<8x8xf32>
    %433 = arith.truncf %432 : vector<8x8xf32> to vector<8x8xbf16>
    %cst_137 = arith.constant dense<0.000000e+00> : vector<8x8xf32>
    %434 = tpu.matmul %429, %431, %cst_137 {dimension_numbers = #tpu.dot_dimension_numbers<[1], [1], [0], [0], [0, 0, 1, 0], [], []>} : vector<8x8xbf16>, vector<8x8xbf16>, vector<8x8xf32> -> vector<8x8xf32>
    %cst_138 = arith.constant 0.353553385 : f32
    %435 = vector.broadcast %cst_138 : f32 to vector<8x8xf32>
    %436 = arith.mulf %434, %435 : vector<8x8xf32>
    %cst_139 = arith.constant dense<0xFF800000> : vector<8xf32>
    %437 = vector.multi_reduction <maximumf>, %436, %cst_139 [1] : vector<8x8xf32> to vector<8xf32>
    %438 = vector.shape_cast %437 : vector<8xf32> to vector<8x1xf32>
    %439 = vector.broadcast %438 : vector<8x1xf32> to vector<8x8xf32>
    %440 = arith.subf %436, %439 : vector<8x8xf32>
    %441 = math.exp %440 : vector<8x8xf32>
    %cst_140 = arith.constant dense<0.000000e+00> : vector<8xf32>
    %442 = vector.multi_reduction <add>, %441, %cst_140 [1] : vector<8x8xf32> to vector<8xf32>
    %443 = vector.shape_cast %442 : vector<8xf32> to vector<8x1xf32>
    %444 = tpu.reciprocal %443 {approx = true} : vector<8x1xf32> -> vector<8x1xf32>
    %445 = vector.broadcast %444 : vector<8x1xf32> to vector<8x8xf32>
    %446 = arith.mulf %441, %445 : vector<8x8xf32>
    %447 = arith.truncf %446 : vector<8x8xf32> to vector<8x8xbf16>
    %cst_141 = arith.constant dense<0.000000e+00> : vector<8x8xf32>
    %448 = tpu.matmul %447, %433, %cst_141 {dimension_numbers = #tpu.dot_dimension_numbers<[1], [0], [0], [1], [0, 0, 1, 1], [], []>} : vector<8x8xbf16>, vector<8x8xbf16>, vector<8x8xf32> -> vector<8x8xf32>
    %449 = tpu.concatenate %385, %406, %427, %448 in 1 : vector<8x8xf32>, vector<8x8xf32>, vector<8x8xf32>, vector<8x8xf32> -> vector<8x32xf32>
    %450 = tpu.concatenate %364, %449 in 0 : vector<8x32xf32>, vector<8x32xf32> -> vector<16x32xf32>
    %c1_142 = arith.constant 1 : index
    %c0_143 = arith.constant 0 : index
    %c0_144 = arith.constant 0 : index
    %451 = vector.load %arg5[%c1_142, %c0_143, %c0_144] : memref<2x32x32xbf16, #tpu.memory_space<vmem>>, vector<1x32x32xbf16>
    %452 = vector.shape_cast %451 : vector<1x32x32xbf16> to vector<32x32xbf16>
    %c1_145 = arith.constant 1 : index
    %c0_146 = arith.constant 0 : index
    %c0_147 = arith.constant 0 : index
    %453 = vector.load %arg6[%c1_145, %c0_146, %c0_147] : memref<2x1x32xf32, #tpu.memory_space<vmem>>, vector<1x1x32xf32>
    %454 = vector.shape_cast %453 : vector<1x1x32xf32> to vector<1x32xf32>
    %455 = arith.truncf %450 : vector<16x32xf32> to vector<16x32xbf16>
    %cst_148 = arith.constant dense<0.000000e+00> : vector<16x32xf32>
    %456 = tpu.matmul %455, %452, %cst_148 {dimension_numbers = #tpu.dot_dimension_numbers<[1], [0], [0], [1], [0, 0, 1, 1], [], []>} : vector<16x32xbf16>, vector<32x32xbf16>, vector<16x32xf32> -> vector<16x32xf32>
    %457 = vector.broadcast %454 : vector<1x32xf32> to vector<16x32xf32>
    %458 = arith.addf %456, %457 : vector<16x32xf32>
    %c1_149 = arith.constant 1 : index
    %c0_150 = arith.constant 0 : index
    %c0_151 = arith.constant 0 : index
    %459 = vector.load %arg11[%c1_149, %c0_150, %c0_151] : memref<2x1x32xf32, #tpu.memory_space<vmem>>, vector<1x1x32xf32>
    %460 = vector.shape_cast %459 : vector<1x1x32xf32> to vector<1x32xf32>
    %c1_152 = arith.constant 1 : index
    %c0_153 = arith.constant 0 : index
    %c0_154 = arith.constant 0 : index
    %461 = vector.load %arg12[%c1_152, %c0_153, %c0_154] : memref<2x1x32xf32, #tpu.memory_space<vmem>>, vector<1x1x32xf32>
    %462 = vector.shape_cast %461 : vector<1x1x32xf32> to vector<1x32xf32>
    %463 = arith.addf %268, %458 : vector<16x32xf32>
    %cst_155 = arith.constant dense<0.000000e+00> : vector<16xf32>
    %464 = vector.multi_reduction <add>, %463, %cst_155 [1] : vector<16x32xf32> to vector<16xf32>
    %465 = vector.shape_cast %464 : vector<16xf32> to vector<16x1xf32>
    %cst_156 = arith.constant 3.200000e+01 : f32
    %466 = vector.broadcast %cst_156 : f32 to vector<16x1xf32>
    %467 = arith.divf %465, %466 : vector<16x1xf32>
    %468 = vector.broadcast %467 : vector<16x1xf32> to vector<16x32xf32>
    %469 = arith.subf %463, %468 : vector<16x32xf32>
    %470 = arith.mulf %469, %469 : vector<16x32xf32>
    %cst_157 = arith.constant dense<0.000000e+00> : vector<16xf32>
    %471 = vector.multi_reduction <add>, %470, %cst_157 [1] : vector<16x32xf32> to vector<16xf32>
    %472 = vector.shape_cast %471 : vector<16xf32> to vector<16x1xf32>
    %cst_158 = arith.constant 3.200000e+01 : f32
    %473 = vector.broadcast %cst_158 : f32 to vector<16x1xf32>
    %474 = arith.divf %472, %473 : vector<16x1xf32>
    %475 = vector.broadcast %467 : vector<16x1xf32> to vector<16x32xf32>
    %476 = arith.subf %463, %475 : vector<16x32xf32>
    %cst_159 = arith.constant 9.99999974E-6 : f32
    %477 = vector.broadcast %cst_159 : f32 to vector<16x1xf32>
    %478 = arith.addf %474, %477 : vector<16x1xf32>
    %479 = math.rsqrt %478 : vector<16x1xf32>
    %480 = vector.broadcast %479 : vector<16x1xf32> to vector<16x32xf32>
    %481 = arith.mulf %476, %480 : vector<16x32xf32>
    %482 = vector.broadcast %460 : vector<1x32xf32> to vector<16x32xf32>
    %483 = arith.mulf %481, %482 : vector<16x32xf32>
    %484 = vector.broadcast %462 : vector<1x32xf32> to vector<16x32xf32>
    %485 = arith.addf %483, %484 : vector<16x32xf32>
    %c1_160 = arith.constant 1 : index
    %c0_161 = arith.constant 0 : index
    %c0_162 = arith.constant 0 : index
    %486 = vector.load %arg7[%c1_160, %c0_161, %c0_162] : memref<2x32x2048xbf16, #tpu.memory_space<vmem>>, vector<1x32x2048xbf16>
    %487 = vector.shape_cast %486 : vector<1x32x2048xbf16> to vector<32x2048xbf16>
    %c1_163 = arith.constant 1 : index
    %c0_164 = arith.constant 0 : index
    %c0_165 = arith.constant 0 : index
    %488 = vector.load %arg8[%c1_163, %c0_164, %c0_165] : memref<2x1x2048xf32, #tpu.memory_space<vmem>>, vector<1x1x2048xf32>
    %489 = vector.shape_cast %488 : vector<1x1x2048xf32> to vector<1x2048xf32>
    %490 = arith.truncf %485 : vector<16x32xf32> to vector<16x32xbf16>
    %cst_166 = arith.constant dense<0.000000e+00> : vector<16x2048xf32>
    %491 = tpu.matmul %490, %487, %cst_166 {dimension_numbers = #tpu.dot_dimension_numbers<[1], [0], [0], [1], [0, 0, 1, 1], [], []>} : vector<16x32xbf16>, vector<32x2048xbf16>, vector<16x2048xf32> -> vector<16x2048xf32>
    %492 = vector.broadcast %489 : vector<1x2048xf32> to vector<16x2048xf32>
    %493 = arith.addf %491, %492 : vector<16x2048xf32>
    %cst_167 = arith.constant 0.000000e+00 : f32
    %494 = vector.broadcast %cst_167 : f32 to vector<16x2048xf32>
    %495 = arith.maximumf %493, %494 : vector<16x2048xf32>
    %c1_168 = arith.constant 1 : index
    %c0_169 = arith.constant 0 : index
    %c0_170 = arith.constant 0 : index
    %496 = vector.load %arg9[%c1_168, %c0_169, %c0_170] : memref<2x2048x32xbf16, #tpu.memory_space<vmem>>, vector<1x2048x32xbf16>
    %497 = vector.shape_cast %496 : vector<1x2048x32xbf16> to vector<2048x32xbf16>
    %c1_171 = arith.constant 1 : index
    %c0_172 = arith.constant 0 : index
    %c0_173 = arith.constant 0 : index
    %498 = vector.load %arg10[%c1_171, %c0_172, %c0_173] : memref<2x1x32xf32, #tpu.memory_space<vmem>>, vector<1x1x32xf32>
    %499 = vector.shape_cast %498 : vector<1x1x32xf32> to vector<1x32xf32>
    %500 = arith.truncf %495 : vector<16x2048xf32> to vector<16x2048xbf16>
    %cst_174 = arith.constant dense<0.000000e+00> : vector<16x32xf32>
    %501 = tpu.matmul %500, %497, %cst_174 {dimension_numbers = #tpu.dot_dimension_numbers<[1], [0], [0], [1], [0, 0, 1, 1], [], []>} : vector<16x2048xbf16>, vector<2048x32xbf16>, vector<16x32xf32> -> vector<16x32xf32>
    %502 = vector.broadcast %499 : vector<1x32xf32> to vector<16x32xf32>
    %503 = arith.addf %501, %502 : vector<16x32xf32>
    %c1_175 = arith.constant 1 : index
    %c0_176 = arith.constant 0 : index
    %c0_177 = arith.constant 0 : index
    %504 = vector.load %arg13[%c1_175, %c0_176, %c0_177] : memref<2x1x32xf32, #tpu.memory_space<vmem>>, vector<1x1x32xf32>
    %505 = vector.shape_cast %504 : vector<1x1x32xf32> to vector<1x32xf32>
    %c1_178 = arith.constant 1 : index
    %c0_179 = arith.constant 0 : index
    %c0_180 = arith.constant 0 : index
    %506 = vector.load %arg14[%c1_178, %c0_179, %c0_180] : memref<2x1x32xf32, #tpu.memory_space<vmem>>, vector<1x1x32xf32>
    %507 = vector.shape_cast %506 : vector<1x1x32xf32> to vector<1x32xf32>
    %508 = arith.addf %485, %503 : vector<16x32xf32>
    %cst_181 = arith.constant dense<0.000000e+00> : vector<16xf32>
    %509 = vector.multi_reduction <add>, %508, %cst_181 [1] : vector<16x32xf32> to vector<16xf32>
    %510 = vector.shape_cast %509 : vector<16xf32> to vector<16x1xf32>
    %cst_182 = arith.constant 3.200000e+01 : f32
    %511 = vector.broadcast %cst_182 : f32 to vector<16x1xf32>
    %512 = arith.divf %510, %511 : vector<16x1xf32>
    %513 = vector.broadcast %512 : vector<16x1xf32> to vector<16x32xf32>
    %514 = arith.subf %508, %513 : vector<16x32xf32>
    %515 = arith.mulf %514, %514 : vector<16x32xf32>
    %cst_183 = arith.constant dense<0.000000e+00> : vector<16xf32>
    %516 = vector.multi_reduction <add>, %515, %cst_183 [1] : vector<16x32xf32> to vector<16xf32>
    %517 = vector.shape_cast %516 : vector<16xf32> to vector<16x1xf32>
    %cst_184 = arith.constant 3.200000e+01 : f32
    %518 = vector.broadcast %cst_184 : f32 to vector<16x1xf32>
    %519 = arith.divf %517, %518 : vector<16x1xf32>
    %520 = vector.broadcast %512 : vector<16x1xf32> to vector<16x32xf32>
    %521 = arith.subf %508, %520 : vector<16x32xf32>
    %cst_185 = arith.constant 9.99999974E-6 : f32
    %522 = vector.broadcast %cst_185 : f32 to vector<16x1xf32>
    %523 = arith.addf %519, %522 : vector<16x1xf32>
    %524 = math.rsqrt %523 : vector<16x1xf32>
    %525 = vector.broadcast %524 : vector<16x1xf32> to vector<16x32xf32>
    %526 = arith.mulf %521, %525 : vector<16x32xf32>
    %527 = vector.broadcast %505 : vector<1x32xf32> to vector<16x32xf32>
    %528 = arith.mulf %526, %527 : vector<16x32xf32>
    %529 = vector.broadcast %507 : vector<1x32xf32> to vector<16x32xf32>
    %530 = arith.addf %528, %529 : vector<16x32xf32>
    %cst_186 = arith.constant 0.000000e+00 : f32
    %531 = vector.broadcast %cst_186 : f32 to vector<8x32xf32>
    %532 = vector.extract_strided_slice %530 {offsets = [0, 0], sizes = [8, 32], strides = [1, 1]} : vector<16x32xf32> to vector<8x32xf32>
    %533 = arith.addf %531, %532 : vector<8x32xf32>
    %534 = vector.extract_strided_slice %530 {offsets = [8, 0], sizes = [8, 32], strides = [1, 1]} : vector<16x32xf32> to vector<8x32xf32>
    %535 = arith.addf %533, %534 : vector<8x32xf32>
    %cst_187 = arith.constant 5.000000e-01 : f32
    %536 = vector.broadcast %cst_187 : f32 to vector<8x32xf32>
    %537 = arith.mulf %535, %536 : vector<8x32xf32>
    %c0_188 = arith.constant 0 : index
    %c0_189 = arith.constant 0 : index
    %538 = vector.load %arg15[%c0_188, %c0_189] : memref<32x128xbf16, #tpu.memory_space<vmem>>, vector<32x128xbf16>
    %c0_190 = arith.constant 0 : index
    %c0_191 = arith.constant 0 : index
    %539 = vector.load %arg16[%c0_190, %c0_191] : memref<1x128xf32, #tpu.memory_space<vmem>>, vector<1x128xf32>
    %540 = arith.truncf %537 : vector<8x32xf32> to vector<8x32xbf16>
    %cst_192 = arith.constant dense<0.000000e+00> : vector<8x128xf32>
    %541 = tpu.matmul %540, %538, %cst_192 {dimension_numbers = #tpu.dot_dimension_numbers<[1], [0], [0], [1], [0, 0, 1, 1], [], []>} : vector<8x32xbf16>, vector<32x128xbf16>, vector<8x128xf32> -> vector<8x128xf32>
    %542 = vector.broadcast %539 : vector<1x128xf32> to vector<8x128xf32>
    %543 = arith.addf %541, %542 : vector<8x128xf32>
    %c0_193 = arith.constant 0 : index
    %c0_194 = arith.constant 0 : index
    %544 = vector.load %arg17[%c0_193, %c0_194] : memref<8x128xf32, #tpu.memory_space<vmem>>, vector<8x128xf32>
    tpu.vector_store %arg17[%c0_193, %c0_194], %543 {strides = array<i32>} : memref<8x128xf32, #tpu.memory_space<vmem>>, vector<8x128xf32>,
    return
  }
}

</mosaic_0001>

<llo_original>
// kernel: transformer_forward.1
$region0: #{transformer_forward.1}
  #allocation0 [shape = 'u32[]', space=smem, size = 0x4, offset = 0x4, fixed_abs, tag = 'smem constant byte address 0x4 - core index']
  #allocation1 [shape = 'u32[72,128]{1,0:T(1,128)}', space=vmem, size = 0x9000, scoped, tag = 'internal scratch']
  %s0 = inlined_call_operand.vmem [shape: f32[16,32], index: 0, kind: input, shape index: {}]
  %s1 = inlined_call_operand.vmem [shape: bf16[32,32], index: 1, kind: input, shape index: {}]
  %s2 = inlined_call_operand.vmem [shape: f32[1,32], index: 2, kind: input, shape index: {}]
  %s3 = inlined_call_operand.vmem [shape: bf16[2,32,96], index: 3, kind: input, shape index: {}]
  %s4 = inlined_call_operand.vmem [shape: f32[2,1,96], index: 4, kind: input, shape index: {}]
  %s5 = inlined_call_operand.vmem [shape: bf16[2,32,32], index: 5, kind: input, shape index: {}]
  %s6 = inlined_call_operand.vmem [shape: f32[2,1,32], index: 6, kind: input, shape index: {}]
  %s7 = inlined_call_operand.vmem [shape: bf16[2,32,2048], index: 7, kind: input, shape index: {}]
  %s8 = inlined_call_operand.vmem [shape: f32[2,1,2048], index: 8, kind: input, shape index: {}]
  %s9 = inlined_call_operand.vmem [shape: bf16[2,2048,32], index: 9, kind: input, shape index: {}]
  %s10 = inlined_call_operand.vmem [shape: f32[2,1,32], index: 10, kind: input, shape index: {}]
  %s11 = inlined_call_operand.vmem [shape: f32[2,1,32], index: 11, kind: input, shape index: {}]
  %s12 = inlined_call_operand.vmem [shape: f32[2,1,32], index: 12, kind: input, shape index: {}]
  %s13 = inlined_call_operand.vmem [shape: f32[2,1,32], index: 13, kind: input, shape index: {}]
  %s14 = inlined_call_operand.vmem [shape: f32[2,1,32], index: 14, kind: input, shape index: {}]
  %s15 = inlined_call_operand.vmem [shape: bf16[32,128], index: 15, kind: input, shape index: {}]
  %s16 = inlined_call_operand.vmem [shape: f32[1,128], index: 16, kind: input, shape index: {}]
  %s17 = inlined_call_operand.hbm [shape: f32[8,128], index: 17, kind: output, shape index: {}]
  %s18 = sld [smem:[#allocation0]]
  $region78: #{transformer_forward.1} parent=0
    _
  %s20 = ssub.s32 1, %s18
  %s21 = scalar_select 0, %s20, %s18
  $region1: #{transformer_forward.1} parent=0
    #allocation2 [shape = 'u8[4096]{0}', space=vmem, size = 0x1000, scoped, tag = 'output window, operand 0, single buffered']
    #allocation3 [shape = 's32[1]{0}', space=sflag, size = 0x4, scoped, tag = 'scoped memory for transformer_forward.1']
    %22 = vsyncpa [#allocation3], 0
    // Predicated region
    $region2: #{transformer_forward.1} parent=1 // pred_check
      _
    $region3: #{transformer_forward.1} parent=1 // pred_check_branch
      %24 = sbr.rel (0) target = $region5
    $region4: #{transformer_forward.1} parent=1 // pred_region
      _
    $region5: #{transformer_forward.1} parent=1 // pred_fallthru
      _
    // Predicated region
    $region6: #{transformer_forward.1} parent=1 // pred_check
      _
    $region7: #{transformer_forward.1} parent=1 // pred_check_branch
      %26 = sbr.rel (0) target = $region9
    $region8: #{transformer_forward.1} parent=1 // pred_region
      _
    $region9: #{transformer_forward.1} parent=1 // pred_fallthru
      _
    // Predicated region
    $region10: #{transformer_forward.1} parent=1 // pred_check
      _
    $region11: #{transformer_forward.1} parent=1 // pred_check_branch
      %28 = sbr.rel (0) target = $region13
    $region12: #{transformer_forward.1} parent=1 // pred_region
      _
    $region13: #{transformer_forward.1} parent=1 // pred_fallthru
      _
    // Predicated region
    $region14: #{transformer_forward.1} parent=1 // pred_check
      _
    $region15: #{transformer_forward.1} parent=1 // pred_check_branch
      %30 = sbr.rel (0) target = $region17
    $region16: #{transformer_forward.1} parent=1 // pred_region
      _
    $region17: #{transformer_forward.1} parent=1 // pred_fallthru
      _
    // Predicated region
    $region18: #{transformer_forward.1} parent=1 // pred_check
      _
    $region19: #{transformer_forward.1} parent=1 // pred_check_branch
      %32 = sbr.rel (0) target = $region21
    $region20: #{transformer_forward.1} parent=1 // pred_region
      _
    $region21: #{transformer_forward.1} parent=1 // pred_fallthru
      _
    // Predicated region
    $region22: #{transformer_forward.1} parent=1 // pred_check
      _
    $region23: #{transformer_forward.1} parent=1 // pred_check_branch
      %34 = sbr.rel (0) target = $region25
    $region24: #{transformer_forward.1} parent=1 // pred_region
      _
    $region25: #{transformer_forward.1} parent=1 // pred_fallthru
      _
    // Predicated region
    $region26: #{transformer_forward.1} parent=1 // pred_check
      _
    $region27: #{transformer_forward.1} parent=1 // pred_check_branch
      %36 = sbr.rel (0) target = $region29
    $region28: #{transformer_forward.1} parent=1 // pred_region
      _
    $region29: #{transformer_forward.1} parent=1 // pred_fallthru
      _
    // Predicated region
    $region30: #{transformer_forward.1} parent=1 // pred_check
      _
    $region31: #{transformer_forward.1} parent=1 // pred_check_branch
      %38 = sbr.rel (0) target = $region33
    $region32: #{transformer_forward.1} parent=1 // pred_region
      _
    $region33: #{transformer_forward.1} parent=1 // pred_fallthru
      _
    // Predicated region
    $region34: #{transformer_forward.1} parent=1 // pred_check
      _
    $region35: #{transformer_forward.1} parent=1 // pred_check_branch
      %40 = sbr.rel (0) target = $region37
    $region36: #{transformer_forward.1} parent=1 // pred_region
      _
    $region37: #{transformer_forward.1} parent=1 // pred_fallthru
      _
    // Predicated region
    $region38: #{transformer_forward.1} parent=1 // pred_check
      _
    $region39: #{transformer_forward.1} parent=1 // pred_check_branch
      %42 = sbr.rel (0) target = $region41
    $region40: #{transformer_forward.1} parent=1 // pred_region
      _
    $region41: #{transformer_forward.1} parent=1 // pred_fallthru
      _
    // Predicated region
    $region42: #{transformer_forward.1} parent=1 // pred_check
      _
    $region43: #{transformer_forward.1} parent=1 // pred_check_branch
      %44 = sbr.rel (0) target = $region45
    $region44: #{transformer_forward.1} parent=1 // pred_region
      _
    $region45: #{transformer_forward.1} parent=1 // pred_fallthru
      _
    // Predicated region
    $region46: #{transformer_forward.1} parent=1 // pred_check
      _
    $region47: #{transformer_forward.1} parent=1 // pred_check_branch
      %46 = sbr.rel (0) target = $region49
    $region48: #{transformer_forward.1} parent=1 // pred_region
      _
    $region49: #{transformer_forward.1} parent=1 // pred_fallthru
      _
    // Predicated region
    $region50: #{transformer_forward.1} parent=1 // pred_check
      _
    $region51: #{transformer_forward.1} parent=1 // pred_check_branch
      %48 = sbr.rel (0) target = $region53
    $region52: #{transformer_forward.1} parent=1 // pred_region
      _
    $region53: #{transformer_forward.1} parent=1 // pred_fallthru
      _
    // Predicated region
    $region54: #{transformer_forward.1} parent=1 // pred_check
      _
    $region55: #{transformer_forward.1} parent=1 // pred_check_branch
      %50 = sbr.rel (0) target = $region57
    $region56: #{transformer_forward.1} parent=1 // pred_region
      _
    $region57: #{transformer_forward.1} parent=1 // pred_fallthru
      _
    // Predicated region
    $region58: #{transformer_forward.1} parent=1 // pred_check
      _
    $region59: #{transformer_forward.1} parent=1 // pred_check_branch
      %52 = sbr.rel (0) target = $region61
    $region60: #{transformer_forward.1} parent=1 // pred_region
      _
    $region61: #{transformer_forward.1} parent=1 // pred_fallthru
      _
    // Predicated region
    $region62: #{transformer_forward.1} parent=1 // pred_check
      _
    $region63: #{transformer_forward.1} parent=1 // pred_check_branch
      %54 = sbr.rel (0) target = $region65
    $region64: #{transformer_forward.1} parent=1 // pred_region
      _
    $region65: #{transformer_forward.1} parent=1 // pred_fallthru
      _
    // Predicated region
    $region66: #{transformer_forward.1} parent=1 // pred_check
      _
    $region67: #{transformer_forward.1} parent=1 // pred_check_branch
      %56 = sbr.rel (0) target = $region69
    $region68: #{transformer_forward.1} parent=1 // pred_region
      _
    $region69: #{transformer_forward.1} parent=1 // pred_fallthru
      _
    %v58 = vld [vmem:[%s0] sm:$0xff]
    %v59 = vld [vmem:[%s0 + $0x8] sm:$0xff]
    %v60 = vld [vmem:[%s1] sm:$0xf]
    %v61 = vld [vmem:[%s1 + $0x4] sm:$0xf]
    %v62 = vld [vmem:[%s1 + $0x8] sm:$0xf]
    %v63 = vld [vmem:[%s1 + $0xc] sm:$0xf]
    %v64 = vld [vmem:[%s2] sm:$0x1]
    %v65 = vpack.c.bf16 %v59, %v58
    %v67 = vperm.slane %v64, 0
    %v73 = vunpack.c.l.b16 %v60
    %v74 = vunpack.c.l.b16 %v61
    %v75 = vunpack.c.l.b16 %v62
    %v76 = vunpack.c.l.b16 %v63
    %v77 = vpack.c.b16 %v74, %v73
    %v78 = vpack.c.b16 %v76, %v75
    %vm81 = vcmask 261120
    %v83 = vsel %vm81, %v65, 0
    %85 = vmatpush.bf16.msra.mxu0 0
    %86 = vmatpush.bf16.msra.mxu0 0
    %87 = vmatpush.bf16.msra.mxu0 0
    %88 = vmatpush.bf16.msra.mxu0 0
    %89 = vmatpush.bf16.msra.mxu0 0
    %90 = vmatpush.bf16.msra.mxu0 0
    %91 = vmatpush.bf16.msra.mxu0 %v78
    %92 = vmatpush.bf16.msra.mxu0 %v77
    %93 = vmatmul.bf16.gmra.mxu0 %v83
    %v94 = vpop.f32.mrf.mxu0
    %v95 = vadd.f32 %v67, %v94
    %v96 = vpop.f32.mrf.mxu0
    %v97 = vadd.f32 %v67, %v96
    %98 = vdwg.mxu0
    %v99 = vld [vmem:[%s3] sm:$0xf]
    %v100 = vld [vmem:[%s3 + $0x4] sm:$0xf]
    %v101 = vld [vmem:[%s3 + $0x8] sm:$0xf]
    %v102 = vld [vmem:[%s3 + $0xc] sm:$0xf]
    %v103 = vld [vmem:[%s4] sm:$0x1]
    %v104 = vpack.c.bf16 %v97, %v95
    %v106 = vperm.slane %v103, 0
    %v112 = vunpack.c.l.b16 %v99
    %v113 = vunpack.c.l.b16 %v100
    %v114 = vunpack.c.l.b16 %v101
    %v115 = vunpack.c.l.b16 %v102
    %v116 = vpack.c.b16 %v113, %v112
    %v117 = vpack.c.b16 %v115, %v114
    %v121 = vsel %vm81, %v104, 0
    %123 = vmatpush.bf16.msra.mxu0 0
    %124 = vmatpush.bf16.msra.mxu0 0
    %125 = vmatpush.bf16.msra.mxu0 0
    %126 = vmatpush.bf16.msra.mxu0 0
    %127 = vmatpush.bf16.msra.mxu0 0
    %128 = vmatpush.bf16.msra.mxu0 0
    %129 = vmatpush.bf16.msra.mxu0 %v117
    %130 = vmatpush.bf16.msra.mxu0 %v116
    %131 = vmatmul.bf16.gmra.mxu0 %v121
    %v132 = vpop.f32.mrf.mxu0
    %v133 = vadd.f32 %v106, %v132
    %v134 = vpop.f32.mrf.mxu0
    %v135 = vadd.f32 %v106, %v134
    %136 = vdwg.mxu0
    %v137 = vpack.c.bf16 %v133, %v133
    %139 = vrot.lane.b32.xlu0 %v137, 96
    %v140 = vpop.permute.xlu0 %139
    %vm141 = vcmask 64512
    %v143 = vsel %vm141, %v137, 0
    %v146 = vsel %vm141, %v140, 0
    %148 = vmatpush.bf16.xpose.msra.mxu0 0
    %149 = vmatpush.bf16.xpose.msra.mxu0 0
    %150 = vmatpush.bf16.xpose.msra.mxu0 0
    %151 = vmatpush.bf16.xpose.msra.mxu0 0
    %152 = vmatpush.bf16.xpose.msra.mxu0 0
    %153 = vmatpush.bf16.xpose.msra.mxu0 0
    %154 = vmatpush.bf16.xpose.msra.mxu0 0
    %155 = vmatpush.bf16.xpose.msra.mxu0 %v146
    %156 = vmatmul.bf16.gmra.mxu0 %v143
    %v157 = vpop.f32.mrf.mxu0
    %v158 = vadd.f32 0.0, %v157
    %v159 = vpop.f32.mrf.mxu0
    %160 = vdwg.mxu0
    %v161 = vmul.f32 %v158, 0.35355338
    %v162 = vsel %vm141, %v161, -inf
    %163 = vmax.xlane.f32.xlu0 %v162
    %v164 = vpop.xlane.xlu0 %163
    %v165 = vsub.f32 %v161, %v164
    %v166 = vmul.f32 %v165, 1.442695
    %v167 = vpow.pop %v166
    %v168 = vsel %vm141, %v167, 0.0
    %169 = vadd.xlane.f32.xlu0 %v168
    %v170 = vpop.xlane.xlu0 %169
    %v171 = vrcp.pop %v170
    %v172 = vmul.f32 %v167, %v171
    %v173 = vpack.c.bf16 %v172, %v172
    %174 = vrot.lane.b32.xlu0 %v137, 64
    %v175 = vpop.permute.xlu0 %174
    %v177 = vsel %vm141, %v173, 0
    %vm179 = vcmask 1043456
    %v181 = vsel %vm179, %v175, 0
    %183 = vmatpush.bf16.msra.mxu0 0
    %184 = vmatpush.bf16.msra.mxu0 0
    %185 = vmatpush.bf16.msra.mxu0 0
    %186 = vmatpush.bf16.msra.mxu0 0
    %187 = vmatpush.bf16.msra.mxu0 0
    %188 = vmatpush.bf16.msra.mxu0 0
    %189 = vmatpush.bf16.msra.mxu0 0
    %190 = vmatpush.bf16.msra.mxu0 %v181
    %191 = vmatmul.bf16.gmra.mxu0 %v177
    %v192 = vpop.f32.mrf.mxu0
    %v193 = vadd.f32 0.0, %v192
    %v194 = vpop.f32.mrf.mxu0
    %195 = vdwg.mxu0
    %196 = vrot.lane.b32.xlu0 %v137, 120
    %v197 = vpop.permute.xlu0 %196
    %198 = vrot.lane.b32.xlu0 %v137, 88
    %v199 = vpop.permute.xlu0 %198
    %v201 = vsel %vm141, %v197, 0
    %v204 = vsel %vm141, %v199, 0
    %206 = vmatpush.bf16.xpose.msra.mxu0 0
    %207 = vmatpush.bf16.xpose.msra.mxu0 0
    %208 = vmatpush.bf16.xpose.msra.mxu0 0
    %209 = vmatpush.bf16.xpose.msra.mxu0 0
    %210 = vmatpush.bf16.xpose.msra.mxu0 0
    %211 = vmatpush.bf16.xpose.msra.mxu0 0
    %212 = vmatpush.bf16.xpose.msra.mxu0 0
    %213 = vmatpush.bf16.xpose.msra.mxu0 %v204
    %214 = vmatmul.bf16.gmra.mxu0 %v201
    %v215 = vpop.f32.mrf.mxu0
    %v216 = vadd.f32 0.0, %v215
    %v217 = vpop.f32.mrf.mxu0
    %218 = vdwg.mxu0
    %v219 = vmul.f32 %v216, 0.35355338
    %v220 = vsel %vm141, %v219, -inf
    %221 = vmax.xlane.f32.xlu0 %v220
    %v222 = vpop.xlane.xlu0 %221
    %v223 = vsub.f32 %v219, %v222
    %v224 = vmul.f32 %v223, 1.442695
    %v225 = vpow.pop %v224
    %v226 = vsel %vm141, %v225, 0.0
    %227 = vadd.xlane.f32.xlu0 %v226
    %v228 = vpop.xlane.xlu0 %227
    %v229 = vrcp.pop %v228
    %v230 = vmul.f32 %v225, %v229
    %v231 = vpack.c.bf16 %v230, %v230
    %232 = vrot.lane.b32.xlu0 %v137, 56
    %v233 = vpop.permute.xlu0 %232
    %v235 = vsel %vm141, %v231, 0
    %v238 = vsel %vm179, %v233, 0
    %240 = vmatpush.bf16.msra.mxu0 0
    %241 = vmatpush.bf16.msra.mxu0 0
    %242 = vmatpush.bf16.msra.mxu0 0
    %243 = vmatpush.bf16.msra.mxu0 0
    %244 = vmatpush.bf16.msra.mxu0 0
    %245 = vmatpush.bf16.msra.mxu0 0
    %246 = vmatpush.bf16.msra.mxu0 0
    %247 = vmatpush.bf16.msra.mxu0 %v238
    %248 = vmatmul.bf16.gmra.mxu0 %v235
    %v249 = vpop.f32.mrf.mxu0
    %v250 = vadd.f32 0.0, %v249
    %v251 = vpop.f32.mrf.mxu0
    %252 = vdwg.mxu0
    %253 = vrot.lane.b32.xlu0 %v137, 112
    %v254 = vpop.permute.xlu0 %253
    %255 = vrot.lane.b32.xlu0 %v137, 80
    %v256 = vpop.permute.xlu0 %255
    %v258 = vsel %vm141, %v254, 0
    %v261 = vsel %vm141, %v256, 0
    %263 = vmatpush.bf16.xpose.msra.mxu0 0
    %264 = vmatpush.bf16.xpose.msra.mxu0 0
    %265 = vmatpush.bf16.xpose.msra.mxu0 0
    %266 = vmatpush.bf16.xpose.msra.mxu0 0
    %267 = vmatpush.bf16.xpose.msra.mxu0 0
    %268 = vmatpush.bf16.xpose.msra.mxu0 0
    %269 = vmatpush.bf16.xpose.msra.mxu0 0
    %270 = vmatpush.bf16.xpose.msra.mxu0 %v261
    %271 = vmatmul.bf16.gmra.mxu0 %v258
    %v272 = vpop.f32.mrf.mxu0
    %v273 = vadd.f32 0.0, %v272
    %v274 = vpop.f32.mrf.mxu0
    %275 = vdwg.mxu0
    %v276 = vmul.f32 %v273, 0.35355338
    %v277 = vsel %vm141, %v276, -inf
    %278 = vmax.xlane.f32.xlu0 %v277
    %v279 = vpop.xlane.xlu0 %278
    %v280 = vsub.f32 %v276, %v279
    %v281 = vmul.f32 %v280, 1.442695
    %v282 = vpow.pop %v281
    %v283 = vsel %vm141, %v282, 0.0
    %284 = vadd.xlane.f32.xlu0 %v283
    %v285 = vpop.xlane.xlu0 %284
    %v286 = vrcp.pop %v285
    %v287 = vmul.f32 %v282, %v286
    %v288 = vpack.c.bf16 %v287, %v287
    %289 = vrot.lane.b32.xlu0 %v137, 48
    %v290 = vpop.permute.xlu0 %289
    %v292 = vsel %vm141, %v288, 0
    %v295 = vsel %vm179, %v290, 0
    %297 = vmatpush.bf16.msra.mxu0 0
    %298 = vmatpush.bf16.msra.mxu0 0
    %299 = vmatpush.bf16.msra.mxu0 0
    %300 = vmatpush.bf16.msra.mxu0 0
    %301 = vmatpush.bf16.msra.mxu0 0
    %302 = vmatpush.bf16.msra.mxu0 0
    %303 = vmatpush.bf16.msra.mxu0 0
    %304 = vmatpush.bf16.msra.mxu0 %v295
    %305 = vmatmul.bf16.gmra.mxu0 %v292
    %v306 = vpop.f32.mrf.mxu0
    %v307 = vadd.f32 0.0, %v306
    %v308 = vpop.f32.mrf.mxu0
    %309 = vdwg.mxu0
    %310 = vrot.lane.b32.xlu0 %v137, 104
    %v311 = vpop.permute.xlu0 %310
    %312 = vrot.lane.b32.xlu0 %v137, 72
    %v313 = vpop.permute.xlu0 %312
    %v315 = vsel %vm141, %v311, 0
    %v318 = vsel %vm141, %v313, 0
    %320 = vmatpush.bf16.xpose.msra.mxu0 0
    %321 = vmatpush.bf16.xpose.msra.mxu0 0
    %322 = vmatpush.bf16.xpose.msra.mxu0 0
    %323 = vmatpush.bf16.xpose.msra.mxu0 0
    %324 = vmatpush.bf16.xpose.msra.mxu0 0
    %325 = vmatpush.bf16.xpose.msra.mxu0 0
    %326 = vmatpush.bf16.xpose.msra.mxu0 0
    %327 = vmatpush.bf16.xpose.msra.mxu0 %v318
    %328 = vmatmul.bf16.gmra.mxu0 %v315
    %v329 = vpop.f32.mrf.mxu0
    %v330 = vadd.f32 0.0, %v329
    %v331 = vpop.f32.mrf.mxu0
    %332 = vdwg.mxu0
    %v333 = vmul.f32 %v330, 0.35355338
    %v334 = vsel %vm141, %v333, -inf
    %335 = vmax.xlane.f32.xlu0 %v334
    %v336 = vpop.xlane.xlu0 %335
    %v337 = vsub.f32 %v333, %v336
    %v338 = vmul.f32 %v337, 1.442695
    %v339 = vpow.pop %v338
    %v340 = vsel %vm141, %v339, 0.0
    %341 = vadd.xlane.f32.xlu0 %v340
    %v342 = vpop.xlane.xlu0 %341
    %v343 = vrcp.pop %v342
    %v344 = vmul.f32 %v339, %v343
    %v345 = vpack.c.bf16 %v344, %v344
    %346 = vrot.lane.b32.xlu0 %v137, 40
    %v347 = vpop.permute.xlu0 %346
    %v349 = vsel %vm141, %v345, 0
    %v352 = vsel %vm179, %v347, 0
    %354 = vmatpush.bf16.msra.mxu0 0
    %355 = vmatpush.bf16.msra.mxu0 0
    %356 = vmatpush.bf16.msra.mxu0 0
    %357 = vmatpush.bf16.msra.mxu0 0
    %358 = vmatpush.bf16.msra.mxu0 0
    %359 = vmatpush.bf16.msra.mxu0 0
    %360 = vmatpush.bf16.msra.mxu0 0
    %361 = vmatpush.bf16.msra.mxu0 %v352
    %362 = vmatmul.bf16.gmra.mxu0 %v349
    %v363 = vpop.f32.mrf.mxu0
    %v364 = vadd.f32 0.0, %v363
    %v365 = vpop.f32.mrf.mxu0
    %366 = vdwg.mxu0
    %368 = vrot.lane.b32.xlu0 %v250, 8
    %v369 = vpop.permute.xlu0 %368
    %372 = vrot.lane.b32.xlu0 %v307, 16
    %v373 = vpop.permute.xlu0 %372
    %376 = vrot.lane.b32.xlu0 %v364, 24
    %v377 = vpop.permute.xlu0 %376
    %v379 = vsel %vm141, %v193, %v369
    %vm380 = vcmask 130048
    %v381 = vsel %vm380, %v379, %v373
    %vm382 = vcmask 195584
    %v383 = vsel %vm382, %v381, %v377
    %v384 = vpack.c.bf16 %v135, %v135
    %386 = vrot.lane.b32.xlu0 %v384, 96
    %v387 = vpop.permute.xlu0 %386
    %v389 = vsel %vm141, %v384, 0
    %v392 = vsel %vm141, %v387, 0
    %394 = vmatpush.bf16.xpose.msra.mxu0 0
    %395 = vmatpush.bf16.xpose.msra.mxu0 0
    %396 = vmatpush.bf16.xpose.msra.mxu0 0
    %397 = vmatpush.bf16.xpose.msra.mxu0 0
    %398 = vmatpush.bf16.xpose.msra.mxu0 0
    %399 = vmatpush.bf16.xpose.msra.mxu0 0
    %400 = vmatpush.bf16.xpose.msra.mxu0 0
    %401 = vmatpush.bf16.xpose.msra.mxu0 %v392
    %402 = vmatmul.bf16.gmra.mxu0 %v389
    %v403 = vpop.f32.mrf.mxu0
    %v404 = vadd.f32 0.0, %v403
    %v405 = vpop.f32.mrf.mxu0
    %406 = vdwg.mxu0
    %v407 = vmul.f32 %v404, 0.35355338
    %v408 = vsel %vm141, %v407, -inf
    %409 = vmax.xlane.f32.xlu0 %v408
    %v410 = vpop.xlane.xlu0 %409
    %v411 = vsub.f32 %v407, %v410
    %v412 = vmul.f32 %v411, 1.442695
    %v413 = vpow.pop %v412
    %v414 = vsel %vm141, %v413, 0.0
    %415 = vadd.xlane.f32.xlu0 %v414
    %v416 = vpop.xlane.xlu0 %415
    %v417 = vrcp.pop %v416
    %v418 = vmul.f32 %v413, %v417
    %v419 = vpack.c.bf16 %v418, %v418
    %420 = vrot.lane.b32.xlu0 %v384, 64
    %v421 = vpop.permute.xlu0 %420
    %v423 = vsel %vm141, %v419, 0
    %v426 = vsel %vm179, %v421, 0
    %428 = vmatpush.bf16.msra.mxu0 0
    %429 = vmatpush.bf16.msra.mxu0 0
    %430 = vmatpush.bf16.msra.mxu0 0
    %431 = vmatpush.bf16.msra.mxu0 0
    %432 = vmatpush.bf16.msra.mxu0 0
    %433 = vmatpush.bf16.msra.mxu0 0
    %434 = vmatpush.bf16.msra.mxu0 0
    %435 = vmatpush.bf16.msra.mxu0 %v426
    %436 = vmatmul.bf16.gmra.mxu0 %v423
    %v437 = vpop.f32.mrf.mxu0
    %v438 = vadd.f32 0.0, %v437
    %v439 = vpop.f32.mrf.mxu0
    %440 = vdwg.mxu0
    %441 = vrot.lane.b32.xlu0 %v384, 120
    %v442 = vpop.permute.xlu0 %441
    %443 = vrot.lane.b32.xlu0 %v384, 88
    %v444 = vpop.permute.xlu0 %443
    %v446 = vsel %vm141, %v442, 0
    %v449 = vsel %vm141, %v444, 0
    %451 = vmatpush.bf16.xpose.msra.mxu0 0
    %452 = vmatpush.bf16.xpose.msra.mxu0 0
    %453 = vmatpush.bf16.xpose.msra.mxu0 0
    %454 = vmatpush.bf16.xpose.msra.mxu0 0
    %455 = vmatpush.bf16.xpose.msra.mxu0 0
    %456 = vmatpush.bf16.xpose.msra.mxu0 0
    %457 = vmatpush.bf16.xpose.msra.mxu0 0
    %458 = vmatpush.bf16.xpose.msra.mxu0 %v449
    %459 = vmatmul.bf16.gmra.mxu0 %v446
    %v460 = vpop.f32.mrf.mxu0
    %v461 = vadd.f32 0.0, %v460
    %v462 = vpop.f32.mrf.mxu0
    %463 = vdwg.mxu0
    %v464 = vmul.f32 %v461, 0.35355338
    %v465 = vsel %vm141, %v464, -inf
    %466 = vmax.xlane.f32.xlu0 %v465
    %v467 = vpop.xlane.xlu0 %466
    %v468 = vsub.f32 %v464, %v467
    %v469 = vmul.f32 %v468, 1.442695
    %v470 = vpow.pop %v469
    %v471 = vsel %vm141, %v470, 0.0
    %472 = vadd.xlane.f32.xlu0 %v471
    %v473 = vpop.xlane.xlu0 %472
    %v474 = vrcp.pop %v473
    %v475 = vmul.f32 %v470, %v474
    %v476 = vpack.c.bf16 %v475, %v475
    %477 = vrot.lane.b32.xlu0 %v384, 56
    %v478 = vpop.permute.xlu0 %477
    %v480 = vsel %vm141, %v476, 0
    %v483 = vsel %vm179, %v478, 0
    %485 = vmatpush.bf16.msra.mxu0 0
    %486 = vmatpush.bf16.msra.mxu0 0
    %487 = vmatpush.bf16.msra.mxu0 0
    %488 = vmatpush.bf16.msra.mxu0 0
    %489 = vmatpush.bf16.msra.mxu0 0
    %490 = vmatpush.bf16.msra.mxu0 0
    %491 = vmatpush.bf16.msra.mxu0 0
    %492 = vmatpush.bf16.msra.mxu0 %v483
    %493 = vmatmul.bf16.gmra.mxu0 %v480
    %v494 = vpop.f32.mrf.mxu0
    %v495 = vadd.f32 0.0, %v494
    %v496 = vpop.f32.mrf.mxu0
    %497 = vdwg.mxu0
    %498 = vrot.lane.b32.xlu0 %v384, 112
    %v499 = vpop.permute.xlu0 %498
    %500 = vrot.lane.b32.xlu0 %v384, 80
    %v501 = vpop.permute.xlu0 %500
    %v503 = vsel %vm141, %v499, 0
    %v506 = vsel %vm141, %v501, 0
    %508 = vmatpush.bf16.xpose.msra.mxu0 0
    %509 = vmatpush.bf16.xpose.msra.mxu0 0
    %510 = vmatpush.bf16.xpose.msra.mxu0 0
    %511 = vmatpush.bf16.xpose.msra.mxu0 0
    %512 = vmatpush.bf16.xpose.msra.mxu0 0
    %513 = vmatpush.bf16.xpose.msra.mxu0 0
    %514 = vmatpush.bf16.xpose.msra.mxu0 0
    %515 = vmatpush.bf16.xpose.msra.mxu0 %v506
    %516 = vmatmul.bf16.gmra.mxu0 %v503
    %v517 = vpop.f32.mrf.mxu0
    %v518 = vadd.f32 0.0, %v517
    %v519 = vpop.f32.mrf.mxu0
    %520 = vdwg.mxu0
    %v521 = vmul.f32 %v518, 0.35355338
    %v522 = vsel %vm141, %v521, -inf
    %523 = vmax.xlane.f32.xlu0 %v522
    %v524 = vpop.xlane.xlu0 %523
    %v525 = vsub.f32 %v521, %v524
    %v526 = vmul.f32 %v525, 1.442695
    %v527 = vpow.pop %v526
    %v528 = vsel %vm141, %v527, 0.0
    %529 = vadd.xlane.f32.xlu0 %v528
    %v530 = vpop.xlane.xlu0 %529
    %v531 = vrcp.pop %v530
    %v532 = vmul.f32 %v527, %v531
    %v533 = vpack.c.bf16 %v532, %v532
    %534 = vrot.lane.b32.xlu0 %v384, 48
    %v535 = vpop.permute.xlu0 %534
    %v537 = vsel %vm141, %v533, 0
    %v540 = vsel %vm179, %v535, 0
    %542 = vmatpush.bf16.msra.mxu0 0
    %543 = vmatpush.bf16.msra.mxu0 0
    %544 = vmatpush.bf16.msra.mxu0 0
    %545 = vmatpush.bf16.msra.mxu0 0
    %546 = vmatpush.bf16.msra.mxu0 0
    %547 = vmatpush.bf16.msra.mxu0 0
    %548 = vmatpush.bf16.msra.mxu0 0
    %549 = vmatpush.bf16.msra.mxu0 %v540
    %550 = vmatmul.bf16.gmra.mxu0 %v537
    %v551 = vpop.f32.mrf.mxu0
    %v552 = vadd.f32 0.0, %v551
    %v553 = vpop.f32.mrf.mxu0
    %554 = vdwg.mxu0
    %555 = vrot.lane.b32.xlu0 %v384, 104
    %v556 = vpop.permute.xlu0 %555
    %557 = vrot.lane.b32.xlu0 %v384, 72
    %v558 = vpop.permute.xlu0 %557
    %v560 = vsel %vm141, %v556, 0
    %v563 = vsel %vm141, %v558, 0
    %565 = vmatpush.bf16.xpose.msra.mxu0 0
    %566 = vmatpush.bf16.xpose.msra.mxu0 0
    %567 = vmatpush.bf16.xpose.msra.mxu0 0
    %568 = vmatpush.bf16.xpose.msra.mxu0 0
    %569 = vmatpush.bf16.xpose.msra.mxu0 0
    %570 = vmatpush.bf16.xpose.msra.mxu0 0
    %571 = vmatpush.bf16.xpose.msra.mxu0 0
    %572 = vmatpush.bf16.xpose.msra.mxu0 %v563
    %573 = vmatmul.bf16.gmra.mxu0 %v560
    %v574 = vpop.f32.mrf.mxu0
    %v575 = vadd.f32 0.0, %v574
    %v576 = vpop.f32.mrf.mxu0
    %577 = vdwg.mxu0
    %v578 = vmul.f32 %v575, 0.35355338
    %v579 = vsel %vm141, %v578, -inf
    %580 = vmax.xlane.f32.xlu0 %v579
    %v581 = vpop.xlane.xlu0 %580
    %v582 = vsub.f32 %v578, %v581
    %v583 = vmul.f32 %v582, 1.442695
    %v584 = vpow.pop %v583
    %v585 = vsel %vm141, %v584, 0.0
    %586 = vadd.xlane.f32.xlu0 %v585
    %v587 = vpop.xlane.xlu0 %586
    %v588 = vrcp.pop %v587
    %v589 = vmul.f32 %v584, %v588
    %v590 = vpack.c.bf16 %v589, %v589
    %591 = vrot.lane.b32.xlu0 %v384, 40
    %v592 = vpop.permute.xlu0 %591
    %v594 = vsel %vm141, %v590, 0
    %v597 = vsel %vm179, %v592, 0
    %599 = vmatpush.bf16.msra.mxu0 0
    %600 = vmatpush.bf16.msra.mxu0 0
    %601 = vmatpush.bf16.msra.mxu0 0
    %602 = vmatpush.bf16.msra.mxu0 0
    %603 = vmatpush.bf16.msra.mxu0 0
    %604 = vmatpush.bf16.msra.mxu0 0
    %605 = vmatpush.bf16.msra.mxu0 0
    %606 = vmatpush.bf16.msra.mxu0 %v597
    %607 = vmatmul.bf16.gmra.mxu0 %v594
    %v608 = vpop.f32.mrf.mxu0
    %v609 = vadd.f32 0.0, %v608
    %v610 = vpop.f32.mrf.mxu0
    %611 = vdwg.mxu0
    %613 = vrot.lane.b32.xlu0 %v495, 8
    %v614 = vpop.permute.xlu0 %613
    %617 = vrot.lane.b32.xlu0 %v552, 16
    %v618 = vpop.permute.xlu0 %617
    %621 = vrot.lane.b32.xlu0 %v609, 24
    %v622 = vpop.permute.xlu0 %621
    %v624 = vsel %vm141, %v438, %v614
    %v625 = vsel %vm380, %v624, %v618
    %v626 = vsel %vm382, %v625, %v622
    %v627 = vld [vmem:[%s5] sm:$0xf]
    %v628 = vld [vmem:[%s5 + $0x4] sm:$0xf]
    %v629 = vld [vmem:[%s5 + $0x8] sm:$0xf]
    %v630 = vld [vmem:[%s5 + $0xc] sm:$0xf]
    %v631 = vld [vmem:[%s6] sm:$0x1]
    %v632 = vpack.c.bf16 %v626, %v383
    %v634 = vperm.slane %v631, 0
    %v640 = vunpack.c.l.b16 %v627
    %v641 = vunpack.c.l.b16 %v628
    %v642 = vunpack.c.l.b16 %v629
    %v643 = vunpack.c.l.b16 %v630
    %v644 = vpack.c.b16 %v641, %v640
    %v645 = vpack.c.b16 %v643, %v642
    %v649 = vsel %vm81, %v632, 0
    %651 = vmatpush.bf16.msra.mxu0 0
    %652 = vmatpush.bf16.msra.mxu0 0
    %653 = vmatpush.bf16.msra.mxu0 0
    %654 = vmatpush.bf16.msra.mxu0 0
    %655 = vmatpush.bf16.msra.mxu0 0
    %656 = vmatpush.bf16.msra.mxu0 0
    %657 = vmatpush.bf16.msra.mxu0 %v645
    %658 = vmatpush.bf16.msra.mxu0 %v644
    %659 = vmatmul.bf16.gmra.mxu0 %v649
    %v660 = vpop.f32.mrf.mxu0
    %v661 = vadd.f32 %v634, %v660
    %v662 = vpop.f32.mrf.mxu0
    %v663 = vadd.f32 %v634, %v662
    %664 = vdwg.mxu0
    %v665 = vld [vmem:[%s11] sm:$0x1]
    %v666 = vld [vmem:[%s12] sm:$0x1]
    %v667 = vadd.f32 %v95, %v661
    %v668 = vadd.f32 %v97, %v663
    %v669 = vsel %vm81, %v667, 0.0
    %670 = vadd.xlane.f32.xlu0 %v669
    %v671 = vpop.xlane.xlu0 %670
    %v672 = vsel %vm81, %v668, 0.0
    %673 = vadd.xlane.f32.xlu0 %v672
    %v674 = vpop.xlane.xlu0 %673
    %v675 = vrcp.pop 32.0
    %v676 = vmul.f32 32.0, %v675
    %v677 = vsub.f32 1.0, %v676
    %v678 = vmul.f32 %v675, %v677
    %v679 = vadd.f32 %v675, %v678
    %vm680 = vweird.f32 %v675
    %v681 = vsel %vm680, %v675, %v679
    %v682 = vmul.f32 %v671, %v681
    %v683 = vmul.f32 %v674, %v681
    %v684 = vsub.f32 %v667, %v682
    %v685 = vsub.f32 %v668, %v683
    %v686 = vmul.f32 %v684, %v684
    %v687 = vmul.f32 %v685, %v685
    %v688 = vsel %vm81, %v686, 0.0
    %689 = vadd.xlane.f32.xlu0 %v688
    %v690 = vpop.xlane.xlu0 %689
    %v691 = vsel %vm81, %v687, 0.0
    %692 = vadd.xlane.f32.xlu0 %v691
    %v693 = vpop.xlane.xlu0 %692
    %v694 = vmul.f32 %v690, %v681
    %v695 = vmul.f32 %v693, %v681
    %v696 = vadd.f32 %v694, 1e-05
    %v697 = vadd.f32 %v695, 1e-05
    %v698 = vrsqrt.pop %v696
    %v699 = vmul.f32 %v698, %v696
    %v700 = vmul.f32 %v699, %v698
    %v701 = vmul.f32 0.5, %v700
    %v702 = vsub.f32 1.5, %v701
    %v703 = vmul.f32 %v698, %v702
    %vm704 = vweird.f32 %v696
    %vm705 = vweird.f32 %v698
    %vm706 = vmor %vm704, %vm705
    %v707 = vsel %vm706, %v698, %v703
    %v708 = vrsqrt.pop %v697
    %v709 = vmul.f32 %v708, %v697
    %v710 = vmul.f32 %v709, %v708
    %v711 = vmul.f32 0.5, %v710
    %v712 = vsub.f32 1.5, %v711
    %v713 = vmul.f32 %v708, %v712
    %vm714 = vweird.f32 %v697
    %vm715 = vweird.f32 %v708
    %vm716 = vmor %vm714, %vm715
    %v717 = vsel %vm716, %v708, %v713
    %v718 = vmul.f32 %v684, %v707
    %v719 = vmul.f32 %v685, %v717
    %v721 = vperm.slane %v665, 0
    %v723 = vmul.f32 %v718, %v721
    %v724 = vmul.f32 %v719, %v721
    %v726 = vperm.slane %v666, 0
    %v728 = vadd.f32 %v723, %v726
    %v729 = vadd.f32 %v724, %v726
    %v730 = vld [vmem:[%s7] sm:$0xff]
    %v731 = vld [vmem:[%s7 + $0x8] sm:$0xff]
    %v732 = vld [vmem:[%s7 + $0x10] sm:$0xff]
    %v733 = vld [vmem:[%s7 + $0x18] sm:$0xff]
    %v734 = vld [vmem:[%s7 + $0x20] sm:$0xff]
    %v735 = vld [vmem:[%s7 + $0x28] sm:$0xff]
    %v736 = vld [vmem:[%s7 + $0x30] sm:$0xff]
    %v737 = vld [vmem:[%s7 + $0x38] sm:$0xff]
    %v738 = vld [vmem:[%s7 + $0x40] sm:$0xff]
    %v739 = vld [vmem:[%s7 + $0x48] sm:$0xff]
    %v740 = vld [vmem:[%s7 + $0x50] sm:$0xff]
    %v741 = vld [vmem:[%s7 + $0x58] sm:$0xff]
    %v742 = vld [vmem:[%s7 + $0x60] sm:$0xff]
    %v743 = vld [vmem:[%s7 + $0x68] sm:$0xff]
    %v744 = vld [vmem:[%s7 + $0x70] sm:$0xff]
    %v745 = vld [vmem:[%s7 + $0x78] sm:$0xff]
    %v746 = vld [vmem:[%s7 + $0x80] sm:$0xff]
    %v747 = vld [vmem:[%s7 + $0x88] sm:$0xff]
    %v748 = vld [vmem:[%s7 + $0x90] sm:$0xff]
    %v749 = vld [vmem:[%s7 + $0x98] sm:$0xff]
    %v750 = vld [vmem:[%s7 + $0xa0] sm:$0xff]
    %v751 = vld [vmem:[%s7 + $0xa8] sm:$0xff]
    %v752 = vld [vmem:[%s7 + $0xb0] sm:$0xff]
    %v753 = vld [vmem:[%s7 + $0xb8] sm:$0xff]
    %v754 = vld [vmem:[%s7 + $0xc0] sm:$0xff]
    %v755 = vld [vmem:[%s7 + $0xc8] sm:$0xff]
    %v756 = vld [vmem:[%s7 + $0xd0] sm:$0xff]
    %v757 = vld [vmem:[%s7 + $0xd8] sm:$0xff]
    %v758 = vld [vmem:[%s7 + $0xe0] sm:$0xff]
    %v759 = vld [vmem:[%s7 + $0xe8] sm:$0xff]
    %v760 = vld [vmem:[%s7 + $0xf0] sm:$0xff]
    %v761 = vld [vmem:[%s7 + $0xf8] sm:$0xff]
    %v762 = vld [vmem:[%s8] sm:$0xff]
    %v763 = vld [vmem:[%s8 + $0x8] sm:$0xff]
    %v764 = vpack.c.bf16 %v729, %v728
    %v767 = vperm.slane %v762, 0
    %v768 = vperm.slane %v762, 1
    %v769 = vperm.slane %v762, 2
    %v770 = vperm.slane %v762, 3
    %v771 = vperm.slane %v762, 4
    %v772 = vperm.slane %v762, 5
    %v773 = vperm.slane %v762, 6
    %v774 = vperm.slane %v762, 7
    %v775 = vperm.slane %v763, 0
    %v776 = vperm.slane %v763, 1
    %v777 = vperm.slane %v763, 2
    %v778 = vperm.slane %v763, 3
    %v779 = vperm.slane %v763, 4
    %v780 = vperm.slane %v763, 5
    %v781 = vperm.slane %v763, 6
    %v782 = vperm.slane %v763, 7
    %v831 = vunpack.c.l.b16 %v730
    %v832 = vunpack.c.h.b16 %v730
    %v833 = vunpack.c.l.b16 %v731
    %v834 = vunpack.c.h.b16 %v731
    %v835 = vunpack.c.l.b16 %v732
    %v836 = vunpack.c.h.b16 %v732
    %v837 = vunpack.c.l.b16 %v733
    %v838 = vunpack.c.h.b16 %v733
    %v839 = vunpack.c.l.b16 %v734
    %v840 = vunpack.c.h.b16 %v734
    %v841 = vunpack.c.l.b16 %v735
    %v842 = vunpack.c.h.b16 %v735
    %v843 = vunpack.c.l.b16 %v736
    %v844 = vunpack.c.h.b16 %v736
    %v845 = vunpack.c.l.b16 %v737
    %v846 = vunpack.c.h.b16 %v737
    %v847 = vunpack.c.l.b16 %v738
    %v848 = vunpack.c.h.b16 %v738
    %v849 = vunpack.c.l.b16 %v739
    %v850 = vunpack.c.h.b16 %v739
    %v851 = vunpack.c.l.b16 %v740
    %v852 = vunpack.c.h.b16 %v740
    %v853 = vunpack.c.l.b16 %v741
    %v854 = vunpack.c.h.b16 %v741
    %v855 = vunpack.c.l.b16 %v742
    %v856 = vunpack.c.h.b16 %v742
    %v857 = vunpack.c.l.b16 %v743
    %v858 = vunpack.c.h.b16 %v743
    %v859 = vunpack.c.l.b16 %v744
    %v860 = vunpack.c.h.b16 %v744
    %v861 = vunpack.c.l.b16 %v745
    %v862 = vunpack.c.h.b16 %v745
    %v863 = vunpack.c.l.b16 %v746
    %v864 = vunpack.c.h.b16 %v746
    %v865 = vunpack.c.l.b16 %v747
    %v866 = vunpack.c.h.b16 %v747
    %v867 = vunpack.c.l.b16 %v748
    %v868 = vunpack.c.h.b16 %v748
    %v869 = vunpack.c.l.b16 %v749
    %v870 = vunpack.c.h.b16 %v749
    %v871 = vunpack.c.l.b16 %v750
    %v872 = vunpack.c.h.b16 %v750
    %v873 = vunpack.c.l.b16 %v751
    %v874 = vunpack.c.h.b16 %v751
    %v875 = vunpack.c.l.b16 %v752
    %v876 = vunpack.c.h.b16 %v752
    %v877 = vunpack.c.l.b16 %v753
    %v878 = vunpack.c.h.b16 %v753
    %v879 = vunpack.c.l.b16 %v754
    %v880 = vunpack.c.h.b16 %v754
    %v881 = vunpack.c.l.b16 %v755
    %v882 = vunpack.c.h.b16 %v755
    %v883 = vunpack.c.l.b16 %v756
    %v884 = vunpack.c.h.b16 %v756
    %v885 = vunpack.c.l.b16 %v757
    %v886 = vunpack.c.h.b16 %v757
    %v887 = vunpack.c.l.b16 %v758
    %v888 = vunpack.c.h.b16 %v758
    %v889 = vunpack.c.l.b16 %v759
    %v890 = vunpack.c.h.b16 %v759
    %v891 = vunpack.c.l.b16 %v760
    %v892 = vunpack.c.h.b16 %v760
    %v893 = vunpack.c.l.b16 %v761
    %v894 = vunpack.c.h.b16 %v761
    %v895 = vpack.c.b16 %v847, %v831
    %v896 = vpack.c.b16 %v848, %v832
    %v897 = vpack.c.b16 %v849, %v833
    %v898 = vpack.c.b16 %v850, %v834
    %v899 = vpack.c.b16 %v851, %v835
    %v900 = vpack.c.b16 %v852, %v836
    %v901 = vpack.c.b16 %v853, %v837
    %v902 = vpack.c.b16 %v854, %v838
    %v903 = vpack.c.b16 %v855, %v839
    %v904 = vpack.c.b16 %v856, %v840
    %v905 = vpack.c.b16 %v857, %v841
    %v906 = vpack.c.b16 %v858, %v842
    %v907 = vpack.c.b16 %v859, %v843
    %v908 = vpack.c.b16 %v860, %v844
    %v909 = vpack.c.b16 %v861, %v845
    %v910 = vpack.c.b16 %v862, %v846
    %v911 = vpack.c.b16 %v879, %v863
    %v912 = vpack.c.b16 %v880, %v864
    %v913 = vpack.c.b16 %v881, %v865
    %v914 = vpack.c.b16 %v882, %v866
    %v915 = vpack.c.b16 %v883, %v867
    %v916 = vpack.c.b16 %v884, %v868
    %v917 = vpack.c.b16 %v885, %v869
    %v918 = vpack.c.b16 %v886, %v870
    %v919 = vpack.c.b16 %v887, %v871
    %v920 = vpack.c.b16 %v888, %v872
    %v921 = vpack.c.b16 %v889, %v873
    %v922 = vpack.c.b16 %v890, %v874
    %v923 = vpack.c.b16 %v891, %v875
    %v924 = vpack.c.b16 %v892, %v876
    %v925 = vpack.c.b16 %v893, %v877
    %v926 = vpack.c.b16 %v894, %v878
    %v960 = vsel %vm81, %v764, 0
    %962 = vmatpush.bf16.msra.mxu0 0
    %963 = vmatpush.bf16.msra.mxu0 0
    %964 = vmatpush.bf16.msra.mxu0 0
    %965 = vmatpush.bf16.msra.mxu0 0
    %966 = vmatpush.bf16.msra.mxu0 0
    %967 = vmatpush.bf16.msra.mxu0 0
    %968 = vmatpush.bf16.msra.mxu0 %v911
    %969 = vmatpush.bf16.msra.mxu0 %v895
    %970 = vmatmul.bf16.gmra.mxu0 %v960
    %v971 = vpop.f32.mrf.mxu0
    %v972 = vadd.f32 %v767, %v971
    %v973 = vpop.f32.mrf.mxu0
    %v974 = vadd.f32 %v767, %v973
    %975 = vdwg.mxu0
    %976 = vmatpush.bf16.msra.mxu0 0
    %977 = vmatpush.bf16.msra.mxu0 0
    %978 = vmatpush.bf16.msra.mxu0 0
    %979 = vmatpush.bf16.msra.mxu0 0
    %980 = vmatpush.bf16.msra.mxu0 0
    %981 = vmatpush.bf16.msra.mxu0 0
    %982 = vmatpush.bf16.msra.mxu0 %v912
    %983 = vmatpush.bf16.msra.mxu0 %v896
    %984 = vmatmul.bf16.gmra.mxu0 %v960
    %v985 = vpop.f32.mrf.mxu0
    %v986 = vadd.f32 %v768, %v985
    %v987 = vpop.f32.mrf.mxu0
    %v988 = vadd.f32 %v768, %v987
    %989 = vdwg.mxu0
    %990 = vmatpush.bf16.msra.mxu0 0
    %991 = vmatpush.bf16.msra.mxu0 0
    %992 = vmatpush.bf16.msra.mxu0 0
    %993 = vmatpush.bf16.msra.mxu0 0
    %994 = vmatpush.bf16.msra.mxu0 0
    %995 = vmatpush.bf16.msra.mxu0 0
    %996 = vmatpush.bf16.msra.mxu0 %v913
    %997 = vmatpush.bf16.msra.mxu0 %v897
    %998 = vmatmul.bf16.gmra.mxu0 %v960
    %v999 = vpop.f32.mrf.mxu0
    %v1000 = vadd.f32 %v769, %v999
    %v1001 = vpop.f32.mrf.mxu0
    %v1002 = vadd.f32 %v769, %v1001
    %1003 = vdwg.mxu0
    %1004 = vmatpush.bf16.msra.mxu0 0
    %1005 = vmatpush.bf16.msra.mxu0 0
    %1006 = vmatpush.bf16.msra.mxu0 0
    %1007 = vmatpush.bf16.msra.mxu0 0
    %1008 = vmatpush.bf16.msra.mxu0 0
    %1009 = vmatpush.bf16.msra.mxu0 0
    %1010 = vmatpush.bf16.msra.mxu0 %v914
    %1011 = vmatpush.bf16.msra.mxu0 %v898
    %1012 = vmatmul.bf16.gmra.mxu0 %v960
    %v1013 = vpop.f32.mrf.mxu0
    %v1014 = vadd.f32 %v770, %v1013
    %v1015 = vpop.f32.mrf.mxu0
    %v1016 = vadd.f32 %v770, %v1015
    %1017 = vdwg.mxu0
    %1018 = vmatpush.bf16.msra.mxu0 0
    %1019 = vmatpush.bf16.msra.mxu0 0
    %1020 = vmatpush.bf16.msra.mxu0 0
    %1021 = vmatpush.bf16.msra.mxu0 0
    %1022 = vmatpush.bf16.msra.mxu0 0
    %1023 = vmatpush.bf16.msra.mxu0 0
    %1024 = vmatpush.bf16.msra.mxu0 %v915
    %1025 = vmatpush.bf16.msra.mxu0 %v899
    %1026 = vmatmul.bf16.gmra.mxu0 %v960
    %v1027 = vpop.f32.mrf.mxu0
    %v1028 = vadd.f32 %v771, %v1027
    %v1029 = vpop.f32.mrf.mxu0
    %v1030 = vadd.f32 %v771, %v1029
    %1031 = vdwg.mxu0
    %1032 = vmatpush.bf16.msra.mxu0 0
    %1033 = vmatpush.bf16.msra.mxu0 0
    %1034 = vmatpush.bf16.msra.mxu0 0
    %1035 = vmatpush.bf16.msra.mxu0 0
    %1036 = vmatpush.bf16.msra.mxu0 0
    %1037 = vmatpush.bf16.msra.mxu0 0
    %1038 = vmatpush.bf16.msra.mxu0 %v916
    %1039 = vmatpush.bf16.msra.mxu0 %v900
    %1040 = vmatmul.bf16.gmra.mxu0 %v960
    %v1041 = vpop.f32.mrf.mxu0
    %v1042 = vadd.f32 %v772, %v1041
    %v1043 = vpop.f32.mrf.mxu0
    %v1044 = vadd.f32 %v772, %v1043
    %1045 = vdwg.mxu0
    %1046 = vmatpush.bf16.msra.mxu0 0
    %1047 = vmatpush.bf16.msra.mxu0 0
    %1048 = vmatpush.bf16.msra.mxu0 0
    %1049 = vmatpush.bf16.msra.mxu0 0
    %1050 = vmatpush.bf16.msra.mxu0 0
    %1051 = vmatpush.bf16.msra.mxu0 0
    %1052 = vmatpush.bf16.msra.mxu0 %v917
    %1053 = vmatpush.bf16.msra.mxu0 %v901
    %1054 = vmatmul.bf16.gmra.mxu0 %v960
    %v1055 = vpop.f32.mrf.mxu0
    %v1056 = vadd.f32 %v773, %v1055
    %v1057 = vpop.f32.mrf.mxu0
    %v1058 = vadd.f32 %v773, %v1057
    %1059 = vdwg.mxu0
    %1060 = vmatpush.bf16.msra.mxu0 0
    %1061 = vmatpush.bf16.msra.mxu0 0
    %1062 = vmatpush.bf16.msra.mxu0 0
    %1063 = vmatpush.bf16.msra.mxu0 0
    %1064 = vmatpush.bf16.msra.mxu0 0
    %1065 = vmatpush.bf16.msra.mxu0 0
    %1066 = vmatpush.bf16.msra.mxu0 %v918
    %1067 = vmatpush.bf16.msra.mxu0 %v902
    %1068 = vmatmul.bf16.gmra.mxu0 %v960
    %v1069 = vpop.f32.mrf.mxu0
    %v1070 = vadd.f32 %v774, %v1069
    %v1071 = vpop.f32.mrf.mxu0
    %v1072 = vadd.f32 %v774, %v1071
    %1073 = vdwg.mxu0
    %1074 = vmatpush.bf16.msra.mxu0 0
    %1075 = vmatpush.bf16.msra.mxu0 0
    %1076 = vmatpush.bf16.msra.mxu0 0
    %1077 = vmatpush.bf16.msra.mxu0 0
    %1078 = vmatpush.bf16.msra.mxu0 0
    %1079 = vmatpush.bf16.msra.mxu0 0
    %1080 = vmatpush.bf16.msra.mxu0 %v919
    %1081 = vmatpush.bf16.msra.mxu0 %v903
    %1082 = vmatmul.bf16.gmra.mxu0 %v960
    %v1083 = vpop.f32.mrf.mxu0
    %v1084 = vadd.f32 %v775, %v1083
    %v1085 = vpop.f32.mrf.mxu0
    %v1086 = vadd.f32 %v775, %v1085
    %1087 = vdwg.mxu0
    %1088 = vmatpush.bf16.msra.mxu0 0
    %1089 = vmatpush.bf16.msra.mxu0 0
    %1090 = vmatpush.bf16.msra.mxu0 0
    %1091 = vmatpush.bf16.msra.mxu0 0
    %1092 = vmatpush.bf16.msra.mxu0 0
    %1093 = vmatpush.bf16.msra.mxu0 0
    %1094 = vmatpush.bf16.msra.mxu0 %v920
    %1095 = vmatpush.bf16.msra.mxu0 %v904
    %1096 = vmatmul.bf16.gmra.mxu0 %v960
    %v1097 = vpop.f32.mrf.mxu0
    %v1098 = vadd.f32 %v776, %v1097
    %v1099 = vpop.f32.mrf.mxu0
    %v1100 = vadd.f32 %v776, %v1099
    %1101 = vdwg.mxu0
    %1102 = vmatpush.bf16.msra.mxu0 0
    %1103 = vmatpush.bf16.msra.mxu0 0
    %1104 = vmatpush.bf16.msra.mxu0 0
    %1105 = vmatpush.bf16.msra.mxu0 0
    %1106 = vmatpush.bf16.msra.mxu0 0
    %1107 = vmatpush.bf16.msra.mxu0 0
    %1108 = vmatpush.bf16.msra.mxu0 %v921
    %1109 = vmatpush.bf16.msra.mxu0 %v905
    %1110 = vmatmul.bf16.gmra.mxu0 %v960
    %v1111 = vpop.f32.mrf.mxu0
    %v1112 = vadd.f32 %v777, %v1111
    %v1113 = vpop.f32.mrf.mxu0
    %v1114 = vadd.f32 %v777, %v1113
    %1115 = vdwg.mxu0
    %1116 = vmatpush.bf16.msra.mxu0 0
    %1117 = vmatpush.bf16.msra.mxu0 0
    %1118 = vmatpush.bf16.msra.mxu0 0
    %1119 = vmatpush.bf16.msra.mxu0 0
    %1120 = vmatpush.bf16.msra.mxu0 0
    %1121 = vmatpush.bf16.msra.mxu0 0
    %1122 = vmatpush.bf16.msra.mxu0 %v922
    %1123 = vmatpush.bf16.msra.mxu0 %v906
    %1124 = vmatmul.bf16.gmra.mxu0 %v960
    %v1125 = vpop.f32.mrf.mxu0
    %v1126 = vadd.f32 %v778, %v1125
    %v1127 = vpop.f32.mrf.mxu0
    %v1128 = vadd.f32 %v778, %v1127
    %1129 = vdwg.mxu0
    %1130 = vmatpush.bf16.msra.mxu0 0
    %1131 = vmatpush.bf16.msra.mxu0 0
    %1132 = vmatpush.bf16.msra.mxu0 0
    %1133 = vmatpush.bf16.msra.mxu0 0
    %1134 = vmatpush.bf16.msra.mxu0 0
    %1135 = vmatpush.bf16.msra.mxu0 0
    %1136 = vmatpush.bf16.msra.mxu0 %v923
    %1137 = vmatpush.bf16.msra.mxu0 %v907
    %1138 = vmatmul.bf16.gmra.mxu0 %v960
    %v1139 = vpop.f32.mrf.mxu0
    %v1140 = vadd.f32 %v779, %v1139
    %v1141 = vpop.f32.mrf.mxu0
    %v1142 = vadd.f32 %v779, %v1141
    %1143 = vdwg.mxu0
    %1144 = vmatpush.bf16.msra.mxu0 0
    %1145 = vmatpush.bf16.msra.mxu0 0
    %1146 = vmatpush.bf16.msra.mxu0 0
    %1147 = vmatpush.bf16.msra.mxu0 0
    %1148 = vmatpush.bf16.msra.mxu0 0
    %1149 = vmatpush.bf16.msra.mxu0 0
    %1150 = vmatpush.bf16.msra.mxu0 %v924
    %1151 = vmatpush.bf16.msra.mxu0 %v908
    %1152 = vmatmul.bf16.gmra.mxu0 %v960
    %v1153 = vpop.f32.mrf.mxu0
    %v1154 = vadd.f32 %v780, %v1153
    %v1155 = vpop.f32.mrf.mxu0
    %v1156 = vadd.f32 %v780, %v1155
    %1157 = vdwg.mxu0
    %1158 = vmatpush.bf16.msra.mxu0 0
    %1159 = vmatpush.bf16.msra.mxu0 0
    %1160 = vmatpush.bf16.msra.mxu0 0
    %1161 = vmatpush.bf16.msra.mxu0 0
    %1162 = vmatpush.bf16.msra.mxu0 0
    %1163 = vmatpush.bf16.msra.mxu0 0
    %1164 = vmatpush.bf16.msra.mxu0 %v925
    %1165 = vmatpush.bf16.msra.mxu0 %v909
    %1166 = vmatmul.bf16.gmra.mxu0 %v960
    %v1167 = vpop.f32.mrf.mxu0
    %v1168 = vadd.f32 %v781, %v1167
    %v1169 = vpop.f32.mrf.mxu0
    %v1170 = vadd.f32 %v781, %v1169
    %1171 = vdwg.mxu0
    %1172 = vmatpush.bf16.msra.mxu0 0
    %1173 = vmatpush.bf16.msra.mxu0 0
    %1174 = vmatpush.bf16.msra.mxu0 0
    %1175 = vmatpush.bf16.msra.mxu0 0
    %1176 = vmatpush.bf16.msra.mxu0 0
    %1177 = vmatpush.bf16.msra.mxu0 0
    %1178 = vmatpush.bf16.msra.mxu0 %v926
    %1179 = vmatpush.bf16.msra.mxu0 %v910
    %1180 = vmatmul.bf16.gmra.mxu0 %v960
    %v1181 = vpop.f32.mrf.mxu0
    %v1182 = vadd.f32 %v782, %v1181
    %v1183 = vpop.f32.mrf.mxu0
    %v1184 = vadd.f32 %v782, %v1183
    %1185 = vdwg.mxu0
    %v1186 = vmax.f32 %v972, 0.0
    %v1187 = vmax.f32 %v986, 0.0
    %v1188 = vmax.f32 %v1000, 0.0
    %v1189 = vmax.f32 %v1014, 0.0
    %v1190 = vmax.f32 %v1028, 0.0
    %v1191 = vmax.f32 %v1042, 0.0
    %v1192 = vmax.f32 %v1056, 0.0
    %v1193 = vmax.f32 %v1070, 0.0
    %v1194 = vmax.f32 %v1084, 0.0
    %v1195 = vmax.f32 %v1098, 0.0
    %v1196 = vmax.f32 %v1112, 0.0
    %v1197 = vmax.f32 %v1126, 0.0
    %v1198 = vmax.f32 %v1140, 0.0
    %v1199 = vmax.f32 %v1154, 0.0
    %v1200 = vmax.f32 %v1168, 0.0
    %v1201 = vmax.f32 %v1182, 0.0
    %v1202 = vmax.f32 %v974, 0.0
    %v1203 = vmax.f32 %v988, 0.0
    %v1204 = vmax.f32 %v1002, 0.0
    %v1205 = vmax.f32 %v1016, 0.0
    %v1206 = vmax.f32 %v1030, 0.0
    %v1207 = vmax.f32 %v1044, 0.0
    %v1208 = vmax.f32 %v1058, 0.0
    %v1209 = vmax.f32 %v1072, 0.0
    %v1210 = vmax.f32 %v1086, 0.0
    %v1211 = vmax.f32 %v1100, 0.0
    %v1212 = vmax.f32 %v1114, 0.0
    %v1213 = vmax.f32 %v1128, 0.0
    %v1214 = vmax.f32 %v1142, 0.0
    %v1215 = vmax.f32 %v1156, 0.0
    %v1216 = vmax.f32 %v1170, 0.0
    %v1217 = vmax.f32 %v1184, 0.0
    %v1218 = vld [vmem:[%s9] sm:$0xf]
    %v1219 = vld [vmem:[%s9 + $0x4] sm:$0xf]
    %v1220 = vld [vmem:[%s9 + $0x8] sm:$0xf]
    %v1221 = vld [vmem:[%s9 + $0xc] sm:$0xf]
    %v1222 = vld [vmem:[%s9 + $0x10] sm:$0xf]
    %v1223 = vld [vmem:[%s9 + $0x14] sm:$0xf]
    %v1224 = vld [vmem:[%s9 + $0x18] sm:$0xf]
    %v1225 = vld [vmem:[%s9 + $0x1c] sm:$0xf]
    %v1226 = vld [vmem:[%s9 + $0x20] sm:$0xf]
    %v1227 = vld [vmem:[%s9 + $0x24] sm:$0xf]
    %v1228 = vld [vmem:[%s9 + $0x28] sm:$0xf]
    %v1229 = vld [vmem:[%s9 + $0x2c] sm:$0xf]
    %v1230 = vld [vmem:[%s9 + $0x30] sm:$0xf]
    %v1231 = vld [vmem:[%s9 + $0x34] sm:$0xf]
    %v1232 = vld [vmem:[%s9 + $0x38] sm:$0xf]
    %v1233 = vld [vmem:[%s9 + $0x3c] sm:$0xf]
    %v1234 = vld [vmem:[%s9 + $0x40] sm:$0xf]
    %v1235 = vld [vmem:[%s9 + $0x44] sm:$0xf]
    %v1236 = vld [vmem:[%s9 + $0x48] sm:$0xf]
    %v1237 = vld [vmem:[%s9 + $0x4c] sm:$0xf]
    %v1238 = vld [vmem:[%s9 + $0x50] sm:$0xf]
    %v1239 = vld [vmem:[%s9 + $0x54] sm:$0xf]
    %v1240 = vld [vmem:[%s9 + $0x58] sm:$0xf]
    %v1241 = vld [vmem:[%s9 + $0x5c] sm:$0xf]
    %v1242 = vld [vmem:[%s9 + $0x60] sm:$0xf]
    %v1243 = vld [vmem:[%s9 + $0x64] sm:$0xf]
    %v1244 = vld [vmem:[%s9 + $0x68] sm:$0xf]
    %v1245 = vld [vmem:[%s9 + $0x6c] sm:$0xf]
    %v1246 = vld [vmem:[%s9 + $0x70] sm:$0xf]
    %v1247 = vld [vmem:[%s9 + $0x74] sm:$0xf]
    %v1248 = vld [vmem:[%s9 + $0x78] sm:$0xf]
    %v1249 = vld [vmem:[%s9 + $0x7c] sm:$0xf]
    %v1250 = vld [vmem:[%s9 + $0x80] sm:$0xf]
    %v1251 = vld [vmem:[%s9 + $0x84] sm:$0xf]
    %v1252 = vld [vmem:[%s9 + $0x88] sm:$0xf]
    %v1253 = vld [vmem:[%s9 + $0x8c] sm:$0xf]
    %v1254 = vld [vmem:[%s9 + $0x90] sm:$0xf]
    %v1255 = vld [vmem:[%s9 + $0x94] sm:$0xf]
    %v1256 = vld [vmem:[%s9 + $0x98] sm:$0xf]
    %v1257 = vld [vmem:[%s9 + $0x9c] sm:$0xf]
    %v1258 = vld [vmem:[%s9 + $0xa0] sm:$0xf]
    %v1259 = vld [vmem:[%s9 + $0xa4] sm:$0xf]
    %v1260 = vld [vmem:[%s9 + $0xa8] sm:$0xf]
    %v1261 = vld [vmem:[%s9 + $0xac] sm:$0xf]
    %v1262 = vld [vmem:[%s9 + $0xb0] sm:$0xf]
    %v1263 = vld [vmem:[%s9 + $0xb4] sm:$0xf]
    %v1264 = vld [vmem:[%s9 + $0xb8] sm:$0xf]
    %v1265 = vld [vmem:[%s9 + $0xbc] sm:$0xf]
    %v1266 = vld [vmem:[%s9 + $0xc0] sm:$0xf]
    %v1267 = vld [vmem:[%s9 + $0xc4] sm:$0xf]
    %v1268 = vld [vmem:[%s9 + $0xc8] sm:$0xf]
    %v1269 = vld [vmem:[%s9 + $0xcc] sm:$0xf]
    %v1270 = vld [vmem:[%s9 + $0xd0] sm:$0xf]
    %v1271 = vld [vmem:[%s9 + $0xd4] sm:$0xf]
    %v1272 = vld [vmem:[%s9 + $0xd8] sm:$0xf]
    %v1273 = vld [vmem:[%s9 + $0xdc] sm:$0xf]
    %v1274 = vld [vmem:[%s9 + $0xe0] sm:$0xf]
    %v1275 = vld [vmem:[%s9 + $0xe4] sm:$0xf]
    %v1276 = vld [vmem:[%s9 + $0xe8] sm:$0xf]
    %v1277 = vld [vmem:[%s9 + $0xec] sm:$0xf]
    %v1278 = vld [vmem:[%s9 + $0xf0] sm:$0xf]
    %v1279 = vld [vmem:[%s9 + $0xf4] sm:$0xf]
    %v1280 = vld [vmem:[%s9 + $0xf8] sm:$0xf]
    %v1281 = vld [vmem:[%s9 + $0xfc] sm:$0xf]
    %v1282 = vld [vmem:[%s9 + $0x100] sm:$0xf]
    %v1283 = vld [vmem:[%s9 + $0x104] sm:$0xf]
    %v1284 = vld [vmem:[%s9 + $0x108] sm:$0xf]
    %v1285 = vld [vmem:[%s9 + $0x10c] sm:$0xf]
    %v1286 = vld [vmem:[%s9 + $0x110] sm:$0xf]
    %v1287 = vld [vmem:[%s9 + $0x114] sm:$0xf]
    %v1288 = vld [vmem:[%s9 + $0x118] sm:$0xf]
    %v1289 = vld [vmem:[%s9 + $0x11c] sm:$0xf]
    %v1290 = vld [vmem:[%s9 + $0x120] sm:$0xf]
    %v1291 = vld [vmem:[%s9 + $0x124] sm:$0xf]
    %v1292 = vld [vmem:[%s9 + $0x128] sm:$0xf]
    %v1293 = vld [vmem:[%s9 + $0x12c] sm:$0xf]
    %v1294 = vld [vmem:[%s9 + $0x130] sm:$0xf]
    %v1295 = vld [vmem:[%s9 + $0x134] sm:$0xf]
    %v1296 = vld [vmem:[%s9 + $0x138] sm:$0xf]
    %v1297 = vld [vmem:[%s9 + $0x13c] sm:$0xf]
    %v1298 = vld [vmem:[%s9 + $0x140] sm:$0xf]
    %v1299 = vld [vmem:[%s9 + $0x144] sm:$0xf]
    %v1300 = vld [vmem:[%s9 + $0x148] sm:$0xf]
    %v1301 = vld [vmem:[%s9 + $0x14c] sm:$0xf]
    %v1302 = vld [vmem:[%s9 + $0x150] sm:$0xf]
    %v1303 = vld [vmem:[%s9 + $0x154] sm:$0xf]
    %v1304 = vld [vmem:[%s9 + $0x158] sm:$0xf]
    %v1305 = vld [vmem:[%s9 + $0x15c] sm:$0xf]
    %v1306 = vld [vmem:[%s9 + $0x160] sm:$0xf]
    %v1307 = vld [vmem:[%s9 + $0x164] sm:$0xf]
    %v1308 = vld [vmem:[%s9 + $0x168] sm:$0xf]
    %v1309 = vld [vmem:[%s9 + $0x16c] sm:$0xf]
    %v1310 = vld [vmem:[%s9 + $0x170] sm:$0xf]
    %v1311 = vld [vmem:[%s9 + $0x174] sm:$0xf]
    %v1312 = vld [vmem:[%s9 + $0x178] sm:$0xf]
    %v1313 = vld [vmem:[%s9 + $0x17c] sm:$0xf]
    %v1314 = vld [vmem:[%s9 + $0x180] sm:$0xf]
    %v1315 = vld [vmem:[%s9 + $0x184] sm:$0xf]
    %v1316 = vld [vmem:[%s9 + $0x188] sm:$0xf]
    %v1317 = vld [vmem:[%s9 + $0x18c] sm:$0xf]
    %v1318 = vld [vmem:[%s9 + $0x190] sm:$0xf]
    %v1319 = vld [vmem:[%s9 + $0x194] sm:$0xf]
    %v1320 = vld [vmem:[%s9 + $0x198] sm:$0xf]
    %v1321 = vld [vmem:[%s9 + $0x19c] sm:$0xf]
    %v1322 = vld [vmem:[%s9 + $0x1a0] sm:$0xf]
    %v1323 = vld [vmem:[%s9 + $0x1a4] sm:$0xf]
    %v1324 = vld [vmem:[%s9 + $0x1a8] sm:$0xf]
    %v1325 = vld [vmem:[%s9 + $0x1ac] sm:$0xf]
    %v1326 = vld [vmem:[%s9 + $0x1b0] sm:$0xf]
    %v1327 = vld [vmem:[%s9 + $0x1b4] sm:$0xf]
    %v1328 = vld [vmem:[%s9 + $0x1b8] sm:$0xf]
    %v1329 = vld [vmem:[%s9 + $0x1bc] sm:$0xf]
    %v1330 = vld [vmem:[%s9 + $0x1c0] sm:$0xf]
    %v1331 = vld [vmem:[%s9 + $0x1c4] sm:$0xf]
    %v1332 = vld [vmem:[%s9 + $0x1c8] sm:$0xf]
    %v1333 = vld [vmem:[%s9 + $0x1cc] sm:$0xf]
    %v1334 = vld [vmem:[%s9 + $0x1d0] sm:$0xf]
    %v1335 = vld [vmem:[%s9 + $0x1d4] sm:$0xf]
    %v1336 = vld [vmem:[%s9 + $0x1d8] sm:$0xf]
    %v1337 = vld [vmem:[%s9 + $0x1dc] sm:$0xf]
    %v1338 = vld [vmem:[%s9 + $0x1e0] sm:$0xf]
    %v1339 = vld [vmem:[%s9 + $0x1e4] sm:$0xf]
    %v1340 = vld [vmem:[%s9 + $0x1e8] sm:$0xf]
    %v1341 = vld [vmem:[%s9 + $0x1ec] sm:$0xf]
    %v1342 = vld [vmem:[%s9 + $0x1f0] sm:$0xf]
    %v1343 = vld [vmem:[%s9 + $0x1f4] sm:$0xf]
    %v1344 = vld [vmem:[%s9 + $0x1f8] sm:$0xf]
    %v1345 = vld [vmem:[%s9 + $0x1fc] sm:$0xf]
    %v1346 = vld [vmem:[%s9 + $0x200] sm:$0xf]
    %v1347 = vld [vmem:[%s9 + $0x204] sm:$0xf]
    %v1348 = vld [vmem:[%s9 + $0x208] sm:$0xf]
    %v1349 = vld [vmem:[%s9 + $0x20c] sm:$0xf]
    %v1350 = vld [vmem:[%s9 + $0x210] sm:$0xf]
    %v1351 = vld [vmem:[%s9 + $0x214] sm:$0xf]
    %v1352 = vld [vmem:[%s9 + $0x218] sm:$0xf]
    %v1353 = vld [vmem:[%s9 + $0x21c] sm:$0xf]
    %v1354 = vld [vmem:[%s9 + $0x220] sm:$0xf]
    %v1355 = vld [vmem:[%s9 + $0x224] sm:$0xf]
    %v1356 = vld [vmem:[%s9 + $0x228] sm:$0xf]
    %v1357 = vld [vmem:[%s9 + $0x22c] sm:$0xf]
    %v1358 = vld [vmem:[%s9 + $0x230] sm:$0xf]
    %v1359 = vld [vmem:[%s9 + $0x234] sm:$0xf]
    %v1360 = vld [vmem:[%s9 + $0x238] sm:$0xf]
    %v1361 = vld [vmem:[%s9 + $0x23c] sm:$0xf]
    %v1362 = vld [vmem:[%s9 + $0x240] sm:$0xf]
    %v1363 = vld [vmem:[%s9 + $0x244] sm:$0xf]
    %v1364 = vld [vmem:[%s9 + $0x248] sm:$0xf]
    %v1365 = vld [vmem:[%s9 + $0x24c] sm:$0xf]
    %v1366 = vld [vmem:[%s9 + $0x250] sm:$0xf]
    %v1367 = vld [vmem:[%s9 + $0x254] sm:$0xf]
    %v1368 = vld [vmem:[%s9 + $0x258] sm:$0xf]
    %v1369 = vld [vmem:[%s9 + $0x25c] sm:$0xf]
    %v1370 = vld [vmem:[%s9 + $0x260] sm:$0xf]
    %v1371 = vld [vmem:[%s9 + $0x264] sm:$0xf]
    %v1372 = vld [vmem:[%s9 + $0x268] sm:$0xf]
    %v1373 = vld [vmem:[%s9 + $0x26c] sm:$0xf]
    %v1374 = vld [vmem:[%s9 + $0x270] sm:$0xf]
    %v1375 = vld [vmem:[%s9 + $0x274] sm:$0xf]
    %v1376 = vld [vmem:[%s9 + $0x278] sm:$0xf]
    %v1377 = vld [vmem:[%s9 + $0x27c] sm:$0xf]
    %v1378 = vld [vmem:[%s9 + $0x280] sm:$0xf]
    %v1379 = vld [vmem:[%s9 + $0x284] sm:$0xf]
    %v1380 = vld [vmem:[%s9 + $0x288] sm:$0xf]
    %v1381 = vld [vmem:[%s9 + $0x28c] sm:$0xf]
    %v1382 = vld [vmem:[%s9 + $0x290] sm:$0xf]
    %v1383 = vld [vmem:[%s9 + $0x294] sm:$0xf]
    %v1384 = vld [vmem:[%s9 + $0x298] sm:$0xf]
    %v1385 = vld [vmem:[%s9 + $0x29c] sm:$0xf]
    %v1386 = vld [vmem:[%s9 + $0x2a0] sm:$0xf]
    %v1387 = vld [vmem:[%s9 + $0x2a4] sm:$0xf]
    %v1388 = vld [vmem:[%s9 + $0x2a8] sm:$0xf]
    %v1389 = vld [vmem:[%s9 + $0x2ac] sm:$0xf]
    %v1390 = vld [vmem:[%s9 + $0x2b0] sm:$0xf]
    %v1391 = vld [vmem:[%s9 + $0x2b4] sm:$0xf]
    %v1392 = vld [vmem:[%s9 + $0x2b8] sm:$0xf]
    %v1393 = vld [vmem:[%s9 + $0x2bc] sm:$0xf]
    %v1394 = vld [vmem:[%s9 + $0x2c0] sm:$0xf]
    %v1395 = vld [vmem:[%s9 + $0x2c4] sm:$0xf]
    %v1396 = vld [vmem:[%s9 + $0x2c8] sm:$0xf]
    %v1397 = vld [vmem:[%s9 + $0x2cc] sm:$0xf]
    %v1398 = vld [vmem:[%s9 + $0x2d0] sm:$0xf]
    %v1399 = vld [vmem:[%s9 + $0x2d4] sm:$0xf]
    %v1400 = vld [vmem:[%s9 + $0x2d8] sm:$0xf]
    %v1401 = vld [vmem:[%s9 + $0x2dc] sm:$0xf]
    %v1402 = vld [vmem:[%s9 + $0x2e0] sm:$0xf]
    %v1403 = vld [vmem:[%s9 + $0x2e4] sm:$0xf]
    %v1404 = vld [vmem:[%s9 + $0x2e8] sm:$0xf]
    %v1405 = vld [vmem:[%s9 + $0x2ec] sm:$0xf]
    %v1406 = vld [vmem:[%s9 + $0x2f0] sm:$0xf]
    %v1407 = vld [vmem:[%s9 + $0x2f4] sm:$0xf]
    %v1408 = vld [vmem:[%s9 + $0x2f8] sm:$0xf]
    %v1409 = vld [vmem:[%s9 + $0x2fc] sm:$0xf]
    %v1410 = vld [vmem:[%s9 + $0x300] sm:$0xf]
    %v1411 = vld [vmem:[%s9 + $0x304] sm:$0xf]
    %v1412 = vld [vmem:[%s9 + $0x308] sm:$0xf]
    %v1413 = vld [vmem:[%s9 + $0x30c] sm:$0xf]
    %v1414 = vld [vmem:[%s9 + $0x310] sm:$0xf]
    %v1415 = vld [vmem:[%s9 + $0x314] sm:$0xf]
    %v1416 = vld [vmem:[%s9 + $0x318] sm:$0xf]
    %v1417 = vld [vmem:[%s9 + $0x31c] sm:$0xf]
    %v1418 = vld [vmem:[%s9 + $0x320] sm:$0xf]
    %v1419 = vld [vmem:[%s9 + $0x324] sm:$0xf]
    %v1420 = vld [vmem:[%s9 + $0x328] sm:$0xf]
    %v1421 = vld [vmem:[%s9 + $0x32c] sm:$0xf]
    %v1422 = vld [vmem:[%s9 + $0x330] sm:$0xf]
    %v1423 = vld [vmem:[%s9 + $0x334] sm:$0xf]
    %v1424 = vld [vmem:[%s9 + $0x338] sm:$0xf]
    %v1425 = vld [vmem:[%s9 + $0x33c] sm:$0xf]
    %v1426 = vld [vmem:[%s9 + $0x340] sm:$0xf]
    %v1427 = vld [vmem:[%s9 + $0x344] sm:$0xf]
    %v1428 = vld [vmem:[%s9 + $0x348] sm:$0xf]
    %v1429 = vld [vmem:[%s9 + $0x34c] sm:$0xf]
    %v1430 = vld [vmem:[%s9 + $0x350] sm:$0xf]
    %v1431 = vld [vmem:[%s9 + $0x354] sm:$0xf]
    %v1432 = vld [vmem:[%s9 + $0x358] sm:$0xf]
    %v1433 = vld [vmem:[%s9 + $0x35c] sm:$0xf]
    %v1434 = vld [vmem:[%s9 + $0x360] sm:$0xf]
    %v1435 = vld [vmem:[%s9 + $0x364] sm:$0xf]
    %v1436 = vld [vmem:[%s9 + $0x368] sm:$0xf]
    %v1437 = vld [vmem:[%s9 + $0x36c] sm:$0xf]
    %v1438 = vld [vmem:[%s9 + $0x370] sm:$0xf]
    %v1439 = vld [vmem:[%s9 + $0x374] sm:$0xf]
    %v1440 = vld [vmem:[%s9 + $0x378] sm:$0xf]
    %v1441 = vld [vmem:[%s9 + $0x37c] sm:$0xf]
    %v1442 = vld [vmem:[%s9 + $0x380] sm:$0xf]
    %v1443 = vld [vmem:[%s9 + $0x384] sm:$0xf]
    %v1444 = vld [vmem:[%s9 + $0x388] sm:$0xf]
    %v1445 = vld [vmem:[%s9 + $0x38c] sm:$0xf]
    %v1446 = vld [vmem:[%s9 + $0x390] sm:$0xf]
    %v1447 = vld [vmem:[%s9 + $0x394] sm:$0xf]
    %v1448 = vld [vmem:[%s9 + $0x398] sm:$0xf]
    %v1449 = vld [vmem:[%s9 + $0x39c] sm:$0xf]
    %v1450 = vld [vmem:[%s9 + $0x3a0] sm:$0xf]
    %v1451 = vld [vmem:[%s9 + $0x3a4] sm:$0xf]
    %v1452 = vld [vmem:[%s9 + $0x3a8] sm:$0xf]
    %v1453 = vld [vmem:[%s9 + $0x3ac] sm:$0xf]
    %v1454 = vld [vmem:[%s9 + $0x3b0] sm:$0xf]
    %v1455 = vld [vmem:[%s9 + $0x3b4] sm:$0xf]
    %v1456 = vld [vmem:[%s9 + $0x3b8] sm:$0xf]
    %v1457 = vld [vmem:[%s9 + $0x3bc] sm:$0xf]
    %v1458 = vld [vmem:[%s9 + $0x3c0] sm:$0xf]
    %v1459 = vld [vmem:[%s9 + $0x3c4] sm:$0xf]
    %v1460 = vld [vmem:[%s9 + $0x3c8] sm:$0xf]
    %v1461 = vld [vmem:[%s9 + $0x3cc] sm:$0xf]
    %v1462 = vld [vmem:[%s9 + $0x3d0] sm:$0xf]
    %v1463 = vld [vmem:[%s9 + $0x3d4] sm:$0xf]
    %v1464 = vld [vmem:[%s9 + $0x3d8] sm:$0xf]
    %v1465 = vld [vmem:[%s9 + $0x3dc] sm:$0xf]
    %v1466 = vld [vmem:[%s9 + $0x3e0] sm:$0xf]
    %v1467 = vld [vmem:[%s9 + $0x3e4] sm:$0xf]
    %v1468 = vld [vmem:[%s9 + $0x3e8] sm:$0xf]
    %v1469 = vld [vmem:[%s9 + $0x3ec] sm:$0xf]
    %v1470 = vld [vmem:[%s9 + $0x3f0] sm:$0xf]
    %v1471 = vld [vmem:[%s9 + $0x3f4] sm:$0xf]
    %v1472 = vld [vmem:[%s9 + $0x3f8] sm:$0xf]
    %v1473 = vld [vmem:[%s9 + $0x3fc] sm:$0xf]
    %v1474 = vld [vmem:[%s10] sm:$0x1]
    %v1475 = vpack.c.bf16 %v1202, %v1186
    %v1476 = vpack.c.bf16 %v1203, %v1187
    %v1477 = vpack.c.bf16 %v1204, %v1188
    %v1478 = vpack.c.bf16 %v1205, %v1189
    %v1479 = vpack.c.bf16 %v1206, %v1190
    %v1480 = vpack.c.bf16 %v1207, %v1191
    %v1481 = vpack.c.bf16 %v1208, %v1192
    %v1482 = vpack.c.bf16 %v1209, %v1193
    %v1483 = vpack.c.bf16 %v1210, %v1194
    %v1484 = vpack.c.bf16 %v1211, %v1195
    %v1485 = vpack.c.bf16 %v1212, %v1196
    %v1486 = vpack.c.bf16 %v1213, %v1197
    %v1487 = vpack.c.bf16 %v1214, %v1198
    %v1488 = vpack.c.bf16 %v1215, %v1199
    %v1489 = vpack.c.bf16 %v1216, %v1200
    %v1490 = vpack.c.bf16 %v1217, %v1201
    %v1492 = vperm.slane %v1474, 0
    %v1750 = vunpack.c.l.b16 %v1218
    %v1751 = vunpack.c.l.b16 %v1219
    %v1752 = vunpack.c.l.b16 %v1220
    %v1753 = vunpack.c.l.b16 %v1221
    %v1754 = vunpack.c.l.b16 %v1222
    %v1755 = vunpack.c.l.b16 %v1223
    %v1756 = vunpack.c.l.b16 %v1224
    %v1757 = vunpack.c.l.b16 %v1225
    %v1758 = vunpack.c.l.b16 %v1226
    %v1759 = vunpack.c.l.b16 %v1227
    %v1760 = vunpack.c.l.b16 %v1228
    %v1761 = vunpack.c.l.b16 %v1229
    %v1762 = vunpack.c.l.b16 %v1230
    %v1763 = vunpack.c.l.b16 %v1231
    %v1764 = vunpack.c.l.b16 %v1232
    %v1765 = vunpack.c.l.b16 %v1233
    %v1766 = vunpack.c.l.b16 %v1234
    %v1767 = vunpack.c.l.b16 %v1235
    %v1768 = vunpack.c.l.b16 %v1236
    %v1769 = vunpack.c.l.b16 %v1237
    %v1770 = vunpack.c.l.b16 %v1238
    %v1771 = vunpack.c.l.b16 %v1239
    %v1772 = vunpack.c.l.b16 %v1240
    %v1773 = vunpack.c.l.b16 %v1241
    %v1774 = vunpack.c.l.b16 %v1242
    %v1775 = vunpack.c.l.b16 %v1243
    %v1776 = vunpack.c.l.b16 %v1244
    %v1777 = vunpack.c.l.b16 %v1245
    %v1778 = vunpack.c.l.b16 %v1246
    %v1779 = vunpack.c.l.b16 %v1247
    %v1780 = vunpack.c.l.b16 %v1248
    %v1781 = vunpack.c.l.b16 %v1249
    %v1782 = vunpack.c.l.b16 %v1250
    %v1783 = vunpack.c.l.b16 %v1251
    %v1784 = vunpack.c.l.b16 %v1252
    %v1785 = vunpack.c.l.b16 %v1253
    %v1786 = vunpack.c.l.b16 %v1254
    %v1787 = vunpack.c.l.b16 %v1255
    %v1788 = vunpack.c.l.b16 %v1256
    %v1789 = vunpack.c.l.b16 %v1257
    %v1790 = vunpack.c.l.b16 %v1258
    %v1791 = vunpack.c.l.b16 %v1259
    %v1792 = vunpack.c.l.b16 %v1260
    %v1793 = vunpack.c.l.b16 %v1261
    %v1794 = vunpack.c.l.b16 %v1262
    %v1795 = vunpack.c.l.b16 %v1263
    %v1796 = vunpack.c.l.b16 %v1264
    %v1797 = vunpack.c.l.b16 %v1265
    %v1798 = vunpack.c.l.b16 %v1266
    %v1799 = vunpack.c.l.b16 %v1267
    %v1800 = vunpack.c.l.b16 %v1268
    %v1801 = vunpack.c.l.b16 %v1269
    %v1802 = vunpack.c.l.b16 %v1270
    %v1803 = vunpack.c.l.b16 %v1271
    %v1804 = vunpack.c.l.b16 %v1272
    %v1805 = vunpack.c.l.b16 %v1273
    %v1806 = vunpack.c.l.b16 %v1274
    %v1807 = vunpack.c.l.b16 %v1275
    %v1808 = vunpack.c.l.b16 %v1276
    %v1809 = vunpack.c.l.b16 %v1277
    %v1810 = vunpack.c.l.b16 %v1278
    %v1811 = vunpack.c.l.b16 %v1279
    %v1812 = vunpack.c.l.b16 %v1280
    %v1813 = vunpack.c.l.b16 %v1281
    %v1814 = vunpack.c.l.b16 %v1282
    %v1815 = vunpack.c.l.b16 %v1283
    %v1816 = vunpack.c.l.b16 %v1284
    %v1817 = vunpack.c.l.b16 %v1285
    %v1818 = vunpack.c.l.b16 %v1286
    %v1819 = vunpack.c.l.b16 %v1287
    %v1820 = vunpack.c.l.b16 %v1288
    %v1821 = vunpack.c.l.b16 %v1289
    %v1822 = vunpack.c.l.b16 %v1290
    %v1823 = vunpack.c.l.b16 %v1291
    %v1824 = vunpack.c.l.b16 %v1292
    %v1825 = vunpack.c.l.b16 %v1293
    %v1826 = vunpack.c.l.b16 %v1294
    %v1827 = vunpack.c.l.b16 %v1295
    %v1828 = vunpack.c.l.b16 %v1296
    %v1829 = vunpack.c.l.b16 %v1297
    %v1830 = vunpack.c.l.b16 %v1298
    %v1831 = vunpack.c.l.b16 %v1299
    %v1832 = vunpack.c.l.b16 %v1300
    %v1833 = vunpack.c.l.b16 %v1301
    %v1834 = vunpack.c.l.b16 %v1302
    %v1835 = vunpack.c.l.b16 %v1303
    %v1836 = vunpack.c.l.b16 %v1304
    %v1837 = vunpack.c.l.b16 %v1305
    %v1838 = vunpack.c.l.b16 %v1306
    %v1839 = vunpack.c.l.b16 %v1307
    %v1840 = vunpack.c.l.b16 %v1308
    %v1841 = vunpack.c.l.b16 %v1309
    %v1842 = vunpack.c.l.b16 %v1310
    %v1843 = vunpack.c.l.b16 %v1311
    %v1844 = vunpack.c.l.b16 %v1312
    %v1845 = vunpack.c.l.b16 %v1313
    %v1846 = vunpack.c.l.b16 %v1314
    %v1847 = vunpack.c.l.b16 %v1315
    %v1848 = vunpack.c.l.b16 %v1316
    %v1849 = vunpack.c.l.b16 %v1317
    %v1850 = vunpack.c.l.b16 %v1318
    %v1851 = vunpack.c.l.b16 %v1319
    %v1852 = vunpack.c.l.b16 %v1320
    %v1853 = vunpack.c.l.b16 %v1321
    %v1854 = vunpack.c.l.b16 %v1322
    %v1855 = vunpack.c.l.b16 %v1323
    %v1856 = vunpack.c.l.b16 %v1324
    %v1857 = vunpack.c.l.b16 %v1325
    %v1858 = vunpack.c.l.b16 %v1326
    %v1859 = vunpack.c.l.b16 %v1327
    %v1860 = vunpack.c.l.b16 %v1328
    %v1861 = vunpack.c.l.b16 %v1329
    %v1862 = vunpack.c.l.b16 %v1330
    %v1863 = vunpack.c.l.b16 %v1331
    %v1864 = vunpack.c.l.b16 %v1332
    %v1865 = vunpack.c.l.b16 %v1333
    %v1866 = vunpack.c.l.b16 %v1334
    %v1867 = vunpack.c.l.b16 %v1335
    %v1868 = vunpack.c.l.b16 %v1336
    %v1869 = vunpack.c.l.b16 %v1337
    %v1870 = vunpack.c.l.b16 %v1338
    %v1871 = vunpack.c.l.b16 %v1339
    %v1872 = vunpack.c.l.b16 %v1340
    %v1873 = vunpack.c.l.b16 %v1341
    %v1874 = vunpack.c.l.b16 %v1342
    %v1875 = vunpack.c.l.b16 %v1343
    %v1876 = vunpack.c.l.b16 %v1344
    %v1877 = vunpack.c.l.b16 %v1345
    %v1878 = vunpack.c.l.b16 %v1346
    %v1879 = vunpack.c.l.b16 %v1347
    %v1880 = vunpack.c.l.b16 %v1348
    %v1881 = vunpack.c.l.b16 %v1349
    %v1882 = vunpack.c.l.b16 %v1350
    %v1883 = vunpack.c.l.b16 %v1351
    %v1884 = vunpack.c.l.b16 %v1352
    %v1885 = vunpack.c.l.b16 %v1353
    %v1886 = vunpack.c.l.b16 %v1354
    %v1887 = vunpack.c.l.b16 %v1355
    %v1888 = vunpack.c.l.b16 %v1356
    %v1889 = vunpack.c.l.b16 %v1357
    %v1890 = vunpack.c.l.b16 %v1358
    %v1891 = vunpack.c.l.b16 %v1359
    %v1892 = vunpack.c.l.b16 %v1360
    %v1893 = vunpack.c.l.b16 %v1361
    %v1894 = vunpack.c.l.b16 %v1362
    %v1895 = vunpack.c.l.b16 %v1363
    %v1896 = vunpack.c.l.b16 %v1364
    %v1897 = vunpack.c.l.b16 %v1365
    %v1898 = vunpack.c.l.b16 %v1366
    %v1899 = vunpack.c.l.b16 %v1367
    %v1900 = vunpack.c.l.b16 %v1368
    %v1901 = vunpack.c.l.b16 %v1369
    %v1902 = vunpack.c.l.b16 %v1370
    %v1903 = vunpack.c.l.b16 %v1371
    %v1904 = vunpack.c.l.b16 %v1372
    %v1905 = vunpack.c.l.b16 %v1373
    %v1906 = vunpack.c.l.b16 %v1374
    %v1907 = vunpack.c.l.b16 %v1375
    %v1908 = vunpack.c.l.b16 %v1376
    %v1909 = vunpack.c.l.b16 %v1377
    %v1910 = vunpack.c.l.b16 %v1378
    %v1911 = vunpack.c.l.b16 %v1379
    %v1912 = vunpack.c.l.b16 %v1380
    %v1913 = vunpack.c.l.b16 %v1381
    %v1914 = vunpack.c.l.b16 %v1382
    %v1915 = vunpack.c.l.b16 %v1383
    %v1916 = vunpack.c.l.b16 %v1384
    %v1917 = vunpack.c.l.b16 %v1385
    %v1918 = vunpack.c.l.b16 %v1386
    %v1919 = vunpack.c.l.b16 %v1387
    %v1920 = vunpack.c.l.b16 %v1388
    %v1921 = vunpack.c.l.b16 %v1389
    %v1922 = vunpack.c.l.b16 %v1390
    %v1923 = vunpack.c.l.b16 %v1391
    %v1924 = vunpack.c.l.b16 %v1392
    %v1925 = vunpack.c.l.b16 %v1393
    %v1926 = vunpack.c.l.b16 %v1394
    %v1927 = vunpack.c.l.b16 %v1395
    %v1928 = vunpack.c.l.b16 %v1396
    %v1929 = vunpack.c.l.b16 %v1397
    %v1930 = vunpack.c.l.b16 %v1398
    %v1931 = vunpack.c.l.b16 %v1399
    %v1932 = vunpack.c.l.b16 %v1400
    %v1933 = vunpack.c.l.b16 %v1401
    %v1934 = vunpack.c.l.b16 %v1402
    %v1935 = vunpack.c.l.b16 %v1403
    %v1936 = vunpack.c.l.b16 %v1404
    %v1937 = vunpack.c.l.b16 %v1405
    %v1938 = vunpack.c.l.b16 %v1406
    %v1939 = vunpack.c.l.b16 %v1407
    %v1940 = vunpack.c.l.b16 %v1408
    %v1941 = vunpack.c.l.b16 %v1409
    %v1942 = vunpack.c.l.b16 %v1410
    %v1943 = vunpack.c.l.b16 %v1411
    %v1944 = vunpack.c.l.b16 %v1412
    %v1945 = vunpack.c.l.b16 %v1413
    %v1946 = vunpack.c.l.b16 %v1414
    %v1947 = vunpack.c.l.b16 %v1415
    %v1948 = vunpack.c.l.b16 %v1416
    %v1949 = vunpack.c.l.b16 %v1417
    %v1950 = vunpack.c.l.b16 %v1418
    %v1951 = vunpack.c.l.b16 %v1419
    %v1952 = vunpack.c.l.b16 %v1420
    %v1953 = vunpack.c.l.b16 %v1421
    %v1954 = vunpack.c.l.b16 %v1422
    %v1955 = vunpack.c.l.b16 %v1423
    %v1956 = vunpack.c.l.b16 %v1424
    %v1957 = vunpack.c.l.b16 %v1425
    %v1958 = vunpack.c.l.b16 %v1426
    %v1959 = vunpack.c.l.b16 %v1427
    %v1960 = vunpack.c.l.b16 %v1428
    %v1961 = vunpack.c.l.b16 %v1429
    %v1962 = vunpack.c.l.b16 %v1430
    %v1963 = vunpack.c.l.b16 %v1431
    %v1964 = vunpack.c.l.b16 %v1432
    %v1965 = vunpack.c.l.b16 %v1433
    %v1966 = vunpack.c.l.b16 %v1434
    %v1967 = vunpack.c.l.b16 %v1435
    %v1968 = vunpack.c.l.b16 %v1436
    %v1969 = vunpack.c.l.b16 %v1437
    %v1970 = vunpack.c.l.b16 %v1438
    %v1971 = vunpack.c.l.b16 %v1439
    %v1972 = vunpack.c.l.b16 %v1440
    %v1973 = vunpack.c.l.b16 %v1441
    %v1974 = vunpack.c.l.b16 %v1442
    %v1975 = vunpack.c.l.b16 %v1443
    %v1976 = vunpack.c.l.b16 %v1444
    %v1977 = vunpack.c.l.b16 %v1445
    %v1978 = vunpack.c.l.b16 %v1446
    %v1979 = vunpack.c.l.b16 %v1447
    %v1980 = vunpack.c.l.b16 %v1448
    %v1981 = vunpack.c.l.b16 %v1449
    %v1982 = vunpack.c.l.b16 %v1450
    %v1983 = vunpack.c.l.b16 %v1451
    %v1984 = vunpack.c.l.b16 %v1452
    %v1985 = vunpack.c.l.b16 %v1453
    %v1986 = vunpack.c.l.b16 %v1454
    %v1987 = vunpack.c.l.b16 %v1455
    %v1988 = vunpack.c.l.b16 %v1456
    %v1989 = vunpack.c.l.b16 %v1457
    %v1990 = vunpack.c.l.b16 %v1458
    %v1991 = vunpack.c.l.b16 %v1459
    %v1992 = vunpack.c.l.b16 %v1460
    %v1993 = vunpack.c.l.b16 %v1461
    %v1994 = vunpack.c.l.b16 %v1462
    %v1995 = vunpack.c.l.b16 %v1463
    %v1996 = vunpack.c.l.b16 %v1464
    %v1997 = vunpack.c.l.b16 %v1465
    %v1998 = vunpack.c.l.b16 %v1466
    %v1999 = vunpack.c.l.b16 %v1467
    %v2000 = vunpack.c.l.b16 %v1468
    %v2001 = vunpack.c.l.b16 %v1469
    %v2002 = vunpack.c.l.b16 %v1470
    %v2003 = vunpack.c.l.b16 %v1471
    %v2004 = vunpack.c.l.b16 %v1472
    %v2005 = vunpack.c.l.b16 %v1473
    %v2006 = vpack.c.b16 %v1751, %v1750
    %v2007 = vpack.c.b16 %v1753, %v1752
    %v2008 = vpack.c.b16 %v1755, %v1754
    %v2009 = vpack.c.b16 %v1757, %v1756
    %v2010 = vpack.c.b16 %v1759, %v1758
    %v2011 = vpack.c.b16 %v1761, %v1760
    %v2012 = vpack.c.b16 %v1763, %v1762
    %v2013 = vpack.c.b16 %v1765, %v1764
    %v2014 = vpack.c.b16 %v1767, %v1766
    %v2015 = vpack.c.b16 %v1769, %v1768
    %v2016 = vpack.c.b16 %v1771, %v1770
    %v2017 = vpack.c.b16 %v1773, %v1772
    %v2018 = vpack.c.b16 %v1775, %v1774
    %v2019 = vpack.c.b16 %v1777, %v1776
    %v2020 = vpack.c.b16 %v1779, %v1778
    %v2021 = vpack.c.b16 %v1781, %v1780
    %v2022 = vpack.c.b16 %v1783, %v1782
    %v2023 = vpack.c.b16 %v1785, %v1784
    %v2024 = vpack.c.b16 %v1787, %v1786
    %v2025 = vpack.c.b16 %v1789, %v1788
    %v2026 = vpack.c.b16 %v1791, %v1790
    %v2027 = vpack.c.b16 %v1793, %v1792
    %v2028 = vpack.c.b16 %v1795, %v1794
    %v2029 = vpack.c.b16 %v1797, %v1796
    %v2030 = vpack.c.b16 %v1799, %v1798
    %v2031 = vpack.c.b16 %v1801, %v1800
    %v2032 = vpack.c.b16 %v1803, %v1802
    %v2033 = vpack.c.b16 %v1805, %v1804
    %v2034 = vpack.c.b16 %v1807, %v1806
    %v2035 = vpack.c.b16 %v1809, %v1808
    %v2036 = vpack.c.b16 %v1811, %v1810
    %v2037 = vpack.c.b16 %v1813, %v1812
    %v2038 = vpack.c.b16 %v1815, %v1814
    %v2039 = vpack.c.b16 %v1817, %v1816
    %v2040 = vpack.c.b16 %v1819, %v1818
    %v2041 = vpack.c.b16 %v1821, %v1820
    %v2042 = vpack.c.b16 %v1823, %v1822
    %v2043 = vpack.c.b16 %v1825, %v1824
    %v2044 = vpack.c.b16 %v1827, %v1826
    %v2045 = vpack.c.b16 %v1829, %v1828
    %v2046 = vpack.c.b16 %v1831, %v1830
    %v2047 = vpack.c.b16 %v1833, %v1832
    %v2048 = vpack.c.b16 %v1835, %v1834
    %v2049 = vpack.c.b16 %v1837, %v1836
    %v2050 = vpack.c.b16 %v1839, %v1838
    %v2051 = vpack.c.b16 %v1841, %v1840
    %v2052 = vpack.c.b16 %v1843, %v1842
    %v2053 = vpack.c.b16 %v1845, %v1844
    %v2054 = vpack.c.b16 %v1847, %v1846
    %v2055 = vpack.c.b16 %v1849, %v1848
    %v2056 = vpack.c.b16 %v1851, %v1850
    %v2057 = vpack.c.b16 %v1853, %v1852
    %v2058 = vpack.c.b16 %v1855, %v1854
    %v2059 = vpack.c.b16 %v1857, %v1856
    %v2060 = vpack.c.b16 %v1859, %v1858
    %v2061 = vpack.c.b16 %v1861, %v1860
    %v2062 = vpack.c.b16 %v1863, %v1862
    %v2063 = vpack.c.b16 %v1865, %v1864
    %v2064 = vpack.c.b16 %v1867, %v1866
    %v2065 = vpack.c.b16 %v1869, %v1868
    %v2066 = vpack.c.b16 %v1871, %v1870
    %v2067 = vpack.c.b16 %v1873, %v1872
    %v2068 = vpack.c.b16 %v1875, %v1874
    %v2069 = vpack.c.b16 %v1877, %v1876
    %v2070 = vpack.c.b16 %v1879, %v1878
    %v2071 = vpack.c.b16 %v1881, %v1880
    %v2072 = vpack.c.b16 %v1883, %v1882
    %v2073 = vpack.c.b16 %v1885, %v1884
    %v2074 = vpack.c.b16 %v1887, %v1886
    %v2075 = vpack.c.b16 %v1889, %v1888
    %v2076 = vpack.c.b16 %v1891, %v1890
    %v2077 = vpack.c.b16 %v1893, %v1892
    %v2078 = vpack.c.b16 %v1895, %v1894
    %v2079 = vpack.c.b16 %v1897, %v1896
    %v2080 = vpack.c.b16 %v1899, %v1898
    %v2081 = vpack.c.b16 %v1901, %v1900
    %v2082 = vpack.c.b16 %v1903, %v1902
    %v2083 = vpack.c.b16 %v1905, %v1904
    %v2084 = vpack.c.b16 %v1907, %v1906
    %v2085 = vpack.c.b16 %v1909, %v1908
    %v2086 = vpack.c.b16 %v1911, %v1910
    %v2087 = vpack.c.b16 %v1913, %v1912
    %v2088 = vpack.c.b16 %v1915, %v1914
    %v2089 = vpack.c.b16 %v1917, %v1916
    %v2090 = vpack.c.b16 %v1919, %v1918
    %v2091 = vpack.c.b16 %v1921, %v1920
    %v2092 = vpack.c.b16 %v1923, %v1922
    %v2093 = vpack.c.b16 %v1925, %v1924
    %v2094 = vpack.c.b16 %v1927, %v1926
    %v2095 = vpack.c.b16 %v1929, %v1928
    %v2096 = vpack.c.b16 %v1931, %v1930
    %v2097 = vpack.c.b16 %v1933, %v1932
    %v2098 = vpack.c.b16 %v1935, %v1934
    %v2099 = vpack.c.b16 %v1937, %v1936
    %v2100 = vpack.c.b16 %v1939, %v1938
    %v2101 = vpack.c.b16 %v1941, %v1940
    %v2102 = vpack.c.b16 %v1943, %v1942
    %v2103 = vpack.c.b16 %v1945, %v1944
    %v2104 = vpack.c.b16 %v1947, %v1946
    %v2105 = vpack.c.b16 %v1949, %v1948
    %v2106 = vpack.c.b16 %v1951, %v1950
    %v2107 = vpack.c.b16 %v1953, %v1952
    %v2108 = vpack.c.b16 %v1955, %v1954
    %v2109 = vpack.c.b16 %v1957, %v1956
    %v2110 = vpack.c.b16 %v1959, %v1958
    %v2111 = vpack.c.b16 %v1961, %v1960
    %v2112 = vpack.c.b16 %v1963, %v1962
    %v2113 = vpack.c.b16 %v1965, %v1964
    %v2114 = vpack.c.b16 %v1967, %v1966
    %v2115 = vpack.c.b16 %v1969, %v1968
    %v2116 = vpack.c.b16 %v1971, %v1970
    %v2117 = vpack.c.b16 %v1973, %v1972
    %v2118 = vpack.c.b16 %v1975, %v1974
    %v2119 = vpack.c.b16 %v1977, %v1976
    %v2120 = vpack.c.b16 %v1979, %v1978
    %v2121 = vpack.c.b16 %v1981, %v1980
    %v2122 = vpack.c.b16 %v1983, %v1982
    %v2123 = vpack.c.b16 %v1985, %v1984
    %v2124 = vpack.c.b16 %v1987, %v1986
    %v2125 = vpack.c.b16 %v1989, %v1988
    %v2126 = vpack.c.b16 %v1991, %v1990
    %v2127 = vpack.c.b16 %v1993, %v1992
    %v2128 = vpack.c.b16 %v1995, %v1994
    %v2129 = vpack.c.b16 %v1997, %v1996
    %v2130 = vpack.c.b16 %v1999, %v1998
    %v2131 = vpack.c.b16 %v2001, %v2000
    %v2132 = vpack.c.b16 %v2003, %v2002
    %v2133 = vpack.c.b16 %v2005, %v2004
    %2262 = vmatpush.bf16.msra.mxu0 %v2013
    %2263 = vmatpush.bf16.msra.mxu0 %v2012
    %2264 = vmatpush.bf16.msra.mxu0 %v2011
    %2265 = vmatpush.bf16.msra.mxu0 %v2010
    %2266 = vmatpush.bf16.msra.mxu0 %v2009
    %2267 = vmatpush.bf16.msra.mxu0 %v2008
    %2268 = vmatpush.bf16.msra.mxu0 %v2007
    %2269 = vmatpush.bf16.msra.mxu0 %v2006
    %2270 = vmatmul.bf16.gmra.mxu0 %v1475
    %v2271 = vpop.f32.mrf.mxu0
    %v2272 = vadd.f32 %v1492, %v2271
    %v2273 = vpop.f32.mrf.mxu0
    %v2274 = vadd.f32 %v1492, %v2273
    %2275 = vdwg.mxu0
    %2276 = vmatpush.bf16.msra.mxu0 %v2021
    %2277 = vmatpush.bf16.msra.mxu0 %v2020
    %2278 = vmatpush.bf16.msra.mxu0 %v2019
    %2279 = vmatpush.bf16.msra.mxu0 %v2018
    %2280 = vmatpush.bf16.msra.mxu0 %v2017
    %2281 = vmatpush.bf16.msra.mxu0 %v2016
    %2282 = vmatpush.bf16.msra.mxu0 %v2015
    %2283 = vmatpush.bf16.msra.mxu0 %v2014
    %2284 = vmatmul.bf16.gmra.mxu0 %v1476
    %v2285 = vpop.f32.mrf.mxu0
    %v2286 = vadd.f32 %v2272, %v2285
    %v2287 = vpop.f32.mrf.mxu0
    %v2288 = vadd.f32 %v2274, %v2287
    %2289 = vdwg.mxu0
    %2290 = vmatpush.bf16.msra.mxu0 %v2029
    %2291 = vmatpush.bf16.msra.mxu0 %v2028
    %2292 = vmatpush.bf16.msra.mxu0 %v2027
    %2293 = vmatpush.bf16.msra.mxu0 %v2026
    %2294 = vmatpush.bf16.msra.mxu0 %v2025
    %2295 = vmatpush.bf16.msra.mxu0 %v2024
    %2296 = vmatpush.bf16.msra.mxu0 %v2023
    %2297 = vmatpush.bf16.msra.mxu0 %v2022
    %2298 = vmatmul.bf16.gmra.mxu0 %v1477
    %v2299 = vpop.f32.mrf.mxu0
    %v2300 = vadd.f32 %v2286, %v2299
    %v2301 = vpop.f32.mrf.mxu0
    %v2302 = vadd.f32 %v2288, %v2301
    %2303 = vdwg.mxu0
    %2304 = vmatpush.bf16.msra.mxu0 %v2037
    %2305 = vmatpush.bf16.msra.mxu0 %v2036
    %2306 = vmatpush.bf16.msra.mxu0 %v2035
    %2307 = vmatpush.bf16.msra.mxu0 %v2034
    %2308 = vmatpush.bf16.msra.mxu0 %v2033
    %2309 = vmatpush.bf16.msra.mxu0 %v2032
    %2310 = vmatpush.bf16.msra.mxu0 %v2031
    %2311 = vmatpush.bf16.msra.mxu0 %v2030
    %2312 = vmatmul.bf16.gmra.mxu0 %v1478
    %v2313 = vpop.f32.mrf.mxu0
    %v2314 = vadd.f32 %v2300, %v2313
    %v2315 = vpop.f32.mrf.mxu0
    %v2316 = vadd.f32 %v2302, %v2315
    %2317 = vdwg.mxu0
    %2318 = vmatpush.bf16.msra.mxu0 %v2045
    %2319 = vmatpush.bf16.msra.mxu0 %v2044
    %2320 = vmatpush.bf16.msra.mxu0 %v2043
    %2321 = vmatpush.bf16.msra.mxu0 %v2042
    %2322 = vmatpush.bf16.msra.mxu0 %v2041
    %2323 = vmatpush.bf16.msra.mxu0 %v2040
    %2324 = vmatpush.bf16.msra.mxu0 %v2039
    %2325 = vmatpush.bf16.msra.mxu0 %v2038
    %2326 = vmatmul.bf16.gmra.mxu0 %v1479
    %v2327 = vpop.f32.mrf.mxu0
    %v2328 = vadd.f32 %v2314, %v2327
    %v2329 = vpop.f32.mrf.mxu0
    %v2330 = vadd.f32 %v2316, %v2329
    %2331 = vdwg.mxu0
    %2332 = vmatpush.bf16.msra.mxu0 %v2053
    %2333 = vmatpush.bf16.msra.mxu0 %v2052
    %2334 = vmatpush.bf16.msra.mxu0 %v2051
    %2335 = vmatpush.bf16.msra.mxu0 %v2050
    %2336 = vmatpush.bf16.msra.mxu0 %v2049
    %2337 = vmatpush.bf16.msra.mxu0 %v2048
    %2338 = vmatpush.bf16.msra.mxu0 %v2047
    %2339 = vmatpush.bf16.msra.mxu0 %v2046
    %2340 = vmatmul.bf16.gmra.mxu0 %v1480
    %v2341 = vpop.f32.mrf.mxu0
    %v2342 = vadd.f32 %v2328, %v2341
    %v2343 = vpop.f32.mrf.mxu0
    %v2344 = vadd.f32 %v2330, %v2343
    %2345 = vdwg.mxu0
    %2346 = vmatpush.bf16.msra.mxu0 %v2061
    %2347 = vmatpush.bf16.msra.mxu0 %v2060
    %2348 = vmatpush.bf16.msra.mxu0 %v2059
    %2349 = vmatpush.bf16.msra.mxu0 %v2058
    %2350 = vmatpush.bf16.msra.mxu0 %v2057
    %2351 = vmatpush.bf16.msra.mxu0 %v2056
    %2352 = vmatpush.bf16.msra.mxu0 %v2055
    %2353 = vmatpush.bf16.msra.mxu0 %v2054
    %2354 = vmatmul.bf16.gmra.mxu0 %v1481
    %v2355 = vpop.f32.mrf.mxu0
    %v2356 = vadd.f32 %v2342, %v2355
    %v2357 = vpop.f32.mrf.mxu0
    %v2358 = vadd.f32 %v2344, %v2357
    %2359 = vdwg.mxu0
    %2360 = vmatpush.bf16.msra.mxu0 %v2069
    %2361 = vmatpush.bf16.msra.mxu0 %v2068
    %2362 = vmatpush.bf16.msra.mxu0 %v2067
    %2363 = vmatpush.bf16.msra.mxu0 %v2066
    %2364 = vmatpush.bf16.msra.mxu0 %v2065
    %2365 = vmatpush.bf16.msra.mxu0 %v2064
    %2366 = vmatpush.bf16.msra.mxu0 %v2063
    %2367 = vmatpush.bf16.msra.mxu0 %v2062
    %2368 = vmatmul.bf16.gmra.mxu0 %v1482
    %v2369 = vpop.f32.mrf.mxu0
    %v2370 = vadd.f32 %v2356, %v2369
    %v2371 = vpop.f32.mrf.mxu0
    %v2372 = vadd.f32 %v2358, %v2371
    %2373 = vdwg.mxu0
    %2374 = vmatpush.bf16.msra.mxu0 %v2077
    %2375 = vmatpush.bf16.msra.mxu0 %v2076
    %2376 = vmatpush.bf16.msra.mxu0 %v2075
    %2377 = vmatpush.bf16.msra.mxu0 %v2074
    %2378 = vmatpush.bf16.msra.mxu0 %v2073
    %2379 = vmatpush.bf16.msra.mxu0 %v2072
    %2380 = vmatpush.bf16.msra.mxu0 %v2071
    %2381 = vmatpush.bf16.msra.mxu0 %v2070
    %2382 = vmatmul.bf16.gmra.mxu0 %v1483
    %v2383 = vpop.f32.mrf.mxu0
    %v2384 = vadd.f32 %v2370, %v2383
    %v2385 = vpop.f32.mrf.mxu0
    %v2386 = vadd.f32 %v2372, %v2385
    %2387 = vdwg.mxu0
    %2388 = vmatpush.bf16.msra.mxu0 %v2085
    %2389 = vmatpush.bf16.msra.mxu0 %v2084
    %2390 = vmatpush.bf16.msra.mxu0 %v2083
    %2391 = vmatpush.bf16.msra.mxu0 %v2082
    %2392 = vmatpush.bf16.msra.mxu0 %v2081
    %2393 = vmatpush.bf16.msra.mxu0 %v2080
    %2394 = vmatpush.bf16.msra.mxu0 %v2079
    %2395 = vmatpush.bf16.msra.mxu0 %v2078
    %2396 = vmatmul.bf16.gmra.mxu0 %v1484
    %v2397 = vpop.f32.mrf.mxu0
    %v2398 = vadd.f32 %v2384, %v2397
    %v2399 = vpop.f32.mrf.mxu0
    %v2400 = vadd.f32 %v2386, %v2399
    %2401 = vdwg.mxu0
    %2402 = vmatpush.bf16.msra.mxu0 %v2093
    %2403 = vmatpush.bf16.msra.mxu0 %v2092
    %2404 = vmatpush.bf16.msra.mxu0 %v2091
    %2405 = vmatpush.bf16.msra.mxu0 %v2090
    %2406 = vmatpush.bf16.msra.mxu0 %v2089
    %2407 = vmatpush.bf16.msra.mxu0 %v2088
    %2408 = vmatpush.bf16.msra.mxu0 %v2087
    %2409 = vmatpush.bf16.msra.mxu0 %v2086
    %2410 = vmatmul.bf16.gmra.mxu0 %v1485
    %v2411 = vpop.f32.mrf.mxu0
    %v2412 = vadd.f32 %v2398, %v2411
    %v2413 = vpop.f32.mrf.mxu0
    %v2414 = vadd.f32 %v2400, %v2413
    %2415 = vdwg.mxu0
    %2416 = vmatpush.bf16.msra.mxu0 %v2101
    %2417 = vmatpush.bf16.msra.mxu0 %v2100
    %2418 = vmatpush.bf16.msra.mxu0 %v2099
    %2419 = vmatpush.bf16.msra.mxu0 %v2098
    %2420 = vmatpush.bf16.msra.mxu0 %v2097
    %2421 = vmatpush.bf16.msra.mxu0 %v2096
    %2422 = vmatpush.bf16.msra.mxu0 %v2095
    %2423 = vmatpush.bf16.msra.mxu0 %v2094
    %2424 = vmatmul.bf16.gmra.mxu0 %v1486
    %v2425 = vpop.f32.mrf.mxu0
    %v2426 = vadd.f32 %v2412, %v2425
    %v2427 = vpop.f32.mrf.mxu0
    %v2428 = vadd.f32 %v2414, %v2427
    %2429 = vdwg.mxu0
    %2430 = vmatpush.bf16.msra.mxu0 %v2109
    %2431 = vmatpush.bf16.msra.mxu0 %v2108
    %2432 = vmatpush.bf16.msra.mxu0 %v2107
    %2433 = vmatpush.bf16.msra.mxu0 %v2106
    %2434 = vmatpush.bf16.msra.mxu0 %v2105
    %2435 = vmatpush.bf16.msra.mxu0 %v2104
    %2436 = vmatpush.bf16.msra.mxu0 %v2103
    %2437 = vmatpush.bf16.msra.mxu0 %v2102
    %2438 = vmatmul.bf16.gmra.mxu0 %v1487
    %v2439 = vpop.f32.mrf.mxu0
    %v2440 = vadd.f32 %v2426, %v2439
    %v2441 = vpop.f32.mrf.mxu0
    %v2442 = vadd.f32 %v2428, %v2441
    %2443 = vdwg.mxu0
    %2444 = vmatpush.bf16.msra.mxu0 %v2117
    %2445 = vmatpush.bf16.msra.mxu0 %v2116
    %2446 = vmatpush.bf16.msra.mxu0 %v2115
    %2447 = vmatpush.bf16.msra.mxu0 %v2114
    %2448 = vmatpush.bf16.msra.mxu0 %v2113
    %2449 = vmatpush.bf16.msra.mxu0 %v2112
    %2450 = vmatpush.bf16.msra.mxu0 %v2111
    %2451 = vmatpush.bf16.msra.mxu0 %v2110
    %2452 = vmatmul.bf16.gmra.mxu0 %v1488
    %v2453 = vpop.f32.mrf.mxu0
    %v2454 = vadd.f32 %v2440, %v2453
    %v2455 = vpop.f32.mrf.mxu0
    %v2456 = vadd.f32 %v2442, %v2455
    %2457 = vdwg.mxu0
    %2458 = vmatpush.bf16.msra.mxu0 %v2125
    %2459 = vmatpush.bf16.msra.mxu0 %v2124
    %2460 = vmatpush.bf16.msra.mxu0 %v2123
    %2461 = vmatpush.bf16.msra.mxu0 %v2122
    %2462 = vmatpush.bf16.msra.mxu0 %v2121
    %2463 = vmatpush.bf16.msra.mxu0 %v2120
    %2464 = vmatpush.bf16.msra.mxu0 %v2119
    %2465 = vmatpush.bf16.msra.mxu0 %v2118
    %2466 = vmatmul.bf16.gmra.mxu0 %v1489
    %v2467 = vpop.f32.mrf.mxu0
    %v2468 = vadd.f32 %v2454, %v2467
    %v2469 = vpop.f32.mrf.mxu0
    %v2470 = vadd.f32 %v2456, %v2469
    %2471 = vdwg.mxu0
    %2472 = vmatpush.bf16.msra.mxu0 %v2133
    %2473 = vmatpush.bf16.msra.mxu0 %v2132
    %2474 = vmatpush.bf16.msra.mxu0 %v2131
    %2475 = vmatpush.bf16.msra.mxu0 %v2130
    %2476 = vmatpush.bf16.msra.mxu0 %v2129
    %2477 = vmatpush.bf16.msra.mxu0 %v2128
    %2478 = vmatpush.bf16.msra.mxu0 %v2127
    %2479 = vmatpush.bf16.msra.mxu0 %v2126
    %2480 = vmatmul.bf16.gmra.mxu0 %v1490
    %v2481 = vpop.f32.mrf.mxu0
    %v2482 = vadd.f32 %v2468, %v2481
    %v2483 = vpop.f32.mrf.mxu0
    %v2484 = vadd.f32 %v2470, %v2483
    %2485 = vdwg.mxu0
    %v2486 = vld [vmem:[%s13] sm:$0x1]
    %v2487 = vld [vmem:[%s14] sm:$0x1]
    %v2488 = vadd.f32 %v728, %v2482
    %v2489 = vadd.f32 %v729, %v2484
    %v2490 = vsel %vm81, %v2488, 0.0
    %2491 = vadd.xlane.f32.xlu0 %v2490
    %v2492 = vpop.xlane.xlu0 %2491
    %v2493 = vsel %vm81, %v2489, 0.0
    %2494 = vadd.xlane.f32.xlu0 %v2493
    %v2495 = vpop.xlane.xlu0 %2494
    %v2496 = vmul.f32 %v2492, %v681
    %v2497 = vmul.f32 %v2495, %v681
    %v2498 = vsub.f32 %v2488, %v2496
    %v2499 = vsub.f32 %v2489, %v2497
    %v2500 = vmul.f32 %v2498, %v2498
    %v2501 = vmul.f32 %v2499, %v2499
    %v2502 = vsel %vm81, %v2500, 0.0
    %2503 = vadd.xlane.f32.xlu0 %v2502
    %v2504 = vpop.xlane.xlu0 %2503
    %v2505 = vsel %vm81, %v2501, 0.0
    %2506 = vadd.xlane.f32.xlu0 %v2505
    %v2507 = vpop.xlane.xlu0 %2506
    %v2508 = vmul.f32 %v2504, %v681
    %v2509 = vmul.f32 %v2507, %v681
    %v2510 = vadd.f32 %v2508, 1e-05
    %v2511 = vadd.f32 %v2509, 1e-05
    %v2512 = vrsqrt.pop %v2510
    %v2513 = vmul.f32 %v2512, %v2510
    %v2514 = vmul.f32 %v2513, %v2512
    %v2515 = vmul.f32 0.5, %v2514
    %v2516 = vsub.f32 1.5, %v2515
    %v2517 = vmul.f32 %v2512, %v2516
    %vm2518 = vweird.f32 %v2510
    %vm2519 = vweird.f32 %v2512
    %vm2520 = vmor %vm2518, %vm2519
    %v2521 = vsel %vm2520, %v2512, %v2517
    %v2522 = vrsqrt.pop %v2511
    %v2523 = vmul.f32 %v2522, %v2511
    %v2524 = vmul.f32 %v2523, %v2522
    %v2525 = vmul.f32 0.5, %v2524
    %v2526 = vsub.f32 1.5, %v2525
    %v2527 = vmul.f32 %v2522, %v2526
    %vm2528 = vweird.f32 %v2511
    %vm2529 = vweird.f32 %v2522
    %vm2530 = vmor %vm2528, %vm2529
    %v2531 = vsel %vm2530, %v2522, %v2527
    %v2532 = vmul.f32 %v2498, %v2521
    %v2533 = vmul.f32 %v2499, %v2531
    %v2535 = vperm.slane %v2486, 0
    %v2537 = vmul.f32 %v2532, %v2535
    %v2538 = vmul.f32 %v2533, %v2535
    %v2540 = vperm.slane %v2487, 0
    %v2542 = vadd.f32 %v2537, %v2540
    %v2543 = vadd.f32 %v2538, %v2540
    %s2544 = scalar_lea.vmem %s3, 16
    %v2545 = vld [vmem:[%s2544] sm:$0xf]
    %v2546 = vld [vmem:[%s2544 + $0x4] sm:$0xf]
    %v2547 = vld [vmem:[%s2544 + $0x8] sm:$0xf]
    %v2548 = vld [vmem:[%s2544 + $0xc] sm:$0xf]
    %s2549 = scalar_lea.vmem %s4, 1
    %v2550 = vld [vmem:[%s2549] sm:$0x1]
    %v2551 = vpack.c.bf16 %v2543, %v2542
    %v2553 = vperm.slane %v2550, 0
    %v2559 = vunpack.c.l.b16 %v2545
    %v2560 = vunpack.c.l.b16 %v2546
    %v2561 = vunpack.c.l.b16 %v2547
    %v2562 = vunpack.c.l.b16 %v2548
    %v2563 = vpack.c.b16 %v2560, %v2559
    %v2564 = vpack.c.b16 %v2562, %v2561
    %v2568 = vsel %vm81, %v2551, 0
    %2570 = vmatpush.bf16.msra.mxu0 0
    %2571 = vmatpush.bf16.msra.mxu0 0
    %2572 = vmatpush.bf16.msra.mxu0 0
    %2573 = vmatpush.bf16.msra.mxu0 0
    %2574 = vmatpush.bf16.msra.mxu0 0
    %2575 = vmatpush.bf16.msra.mxu0 0
    %2576 = vmatpush.bf16.msra.mxu0 %v2564
    %2577 = vmatpush.bf16.msra.mxu0 %v2563
    %2578 = vmatmul.bf16.gmra.mxu0 %v2568
    %v2579 = vpop.f32.mrf.mxu0
    %v2580 = vadd.f32 %v2553, %v2579
    %v2581 = vpop.f32.mrf.mxu0
    %v2582 = vadd.f32 %v2553, %v2581
    %2583 = vdwg.mxu0
    %v2584 = vpack.c.bf16 %v2580, %v2580
    %2586 = vrot.lane.b32.xlu0 %v2584, 96
    %v2587 = vpop.permute.xlu0 %2586
    %v2589 = vsel %vm141, %v2584, 0
    %v2592 = vsel %vm141, %v2587, 0
    %2594 = vmatpush.bf16.xpose.msra.mxu0 0
    %2595 = vmatpush.bf16.xpose.msra.mxu0 0
    %2596 = vmatpush.bf16.xpose.msra.mxu0 0
    %2597 = vmatpush.bf16.xpose.msra.mxu0 0
    %2598 = vmatpush.bf16.xpose.msra.mxu0 0
    %2599 = vmatpush.bf16.xpose.msra.mxu0 0
    %2600 = vmatpush.bf16.xpose.msra.mxu0 0
    %2601 = vmatpush.bf16.xpose.msra.mxu0 %v2592
    %2602 = vmatmul.bf16.gmra.mxu0 %v2589
    %v2603 = vpop.f32.mrf.mxu0
    %v2604 = vadd.f32 0.0, %v2603
    %v2605 = vpop.f32.mrf.mxu0
    %2606 = vdwg.mxu0
    %v2607 = vmul.f32 %v2604, 0.35355338
    %v2608 = vsel %vm141, %v2607, -inf
    %2609 = vmax.xlane.f32.xlu0 %v2608
    %v2610 = vpop.xlane.xlu0 %2609
    %v2611 = vsub.f32 %v2607, %v2610
    %v2612 = vmul.f32 %v2611, 1.442695
    %v2613 = vpow.pop %v2612
    %v2614 = vsel %vm141, %v2613, 0.0
    %2615 = vadd.xlane.f32.xlu0 %v2614
    %v2616 = vpop.xlane.xlu0 %2615
    %v2617 = vrcp.pop %v2616
    %v2618 = vmul.f32 %v2613, %v2617
    %v2619 = vpack.c.bf16 %v2618, %v2618
    %2620 = vrot.lane.b32.xlu0 %v2584, 64
    %v2621 = vpop.permute.xlu0 %2620
    %v2623 = vsel %vm141, %v2619, 0
    %v2626 = vsel %vm179, %v2621, 0
    %2628 = vmatpush.bf16.msra.mxu0 0
    %2629 = vmatpush.bf16.msra.mxu0 0
    %2630 = vmatpush.bf16.msra.mxu0 0
    %2631 = vmatpush.bf16.msra.mxu0 0
    %2632 = vmatpush.bf16.msra.mxu0 0
    %2633 = vmatpush.bf16.msra.mxu0 0
    %2634 = vmatpush.bf16.msra.mxu0 0
    %2635 = vmatpush.bf16.msra.mxu0 %v2626
    %2636 = vmatmul.bf16.gmra.mxu0 %v2623
    %v2637 = vpop.f32.mrf.mxu0
    %v2638 = vadd.f32 0.0, %v2637
    %v2639 = vpop.f32.mrf.mxu0
    %2640 = vdwg.mxu0
    %2641 = vrot.lane.b32.xlu0 %v2584, 120
    %v2642 = vpop.permute.xlu0 %2641
    %2643 = vrot.lane.b32.xlu0 %v2584, 88
    %v2644 = vpop.permute.xlu0 %2643
    %v2646 = vsel %vm141, %v2642, 0
    %v2649 = vsel %vm141, %v2644, 0
    %2651 = vmatpush.bf16.xpose.msra.mxu0 0
    %2652 = vmatpush.bf16.xpose.msra.mxu0 0
    %2653 = vmatpush.bf16.xpose.msra.mxu0 0
    %2654 = vmatpush.bf16.xpose.msra.mxu0 0
    %2655 = vmatpush.bf16.xpose.msra.mxu0 0
    %2656 = vmatpush.bf16.xpose.msra.mxu0 0
    %2657 = vmatpush.bf16.xpose.msra.mxu0 0
    %2658 = vmatpush.bf16.xpose.msra.mxu0 %v2649
    %2659 = vmatmul.bf16.gmra.mxu0 %v2646
    %v2660 = vpop.f32.mrf.mxu0
    %v2661 = vadd.f32 0.0, %v2660
    %v2662 = vpop.f32.mrf.mxu0
    %2663 = vdwg.mxu0
    %v2664 = vmul.f32 %v2661, 0.35355338
    %v2665 = vsel %vm141, %v2664, -inf
    %2666 = vmax.xlane.f32.xlu0 %v2665
    %v2667 = vpop.xlane.xlu0 %2666
    %v2668 = vsub.f32 %v2664, %v2667
    %v2669 = vmul.f32 %v2668, 1.442695
    %v2670 = vpow.pop %v2669
    %v2671 = vsel %vm141, %v2670, 0.0
    %2672 = vadd.xlane.f32.xlu0 %v2671
    %v2673 = vpop.xlane.xlu0 %2672
    %v2674 = vrcp.pop %v2673
    %v2675 = vmul.f32 %v2670, %v2674
    %v2676 = vpack.c.bf16 %v2675, %v2675
    %2677 = vrot.lane.b32.xlu0 %v2584, 56
    %v2678 = vpop.permute.xlu0 %2677
    %v2680 = vsel %vm141, %v2676, 0
    %v2683 = vsel %vm179, %v2678, 0
    %2685 = vmatpush.bf16.msra.mxu0 0
    %2686 = vmatpush.bf16.msra.mxu0 0
    %2687 = vmatpush.bf16.msra.mxu0 0
    %2688 = vmatpush.bf16.msra.mxu0 0
    %2689 = vmatpush.bf16.msra.mxu0 0
    %2690 = vmatpush.bf16.msra.mxu0 0
    %2691 = vmatpush.bf16.msra.mxu0 0
    %2692 = vmatpush.bf16.msra.mxu0 %v2683
    %2693 = vmatmul.bf16.gmra.mxu0 %v2680
    %v2694 = vpop.f32.mrf.mxu0
    %v2695 = vadd.f32 0.0, %v2694
    %v2696 = vpop.f32.mrf.mxu0
    %2697 = vdwg.mxu0
    %2698 = vrot.lane.b32.xlu0 %v2584, 112
    %v2699 = vpop.permute.xlu0 %2698
    %2700 = vrot.lane.b32.xlu0 %v2584, 80
    %v2701 = vpop.permute.xlu0 %2700
    %v2703 = vsel %vm141, %v2699, 0
    %v2706 = vsel %vm141, %v2701, 0
    %2708 = vmatpush.bf16.xpose.msra.mxu0 0
    %2709 = vmatpush.bf16.xpose.msra.mxu0 0
    %2710 = vmatpush.bf16.xpose.msra.mxu0 0
    %2711 = vmatpush.bf16.xpose.msra.mxu0 0
    %2712 = vmatpush.bf16.xpose.msra.mxu0 0
    %2713 = vmatpush.bf16.xpose.msra.mxu0 0
    %2714 = vmatpush.bf16.xpose.msra.mxu0 0
    %2715 = vmatpush.bf16.xpose.msra.mxu0 %v2706
    %2716 = vmatmul.bf16.gmra.mxu0 %v2703
    %v2717 = vpop.f32.mrf.mxu0
    %v2718 = vadd.f32 0.0, %v2717
    %v2719 = vpop.f32.mrf.mxu0
    %2720 = vdwg.mxu0
    %v2721 = vmul.f32 %v2718, 0.35355338
    %v2722 = vsel %vm141, %v2721, -inf
    %2723 = vmax.xlane.f32.xlu0 %v2722
    %v2724 = vpop.xlane.xlu0 %2723
    %v2725 = vsub.f32 %v2721, %v2724
    %v2726 = vmul.f32 %v2725, 1.442695
    %v2727 = vpow.pop %v2726
    %v2728 = vsel %vm141, %v2727, 0.0
    %2729 = vadd.xlane.f32.xlu0 %v2728
    %v2730 = vpop.xlane.xlu0 %2729
    %v2731 = vrcp.pop %v2730
    %v2732 = vmul.f32 %v2727, %v2731
    %v2733 = vpack.c.bf16 %v2732, %v2732
    %2734 = vrot.lane.b32.xlu0 %v2584, 48
    %v2735 = vpop.permute.xlu0 %2734
    %v2737 = vsel %vm141, %v2733, 0
    %v2740 = vsel %vm179, %v2735, 0
    %2742 = vmatpush.bf16.msra.mxu0 0
    %2743 = vmatpush.bf16.msra.mxu0 0
    %2744 = vmatpush.bf16.msra.mxu0 0
    %2745 = vmatpush.bf16.msra.mxu0 0
    %2746 = vmatpush.bf16.msra.mxu0 0
    %2747 = vmatpush.bf16.msra.mxu0 0
    %2748 = vmatpush.bf16.msra.mxu0 0
    %2749 = vmatpush.bf16.msra.mxu0 %v2740
    %2750 = vmatmul.bf16.gmra.mxu0 %v2737
    %v2751 = vpop.f32.mrf.mxu0
    %v2752 = vadd.f32 0.0, %v2751
    %v2753 = vpop.f32.mrf.mxu0
    %2754 = vdwg.mxu0
    %2755 = vrot.lane.b32.xlu0 %v2584, 104
    %v2756 = vpop.permute.xlu0 %2755
    %2757 = vrot.lane.b32.xlu0 %v2584, 72
    %v2758 = vpop.permute.xlu0 %2757
    %v2760 = vsel %vm141, %v2756, 0
    %v2763 = vsel %vm141, %v2758, 0
    %2765 = vmatpush.bf16.xpose.msra.mxu0 0
    %2766 = vmatpush.bf16.xpose.msra.mxu0 0
    %2767 = vmatpush.bf16.xpose.msra.mxu0 0
    %2768 = vmatpush.bf16.xpose.msra.mxu0 0
    %2769 = vmatpush.bf16.xpose.msra.mxu0 0
    %2770 = vmatpush.bf16.xpose.msra.mxu0 0
    %2771 = vmatpush.bf16.xpose.msra.mxu0 0
    %2772 = vmatpush.bf16.xpose.msra.mxu0 %v2763
    %2773 = vmatmul.bf16.gmra.mxu0 %v2760
    %v2774 = vpop.f32.mrf.mxu0
    %v2775 = vadd.f32 0.0, %v2774
    %v2776 = vpop.f32.mrf.mxu0
    %2777 = vdwg.mxu0
    %v2778 = vmul.f32 %v2775, 0.35355338
    %v2779 = vsel %vm141, %v2778, -inf
    %2780 = vmax.xlane.f32.xlu0 %v2779
    %v2781 = vpop.xlane.xlu0 %2780
    %v2782 = vsub.f32 %v2778, %v2781
    %v2783 = vmul.f32 %v2782, 1.442695
    %v2784 = vpow.pop %v2783
    %v2785 = vsel %vm141, %v2784, 0.0
    %2786 = vadd.xlane.f32.xlu0 %v2785
    %v2787 = vpop.xlane.xlu0 %2786
    %v2788 = vrcp.pop %v2787
    %v2789 = vmul.f32 %v2784, %v2788
    %v2790 = vpack.c.bf16 %v2789, %v2789
    %2791 = vrot.lane.b32.xlu0 %v2584, 40
    %v2792 = vpop.permute.xlu0 %2791
    %v2794 = vsel %vm141, %v2790, 0
    %v2797 = vsel %vm179, %v2792, 0
    %2799 = vmatpush.bf16.msra.mxu0 0
    %2800 = vmatpush.bf16.msra.mxu0 0
    %2801 = vmatpush.bf16.msra.mxu0 0
    %2802 = vmatpush.bf16.msra.mxu0 0
    %2803 = vmatpush.bf16.msra.mxu0 0
    %2804 = vmatpush.bf16.msra.mxu0 0
    %2805 = vmatpush.bf16.msra.mxu0 0
    %2806 = vmatpush.bf16.msra.mxu0 %v2797
    %2807 = vmatmul.bf16.gmra.mxu0 %v2794
    %v2808 = vpop.f32.mrf.mxu0
    %v2809 = vadd.f32 0.0, %v2808
    %v2810 = vpop.f32.mrf.mxu0
    %2811 = vdwg.mxu0
    %2813 = vrot.lane.b32.xlu0 %v2695, 8
    %v2814 = vpop.permute.xlu0 %2813
    %2817 = vrot.lane.b32.xlu0 %v2752, 16
    %v2818 = vpop.permute.xlu0 %2817
    %2821 = vrot.lane.b32.xlu0 %v2809, 24
    %v2822 = vpop.permute.xlu0 %2821
    %v2824 = vsel %vm141, %v2638, %v2814
    %v2825 = vsel %vm380, %v2824, %v2818
    %v2826 = vsel %vm382, %v2825, %v2822
    %v2827 = vpack.c.bf16 %v2582, %v2582
    %2829 = vrot.lane.b32.xlu0 %v2827, 96
    %v2830 = vpop.permute.xlu0 %2829
    %v2832 = vsel %vm141, %v2827, 0
    %v2835 = vsel %vm141, %v2830, 0
    %2837 = vmatpush.bf16.xpose.msra.mxu0 0
    %2838 = vmatpush.bf16.xpose.msra.mxu0 0
    %2839 = vmatpush.bf16.xpose.msra.mxu0 0
    %2840 = vmatpush.bf16.xpose.msra.mxu0 0
    %2841 = vmatpush.bf16.xpose.msra.mxu0 0
    %2842 = vmatpush.bf16.xpose.msra.mxu0 0
    %2843 = vmatpush.bf16.xpose.msra.mxu0 0
    %2844 = vmatpush.bf16.xpose.msra.mxu0 %v2835
    %2845 = vmatmul.bf16.gmra.mxu0 %v2832
    %v2846 = vpop.f32.mrf.mxu0
    %v2847 = vadd.f32 0.0, %v2846
    %v2848 = vpop.f32.mrf.mxu0
    %2849 = vdwg.mxu0
    %v2850 = vmul.f32 %v2847, 0.35355338
    %v2851 = vsel %vm141, %v2850, -inf
    %2852 = vmax.xlane.f32.xlu0 %v2851
    %v2853 = vpop.xlane.xlu0 %2852
    %v2854 = vsub.f32 %v2850, %v2853
    %v2855 = vmul.f32 %v2854, 1.442695
    %v2856 = vpow.pop %v2855
    %v2857 = vsel %vm141, %v2856, 0.0
    %2858 = vadd.xlane.f32.xlu0 %v2857
    %v2859 = vpop.xlane.xlu0 %2858
    %v2860 = vrcp.pop %v2859
    %v2861 = vmul.f32 %v2856, %v2860
    %v2862 = vpack.c.bf16 %v2861, %v2861
    %2863 = vrot.lane.b32.xlu0 %v2827, 64
    %v2864 = vpop.permute.xlu0 %2863
    %v2866 = vsel %vm141, %v2862, 0
    %v2869 = vsel %vm179, %v2864, 0
    %2871 = vmatpush.bf16.msra.mxu0 0
    %2872 = vmatpush.bf16.msra.mxu0 0
    %2873 = vmatpush.bf16.msra.mxu0 0
    %2874 = vmatpush.bf16.msra.mxu0 0
    %2875 = vmatpush.bf16.msra.mxu0 0
    %2876 = vmatpush.bf16.msra.mxu0 0
    %2877 = vmatpush.bf16.msra.mxu0 0
    %2878 = vmatpush.bf16.msra.mxu0 %v2869
    %2879 = vmatmul.bf16.gmra.mxu0 %v2866
    %v2880 = vpop.f32.mrf.mxu0
    %v2881 = vadd.f32 0.0, %v2880
    %v2882 = vpop.f32.mrf.mxu0
    %2883 = vdwg.mxu0
    %2884 = vrot.lane.b32.xlu0 %v2827, 120
    %v2885 = vpop.permute.xlu0 %2884
    %2886 = vrot.lane.b32.xlu0 %v2827, 88
    %v2887 = vpop.permute.xlu0 %2886
    %v2889 = vsel %vm141, %v2885, 0
    %v2892 = vsel %vm141, %v2887, 0
    %2894 = vmatpush.bf16.xpose.msra.mxu0 0
    %2895 = vmatpush.bf16.xpose.msra.mxu0 0
    %2896 = vmatpush.bf16.xpose.msra.mxu0 0
    %2897 = vmatpush.bf16.xpose.msra.mxu0 0
    %2898 = vmatpush.bf16.xpose.msra.mxu0 0
    %2899 = vmatpush.bf16.xpose.msra.mxu0 0
    %2900 = vmatpush.bf16.xpose.msra.mxu0 0
    %2901 = vmatpush.bf16.xpose.msra.mxu0 %v2892
    %2902 = vmatmul.bf16.gmra.mxu0 %v2889
    %v2903 = vpop.f32.mrf.mxu0
    %v2904 = vadd.f32 0.0, %v2903
    %v2905 = vpop.f32.mrf.mxu0
    %2906 = vdwg.mxu0
    %v2907 = vmul.f32 %v2904, 0.35355338
    %v2908 = vsel %vm141, %v2907, -inf
    %2909 = vmax.xlane.f32.xlu0 %v2908
    %v2910 = vpop.xlane.xlu0 %2909
    %v2911 = vsub.f32 %v2907, %v2910
    %v2912 = vmul.f32 %v2911, 1.442695
    %v2913 = vpow.pop %v2912
    %v2914 = vsel %vm141, %v2913, 0.0
    %2915 = vadd.xlane.f32.xlu0 %v2914
    %v2916 = vpop.xlane.xlu0 %2915
    %v2917 = vrcp.pop %v2916
    %v2918 = vmul.f32 %v2913, %v2917
    %v2919 = vpack.c.bf16 %v2918, %v2918
    %2920 = vrot.lane.b32.xlu0 %v2827, 56
    %v2921 = vpop.permute.xlu0 %2920
    %v2923 = vsel %vm141, %v2919, 0
    %v2926 = vsel %vm179, %v2921, 0
    %2928 = vmatpush.bf16.msra.mxu0 0
    %2929 = vmatpush.bf16.msra.mxu0 0
    %2930 = vmatpush.bf16.msra.mxu0 0
    %2931 = vmatpush.bf16.msra.mxu0 0
    %2932 = vmatpush.bf16.msra.mxu0 0
    %2933 = vmatpush.bf16.msra.mxu0 0
    %2934 = vmatpush.bf16.msra.mxu0 0
    %2935 = vmatpush.bf16.msra.mxu0 %v2926
    %2936 = vmatmul.bf16.gmra.mxu0 %v2923
    %v2937 = vpop.f32.mrf.mxu0
    %v2938 = vadd.f32 0.0, %v2937
    %v2939 = vpop.f32.mrf.mxu0
    %2940 = vdwg.mxu0
    %2941 = vrot.lane.b32.xlu0 %v2827, 112
    %v2942 = vpop.permute.xlu0 %2941
    %2943 = vrot.lane.b32.xlu0 %v2827, 80
    %v2944 = vpop.permute.xlu0 %2943
    %v2946 = vsel %vm141, %v2942, 0
    %v2949 = vsel %vm141, %v2944, 0
    %2951 = vmatpush.bf16.xpose.msra.mxu0 0
    %2952 = vmatpush.bf16.xpose.msra.mxu0 0
    %2953 = vmatpush.bf16.xpose.msra.mxu0 0
    %2954 = vmatpush.bf16.xpose.msra.mxu0 0
    %2955 = vmatpush.bf16.xpose.msra.mxu0 0
    %2956 = vmatpush.bf16.xpose.msra.mxu0 0
    %2957 = vmatpush.bf16.xpose.msra.mxu0 0
    %2958 = vmatpush.bf16.xpose.msra.mxu0 %v2949
    %2959 = vmatmul.bf16.gmra.mxu0 %v2946
    %v2960 = vpop.f32.mrf.mxu0
    %v2961 = vadd.f32 0.0, %v2960
    %v2962 = vpop.f32.mrf.mxu0
    %2963 = vdwg.mxu0
    %v2964 = vmul.f32 %v2961, 0.35355338
    %v2965 = vsel %vm141, %v2964, -inf
    %2966 = vmax.xlane.f32.xlu0 %v2965
    %v2967 = vpop.xlane.xlu0 %2966
    %v2968 = vsub.f32 %v2964, %v2967
    %v2969 = vmul.f32 %v2968, 1.442695
    %v2970 = vpow.pop %v2969
    %v2971 = vsel %vm141, %v2970, 0.0
    %2972 = vadd.xlane.f32.xlu0 %v2971
    %v2973 = vpop.xlane.xlu0 %2972
    %v2974 = vrcp.pop %v2973
    %v2975 = vmul.f32 %v2970, %v2974
    %v2976 = vpack.c.bf16 %v2975, %v2975
    %2977 = vrot.lane.b32.xlu0 %v2827, 48
    %v2978 = vpop.permute.xlu0 %2977
    %v2980 = vsel %vm141, %v2976, 0
    %v2983 = vsel %vm179, %v2978, 0
    %2985 = vmatpush.bf16.msra.mxu0 0
    %2986 = vmatpush.bf16.msra.mxu0 0
    %2987 = vmatpush.bf16.msra.mxu0 0
    %2988 = vmatpush.bf16.msra.mxu0 0
    %2989 = vmatpush.bf16.msra.mxu0 0
    %2990 = vmatpush.bf16.msra.mxu0 0
    %2991 = vmatpush.bf16.msra.mxu0 0
    %2992 = vmatpush.bf16.msra.mxu0 %v2983
    %2993 = vmatmul.bf16.gmra.mxu0 %v2980
    %v2994 = vpop.f32.mrf.mxu0
    %v2995 = vadd.f32 0.0, %v2994
    %v2996 = vpop.f32.mrf.mxu0
    %2997 = vdwg.mxu0
    %2998 = vrot.lane.b32.xlu0 %v2827, 104
    %v2999 = vpop.permute.xlu0 %2998
    %3000 = vrot.lane.b32.xlu0 %v2827, 72
    %v3001 = vpop.permute.xlu0 %3000
    %v3003 = vsel %vm141, %v2999, 0
    %v3006 = vsel %vm141, %v3001, 0
    %3008 = vmatpush.bf16.xpose.msra.mxu0 0
    %3009 = vmatpush.bf16.xpose.msra.mxu0 0
    %3010 = vmatpush.bf16.xpose.msra.mxu0 0
    %3011 = vmatpush.bf16.xpose.msra.mxu0 0
    %3012 = vmatpush.bf16.xpose.msra.mxu0 0
    %3013 = vmatpush.bf16.xpose.msra.mxu0 0
    %3014 = vmatpush.bf16.xpose.msra.mxu0 0
    %3015 = vmatpush.bf16.xpose.msra.mxu0 %v3006
    %3016 = vmatmul.bf16.gmra.mxu0 %v3003
    %v3017 = vpop.f32.mrf.mxu0
    %v3018 = vadd.f32 0.0, %v3017
    %v3019 = vpop.f32.mrf.mxu0
    %3020 = vdwg.mxu0
    %v3021 = vmul.f32 %v3018, 0.35355338
    %v3022 = vsel %vm141, %v3021, -inf
    %3023 = vmax.xlane.f32.xlu0 %v3022
    %v3024 = vpop.xlane.xlu0 %3023
    %v3025 = vsub.f32 %v3021, %v3024
    %v3026 = vmul.f32 %v3025, 1.442695
    %v3027 = vpow.pop %v3026
    %v3028 = vsel %vm141, %v3027, 0.0
    %3029 = vadd.xlane.f32.xlu0 %v3028
    %v3030 = vpop.xlane.xlu0 %3029
    %v3031 = vrcp.pop %v3030
    %v3032 = vmul.f32 %v3027, %v3031
    %v3033 = vpack.c.bf16 %v3032, %v3032
    %3034 = vrot.lane.b32.xlu0 %v2827, 40
    %v3035 = vpop.permute.xlu0 %3034
    %v3037 = vsel %vm141, %v3033, 0
    %v3040 = vsel %vm179, %v3035, 0
    %3042 = vmatpush.bf16.msra.mxu0 0
    %3043 = vmatpush.bf16.msra.mxu0 0
    %3044 = vmatpush.bf16.msra.mxu0 0
    %3045 = vmatpush.bf16.msra.mxu0 0
    %3046 = vmatpush.bf16.msra.mxu0 0
    %3047 = vmatpush.bf16.msra.mxu0 0
    %3048 = vmatpush.bf16.msra.mxu0 0
    %3049 = vmatpush.bf16.msra.mxu0 %v3040
    %3050 = vmatmul.bf16.gmra.mxu0 %v3037
    %v3051 = vpop.f32.mrf.mxu0
    %v3052 = vadd.f32 0.0, %v3051
    %v3053 = vpop.f32.mrf.mxu0
    %3054 = vdwg.mxu0
    %3056 = vrot.lane.b32.xlu0 %v2938, 8
    %v3057 = vpop.permute.xlu0 %3056
    %3060 = vrot.lane.b32.xlu0 %v2995, 16
    %v3061 = vpop.permute.xlu0 %3060
    %3064 = vrot.lane.b32.xlu0 %v3052, 24
    %v3065 = vpop.permute.xlu0 %3064
    %v3067 = vsel %vm141, %v2881, %v3057
    %v3068 = vsel %vm380, %v3067, %v3061
    %v3069 = vsel %vm382, %v3068, %v3065
    %s3070 = scalar_lea.vmem %s5, 16
    %v3071 = vld [vmem:[%s3070] sm:$0xf]
    %v3072 = vld [vmem:[%s3070 + $0x4] sm:$0xf]
    %v3073 = vld [vmem:[%s3070 + $0x8] sm:$0xf]
    %v3074 = vld [vmem:[%s3070 + $0xc] sm:$0xf]
    %s3075 = scalar_lea.vmem %s6, 1
    %v3076 = vld [vmem:[%s3075] sm:$0x1]
    %v3077 = vpack.c.bf16 %v3069, %v2826
    %v3079 = vperm.slane %v3076, 0
    %v3085 = vunpack.c.l.b16 %v3071
    %v3086 = vunpack.c.l.b16 %v3072
    %v3087 = vunpack.c.l.b16 %v3073
    %v3088 = vunpack.c.l.b16 %v3074
    %v3089 = vpack.c.b16 %v3086, %v3085
    %v3090 = vpack.c.b16 %v3088, %v3087
    %v3094 = vsel %vm81, %v3077, 0
    %3096 = vmatpush.bf16.msra.mxu0 0
    %3097 = vmatpush.bf16.msra.mxu0 0
    %3098 = vmatpush.bf16.msra.mxu0 0
    %3099 = vmatpush.bf16.msra.mxu0 0
    %3100 = vmatpush.bf16.msra.mxu0 0
    %3101 = vmatpush.bf16.msra.mxu0 0
    %3102 = vmatpush.bf16.msra.mxu0 %v3090
    %3103 = vmatpush.bf16.msra.mxu0 %v3089
    %3104 = vmatmul.bf16.gmra.mxu0 %v3094
    %v3105 = vpop.f32.mrf.mxu0
    %v3106 = vadd.f32 %v3079, %v3105
    %v3107 = vpop.f32.mrf.mxu0
    %v3108 = vadd.f32 %v3079, %v3107
    %3109 = vdwg.mxu0
    %s3110 = scalar_lea.vmem %s11, 1
    %v3111 = vld [vmem:[%s3110] sm:$0x1]
    %s3112 = scalar_lea.vmem %s12, 1
    %v3113 = vld [vmem:[%s3112] sm:$0x1]
    %v3114 = vadd.f32 %v2542, %v3106
    %v3115 = vadd.f32 %v2543, %v3108
    %v3116 = vsel %vm81, %v3114, 0.0
    %3117 = vadd.xlane.f32.xlu0 %v3116
    %v3118 = vpop.xlane.xlu0 %3117
    %v3119 = vsel %vm81, %v3115, 0.0
    %3120 = vadd.xlane.f32.xlu0 %v3119
    %v3121 = vpop.xlane.xlu0 %3120
    %v3122 = vmul.f32 %v3118, %v681
    %v3123 = vmul.f32 %v3121, %v681
    %v3124 = vsub.f32 %v3114, %v3122
    %v3125 = vsub.f32 %v3115, %v3123
    %v3126 = vmul.f32 %v3124, %v3124
    %v3127 = vmul.f32 %v3125, %v3125
    %v3128 = vsel %vm81, %v3126, 0.0
    %3129 = vadd.xlane.f32.xlu0 %v3128
    %v3130 = vpop.xlane.xlu0 %3129
    %v3131 = vsel %vm81, %v3127, 0.0
    %3132 = vadd.xlane.f32.xlu0 %v3131
    %v3133 = vpop.xlane.xlu0 %3132
    %v3134 = vmul.f32 %v3130, %v681
    %v3135 = vmul.f32 %v3133, %v681
    %v3136 = vadd.f32 %v3134, 1e-05
    %v3137 = vadd.f32 %v3135, 1e-05
    %v3138 = vrsqrt.pop %v3136
    %v3139 = vmul.f32 %v3138, %v3136
    %v3140 = vmul.f32 %v3139, %v3138
    %v3141 = vmul.f32 0.5, %v3140
    %v3142 = vsub.f32 1.5, %v3141
    %v3143 = vmul.f32 %v3138, %v3142
    %vm3144 = vweird.f32 %v3136
    %vm3145 = vweird.f32 %v3138
    %vm3146 = vmor %vm3144, %vm3145
    %v3147 = vsel %vm3146, %v3138, %v3143
    %v3148 = vrsqrt.pop %v3137
    %v3149 = vmul.f32 %v3148, %v3137
    %v3150 = vmul.f32 %v3149, %v3148
    %v3151 = vmul.f32 0.5, %v3150
    %v3152 = vsub.f32 1.5, %v3151
    %v3153 = vmul.f32 %v3148, %v3152
    %vm3154 = vweird.f32 %v3137
    %vm3155 = vweird.f32 %v3148
    %vm3156 = vmor %vm3154, %vm3155
    %v3157 = vsel %vm3156, %v3148, %v3153
    %v3158 = vmul.f32 %v3124, %v3147
    %v3159 = vmul.f32 %v3125, %v3157
    %v3161 = vperm.slane %v3111, 0
    %v3163 = vmul.f32 %v3158, %v3161
    %v3164 = vmul.f32 %v3159, %v3161
    %v3166 = vperm.slane %v3113, 0
    %v3168 = vadd.f32 %v3163, %v3166
    %v3169 = vadd.f32 %v3164, %v3166
    %s3170 = scalar_lea.vmem %s7, 256
    %v3171 = vld [vmem:[%s3170] sm:$0xff]
    %v3172 = vld [vmem:[%s3170 + $0x8] sm:$0xff]
    %v3173 = vld [vmem:[%s3170 + $0x10] sm:$0xff]
    %v3174 = vld [vmem:[%s3170 + $0x18] sm:$0xff]
    %v3175 = vld [vmem:[%s3170 + $0x20] sm:$0xff]
    %v3176 = vld [vmem:[%s3170 + $0x28] sm:$0xff]
    %v3177 = vld [vmem:[%s3170 + $0x30] sm:$0xff]
    %v3178 = vld [vmem:[%s3170 + $0x38] sm:$0xff]
    %v3179 = vld [vmem:[%s3170 + $0x40] sm:$0xff]
    %v3180 = vld [vmem:[%s3170 + $0x48] sm:$0xff]
    %v3181 = vld [vmem:[%s3170 + $0x50] sm:$0xff]
    %v3182 = vld [vmem:[%s3170 + $0x58] sm:$0xff]
    %v3183 = vld [vmem:[%s3170 + $0x60] sm:$0xff]
    %v3184 = vld [vmem:[%s3170 + $0x68] sm:$0xff]
    %v3185 = vld [vmem:[%s3170 + $0x70] sm:$0xff]
    %v3186 = vld [vmem:[%s3170 + $0x78] sm:$0xff]
    %v3187 = vld [vmem:[%s3170 + $0x80] sm:$0xff]
    %v3188 = vld [vmem:[%s3170 + $0x88] sm:$0xff]
    %v3189 = vld [vmem:[%s3170 + $0x90] sm:$0xff]
    %v3190 = vld [vmem:[%s3170 + $0x98] sm:$0xff]
    %v3191 = vld [vmem:[%s3170 + $0xa0] sm:$0xff]
    %v3192 = vld [vmem:[%s3170 + $0xa8] sm:$0xff]
    %v3193 = vld [vmem:[%s3170 + $0xb0] sm:$0xff]
    %v3194 = vld [vmem:[%s3170 + $0xb8] sm:$0xff]
    %v3195 = vld [vmem:[%s3170 + $0xc0] sm:$0xff]
    %v3196 = vld [vmem:[%s3170 + $0xc8] sm:$0xff]
    %v3197 = vld [vmem:[%s3170 + $0xd0] sm:$0xff]
    %v3198 = vld [vmem:[%s3170 + $0xd8] sm:$0xff]
    %v3199 = vld [vmem:[%s3170 + $0xe0] sm:$0xff]
    %v3200 = vld [vmem:[%s3170 + $0xe8] sm:$0xff]
    %v3201 = vld [vmem:[%s3170 + $0xf0] sm:$0xff]
    %v3202 = vld [vmem:[%s3170 + $0xf8] sm:$0xff]
    %s3203 = scalar_lea.vmem %s8, 16
    %v3204 = vld [vmem:[%s3203] sm:$0xff]
    %v3205 = vld [vmem:[%s3203 + $0x8] sm:$0xff]
    %v3206 = vpack.c.bf16 %v3169, %v3168
    %v3209 = vperm.slane %v3204, 0
    %v3210 = vperm.slane %v3204, 1
    %v3211 = vperm.slane %v3204, 2
    %v3212 = vperm.slane %v3204, 3
    %v3213 = vperm.slane %v3204, 4
    %v3214 = vperm.slane %v3204, 5
    %v3215 = vperm.slane %v3204, 6
    %v3216 = vperm.slane %v3204, 7
    %v3217 = vperm.slane %v3205, 0
    %v3218 = vperm.slane %v3205, 1
    %v3219 = vperm.slane %v3205, 2
    %v3220 = vperm.slane %v3205, 3
    %v3221 = vperm.slane %v3205, 4
    %v3222 = vperm.slane %v3205, 5
    %v3223 = vperm.slane %v3205, 6
    %v3224 = vperm.slane %v3205, 7
    %v3273 = vunpack.c.l.b16 %v3171
    %v3274 = vunpack.c.h.b16 %v3171
    %v3275 = vunpack.c.l.b16 %v3172
    %v3276 = vunpack.c.h.b16 %v3172
    %v3277 = vunpack.c.l.b16 %v3173
    %v3278 = vunpack.c.h.b16 %v3173
    %v3279 = vunpack.c.l.b16 %v3174
    %v3280 = vunpack.c.h.b16 %v3174
    %v3281 = vunpack.c.l.b16 %v3175
    %v3282 = vunpack.c.h.b16 %v3175
    %v3283 = vunpack.c.l.b16 %v3176
    %v3284 = vunpack.c.h.b16 %v3176
    %v3285 = vunpack.c.l.b16 %v3177
    %v3286 = vunpack.c.h.b16 %v3177
    %v3287 = vunpack.c.l.b16 %v3178
    %v3288 = vunpack.c.h.b16 %v3178
    %v3289 = vunpack.c.l.b16 %v3179
    %v3290 = vunpack.c.h.b16 %v3179
    %v3291 = vunpack.c.l.b16 %v3180
    %v3292 = vunpack.c.h.b16 %v3180
    %v3293 = vunpack.c.l.b16 %v3181
    %v3294 = vunpack.c.h.b16 %v3181
    %v3295 = vunpack.c.l.b16 %v3182
    %v3296 = vunpack.c.h.b16 %v3182
    %v3297 = vunpack.c.l.b16 %v3183
    %v3298 = vunpack.c.h.b16 %v3183
    %v3299 = vunpack.c.l.b16 %v3184
    %v3300 = vunpack.c.h.b16 %v3184
    %v3301 = vunpack.c.l.b16 %v3185
    %v3302 = vunpack.c.h.b16 %v3185
    %v3303 = vunpack.c.l.b16 %v3186
    %v3304 = vunpack.c.h.b16 %v3186
    %v3305 = vunpack.c.l.b16 %v3187
    %v3306 = vunpack.c.h.b16 %v3187
    %v3307 = vunpack.c.l.b16 %v3188
    %v3308 = vunpack.c.h.b16 %v3188
    %v3309 = vunpack.c.l.b16 %v3189
    %v3310 = vunpack.c.h.b16 %v3189
    %v3311 = vunpack.c.l.b16 %v3190
    %v3312 = vunpack.c.h.b16 %v3190
    %v3313 = vunpack.c.l.b16 %v3191
    %v3314 = vunpack.c.h.b16 %v3191
    %v3315 = vunpack.c.l.b16 %v3192
    %v3316 = vunpack.c.h.b16 %v3192
    %v3317 = vunpack.c.l.b16 %v3193
    %v3318 = vunpack.c.h.b16 %v3193
    %v3319 = vunpack.c.l.b16 %v3194
    %v3320 = vunpack.c.h.b16 %v3194
    %v3321 = vunpack.c.l.b16 %v3195
    %v3322 = vunpack.c.h.b16 %v3195
    %v3323 = vunpack.c.l.b16 %v3196
    %v3324 = vunpack.c.h.b16 %v3196
    %v3325 = vunpack.c.l.b16 %v3197
    %v3326 = vunpack.c.h.b16 %v3197
    %v3327 = vunpack.c.l.b16 %v3198
    %v3328 = vunpack.c.h.b16 %v3198
    %v3329 = vunpack.c.l.b16 %v3199
    %v3330 = vunpack.c.h.b16 %v3199
    %v3331 = vunpack.c.l.b16 %v3200
    %v3332 = vunpack.c.h.b16 %v3200
    %v3333 = vunpack.c.l.b16 %v3201
    %v3334 = vunpack.c.h.b16 %v3201
    %v3335 = vunpack.c.l.b16 %v3202
    %v3336 = vunpack.c.h.b16 %v3202
    %v3337 = vpack.c.b16 %v3289, %v3273
    %v3338 = vpack.c.b16 %v3290, %v3274
    %v3339 = vpack.c.b16 %v3291, %v3275
    %v3340 = vpack.c.b16 %v3292, %v3276
    %v3341 = vpack.c.b16 %v3293, %v3277
    %v3342 = vpack.c.b16 %v3294, %v3278
    %v3343 = vpack.c.b16 %v3295, %v3279
    %v3344 = vpack.c.b16 %v3296, %v3280
    %v3345 = vpack.c.b16 %v3297, %v3281
    %v3346 = vpack.c.b16 %v3298, %v3282
    %v3347 = vpack.c.b16 %v3299, %v3283
    %v3348 = vpack.c.b16 %v3300, %v3284
    %v3349 = vpack.c.b16 %v3301, %v3285
    %v3350 = vpack.c.b16 %v3302, %v3286
    %v3351 = vpack.c.b16 %v3303, %v3287
    %v3352 = vpack.c.b16 %v3304, %v3288
    %v3353 = vpack.c.b16 %v3321, %v3305
    %v3354 = vpack.c.b16 %v3322, %v3306
    %v3355 = vpack.c.b16 %v3323, %v3307
    %v3356 = vpack.c.b16 %v3324, %v3308
    %v3357 = vpack.c.b16 %v3325, %v3309
    %v3358 = vpack.c.b16 %v3326, %v3310
    %v3359 = vpack.c.b16 %v3327, %v3311
    %v3360 = vpack.c.b16 %v3328, %v3312
    %v3361 = vpack.c.b16 %v3329, %v3313
    %v3362 = vpack.c.b16 %v3330, %v3314
    %v3363 = vpack.c.b16 %v3331, %v3315
    %v3364 = vpack.c.b16 %v3332, %v3316
    %v3365 = vpack.c.b16 %v3333, %v3317
    %v3366 = vpack.c.b16 %v3334, %v3318
    %v3367 = vpack.c.b16 %v3335, %v3319
    %v3368 = vpack.c.b16 %v3336, %v3320
    %v3402 = vsel %vm81, %v3206, 0
    %3404 = vmatpush.bf16.msra.mxu0 0
    %3405 = vmatpush.bf16.msra.mxu0 0
    %3406 = vmatpush.bf16.msra.mxu0 0
    %3407 = vmatpush.bf16.msra.mxu0 0
    %3408 = vmatpush.bf16.msra.mxu0 0
    %3409 = vmatpush.bf16.msra.mxu0 0
    %3410 = vmatpush.bf16.msra.mxu0 %v3353
    %3411 = vmatpush.bf16.msra.mxu0 %v3337
    %3412 = vmatmul.bf16.gmra.mxu0 %v3402
    %v3413 = vpop.f32.mrf.mxu0
    %v3414 = vadd.f32 %v3209, %v3413
    %v3415 = vpop.f32.mrf.mxu0
    %v3416 = vadd.f32 %v3209, %v3415
    %3417 = vdwg.mxu0
    %3418 = vmatpush.bf16.msra.mxu0 0
    %3419 = vmatpush.bf16.msra.mxu0 0
    %3420 = vmatpush.bf16.msra.mxu0 0
    %3421 = vmatpush.bf16.msra.mxu0 0
    %3422 = vmatpush.bf16.msra.mxu0 0
    %3423 = vmatpush.bf16.msra.mxu0 0
    %3424 = vmatpush.bf16.msra.mxu0 %v3354
    %3425 = vmatpush.bf16.msra.mxu0 %v3338
    %3426 = vmatmul.bf16.gmra.mxu0 %v3402
    %v3427 = vpop.f32.mrf.mxu0
    %v3428 = vadd.f32 %v3210, %v3427
    %v3429 = vpop.f32.mrf.mxu0
    %v3430 = vadd.f32 %v3210, %v3429
    %3431 = vdwg.mxu0
    %3432 = vmatpush.bf16.msra.mxu0 0
    %3433 = vmatpush.bf16.msra.mxu0 0
    %3434 = vmatpush.bf16.msra.mxu0 0
    %3435 = vmatpush.bf16.msra.mxu0 0
    %3436 = vmatpush.bf16.msra.mxu0 0
    %3437 = vmatpush.bf16.msra.mxu0 0
    %3438 = vmatpush.bf16.msra.mxu0 %v3355
    %3439 = vmatpush.bf16.msra.mxu0 %v3339
    %3440 = vmatmul.bf16.gmra.mxu0 %v3402
    %v3441 = vpop.f32.mrf.mxu0
    %v3442 = vadd.f32 %v3211, %v3441
    %v3443 = vpop.f32.mrf.mxu0
    %v3444 = vadd.f32 %v3211, %v3443
    %3445 = vdwg.mxu0
    %3446 = vmatpush.bf16.msra.mxu0 0
    %3447 = vmatpush.bf16.msra.mxu0 0
    %3448 = vmatpush.bf16.msra.mxu0 0
    %3449 = vmatpush.bf16.msra.mxu0 0
    %3450 = vmatpush.bf16.msra.mxu0 0
    %3451 = vmatpush.bf16.msra.mxu0 0
    %3452 = vmatpush.bf16.msra.mxu0 %v3356
    %3453 = vmatpush.bf16.msra.mxu0 %v3340
    %3454 = vmatmul.bf16.gmra.mxu0 %v3402
    %v3455 = vpop.f32.mrf.mxu0
    %v3456 = vadd.f32 %v3212, %v3455
    %v3457 = vpop.f32.mrf.mxu0
    %v3458 = vadd.f32 %v3212, %v3457
    %3459 = vdwg.mxu0
    %3460 = vmatpush.bf16.msra.mxu0 0
    %3461 = vmatpush.bf16.msra.mxu0 0
    %3462 = vmatpush.bf16.msra.mxu0 0
    %3463 = vmatpush.bf16.msra.mxu0 0
    %3464 = vmatpush.bf16.msra.mxu0 0
    %3465 = vmatpush.bf16.msra.mxu0 0
    %3466 = vmatpush.bf16.msra.mxu0 %v3357
    %3467 = vmatpush.bf16.msra.mxu0 %v3341
    %3468 = vmatmul.bf16.gmra.mxu0 %v3402
    %v3469 = vpop.f32.mrf.mxu0
    %v3470 = vadd.f32 %v3213, %v3469
    %v3471 = vpop.f32.mrf.mxu0
    %v3472 = vadd.f32 %v3213, %v3471
    %3473 = vdwg.mxu0
    %3474 = vmatpush.bf16.msra.mxu0 0
    %3475 = vmatpush.bf16.msra.mxu0 0
    %3476 = vmatpush.bf16.msra.mxu0 0
    %3477 = vmatpush.bf16.msra.mxu0 0
    %3478 = vmatpush.bf16.msra.mxu0 0
    %3479 = vmatpush.bf16.msra.mxu0 0
    %3480 = vmatpush.bf16.msra.mxu0 %v3358
    %3481 = vmatpush.bf16.msra.mxu0 %v3342
    %3482 = vmatmul.bf16.gmra.mxu0 %v3402
    %v3483 = vpop.f32.mrf.mxu0
    %v3484 = vadd.f32 %v3214, %v3483
    %v3485 = vpop.f32.mrf.mxu0
    %v3486 = vadd.f32 %v3214, %v3485
    %3487 = vdwg.mxu0
    %3488 = vmatpush.bf16.msra.mxu0 0
    %3489 = vmatpush.bf16.msra.mxu0 0
    %3490 = vmatpush.bf16.msra.mxu0 0
    %3491 = vmatpush.bf16.msra.mxu0 0
    %3492 = vmatpush.bf16.msra.mxu0 0
    %3493 = vmatpush.bf16.msra.mxu0 0
    %3494 = vmatpush.bf16.msra.mxu0 %v3359
    %3495 = vmatpush.bf16.msra.mxu0 %v3343
    %3496 = vmatmul.bf16.gmra.mxu0 %v3402
    %v3497 = vpop.f32.mrf.mxu0
    %v3498 = vadd.f32 %v3215, %v3497
    %v3499 = vpop.f32.mrf.mxu0
    %v3500 = vadd.f32 %v3215, %v3499
    %3501 = vdwg.mxu0
    %3502 = vmatpush.bf16.msra.mxu0 0
    %3503 = vmatpush.bf16.msra.mxu0 0
    %3504 = vmatpush.bf16.msra.mxu0 0
    %3505 = vmatpush.bf16.msra.mxu0 0
    %3506 = vmatpush.bf16.msra.mxu0 0
    %3507 = vmatpush.bf16.msra.mxu0 0
    %3508 = vmatpush.bf16.msra.mxu0 %v3360
    %3509 = vmatpush.bf16.msra.mxu0 %v3344
    %3510 = vmatmul.bf16.gmra.mxu0 %v3402
    %v3511 = vpop.f32.mrf.mxu0
    %v3512 = vadd.f32 %v3216, %v3511
    %v3513 = vpop.f32.mrf.mxu0
    %v3514 = vadd.f32 %v3216, %v3513
    %3515 = vdwg.mxu0
    %3516 = vmatpush.bf16.msra.mxu0 0
    %3517 = vmatpush.bf16.msra.mxu0 0
    %3518 = vmatpush.bf16.msra.mxu0 0
    %3519 = vmatpush.bf16.msra.mxu0 0
    %3520 = vmatpush.bf16.msra.mxu0 0
    %3521 = vmatpush.bf16.msra.mxu0 0
    %3522 = vmatpush.bf16.msra.mxu0 %v3361
    %3523 = vmatpush.bf16.msra.mxu0 %v3345
    %3524 = vmatmul.bf16.gmra.mxu0 %v3402
    %v3525 = vpop.f32.mrf.mxu0
    %v3526 = vadd.f32 %v3217, %v3525
    %v3527 = vpop.f32.mrf.mxu0
    %v3528 = vadd.f32 %v3217, %v3527
    %3529 = vdwg.mxu0
    %3530 = vmatpush.bf16.msra.mxu0 0
    %3531 = vmatpush.bf16.msra.mxu0 0
    %3532 = vmatpush.bf16.msra.mxu0 0
    %3533 = vmatpush.bf16.msra.mxu0 0
    %3534 = vmatpush.bf16.msra.mxu0 0
    %3535 = vmatpush.bf16.msra.mxu0 0
    %3536 = vmatpush.bf16.msra.mxu0 %v3362
    %3537 = vmatpush.bf16.msra.mxu0 %v3346
    %3538 = vmatmul.bf16.gmra.mxu0 %v3402
    %v3539 = vpop.f32.mrf.mxu0
    %v3540 = vadd.f32 %v3218, %v3539
    %v3541 = vpop.f32.mrf.mxu0
    %v3542 = vadd.f32 %v3218, %v3541
    %3543 = vdwg.mxu0
    %3544 = vmatpush.bf16.msra.mxu0 0
    %3545 = vmatpush.bf16.msra.mxu0 0
    %3546 = vmatpush.bf16.msra.mxu0 0
    %3547 = vmatpush.bf16.msra.mxu0 0
    %3548 = vmatpush.bf16.msra.mxu0 0
    %3549 = vmatpush.bf16.msra.mxu0 0
    %3550 = vmatpush.bf16.msra.mxu0 %v3363
    %3551 = vmatpush.bf16.msra.mxu0 %v3347
    %3552 = vmatmul.bf16.gmra.mxu0 %v3402
    %v3553 = vpop.f32.mrf.mxu0
    %v3554 = vadd.f32 %v3219, %v3553
    %v3555 = vpop.f32.mrf.mxu0
    %v3556 = vadd.f32 %v3219, %v3555
    %3557 = vdwg.mxu0
    %3558 = vmatpush.bf16.msra.mxu0 0
    %3559 = vmatpush.bf16.msra.mxu0 0
    %3560 = vmatpush.bf16.msra.mxu0 0
    %3561 = vmatpush.bf16.msra.mxu0 0
    %3562 = vmatpush.bf16.msra.mxu0 0
    %3563 = vmatpush.bf16.msra.mxu0 0
    %3564 = vmatpush.bf16.msra.mxu0 %v3364
    %3565 = vmatpush.bf16.msra.mxu0 %v3348
    %3566 = vmatmul.bf16.gmra.mxu0 %v3402
    %v3567 = vpop.f32.mrf.mxu0
    %v3568 = vadd.f32 %v3220, %v3567
    %v3569 = vpop.f32.mrf.mxu0
    %v3570 = vadd.f32 %v3220, %v3569
    %3571 = vdwg.mxu0
    %3572 = vmatpush.bf16.msra.mxu0 0
    %3573 = vmatpush.bf16.msra.mxu0 0
    %3574 = vmatpush.bf16.msra.mxu0 0
    %3575 = vmatpush.bf16.msra.mxu0 0
    %3576 = vmatpush.bf16.msra.mxu0 0
    %3577 = vmatpush.bf16.msra.mxu0 0
    %3578 = vmatpush.bf16.msra.mxu0 %v3365
    %3579 = vmatpush.bf16.msra.mxu0 %v3349
    %3580 = vmatmul.bf16.gmra.mxu0 %v3402
    %v3581 = vpop.f32.mrf.mxu0
    %v3582 = vadd.f32 %v3221, %v3581
    %v3583 = vpop.f32.mrf.mxu0
    %v3584 = vadd.f32 %v3221, %v3583
    %3585 = vdwg.mxu0
    %3586 = vmatpush.bf16.msra.mxu0 0
    %3587 = vmatpush.bf16.msra.mxu0 0
    %3588 = vmatpush.bf16.msra.mxu0 0
    %3589 = vmatpush.bf16.msra.mxu0 0
    %3590 = vmatpush.bf16.msra.mxu0 0
    %3591 = vmatpush.bf16.msra.mxu0 0
    %3592 = vmatpush.bf16.msra.mxu0 %v3366
    %3593 = vmatpush.bf16.msra.mxu0 %v3350
    %3594 = vmatmul.bf16.gmra.mxu0 %v3402
    %v3595 = vpop.f32.mrf.mxu0
    %v3596 = vadd.f32 %v3222, %v3595
    %v3597 = vpop.f32.mrf.mxu0
    %v3598 = vadd.f32 %v3222, %v3597
    %3599 = vdwg.mxu0
    %3600 = vmatpush.bf16.msra.mxu0 0
    %3601 = vmatpush.bf16.msra.mxu0 0
    %3602 = vmatpush.bf16.msra.mxu0 0
    %3603 = vmatpush.bf16.msra.mxu0 0
    %3604 = vmatpush.bf16.msra.mxu0 0
    %3605 = vmatpush.bf16.msra.mxu0 0
    %3606 = vmatpush.bf16.msra.mxu0 %v3367
    %3607 = vmatpush.bf16.msra.mxu0 %v3351
    %3608 = vmatmul.bf16.gmra.mxu0 %v3402
    %v3609 = vpop.f32.mrf.mxu0
    %v3610 = vadd.f32 %v3223, %v3609
    %v3611 = vpop.f32.mrf.mxu0
    %v3612 = vadd.f32 %v3223, %v3611
    %3613 = vdwg.mxu0
    %3614 = vmatpush.bf16.msra.mxu0 0
    %3615 = vmatpush.bf16.msra.mxu0 0
    %3616 = vmatpush.bf16.msra.mxu0 0
    %3617 = vmatpush.bf16.msra.mxu0 0
    %3618 = vmatpush.bf16.msra.mxu0 0
    %3619 = vmatpush.bf16.msra.mxu0 0
    %3620 = vmatpush.bf16.msra.mxu0 %v3368
    %3621 = vmatpush.bf16.msra.mxu0 %v3352
    %3622 = vmatmul.bf16.gmra.mxu0 %v3402
    %v3623 = vpop.f32.mrf.mxu0
    %v3624 = vadd.f32 %v3224, %v3623
    %v3625 = vpop.f32.mrf.mxu0
    %v3626 = vadd.f32 %v3224, %v3625
    %3627 = vdwg.mxu0
    %v3628 = vmax.f32 %v3414, 0.0
    %v3629 = vmax.f32 %v3428, 0.0
    %v3630 = vmax.f32 %v3442, 0.0
    %v3631 = vmax.f32 %v3456, 0.0
    %v3632 = vmax.f32 %v3470, 0.0
    %v3633 = vmax.f32 %v3484, 0.0
    %v3634 = vmax.f32 %v3498, 0.0
    %v3635 = vmax.f32 %v3512, 0.0
    %v3636 = vmax.f32 %v3526, 0.0
    %v3637 = vmax.f32 %v3540, 0.0
    %v3638 = vmax.f32 %v3554, 0.0
    %v3639 = vmax.f32 %v3568, 0.0
    %v3640 = vmax.f32 %v3582, 0.0
    %v3641 = vmax.f32 %v3596, 0.0
    %v3642 = vmax.f32 %v3610, 0.0
    %v3643 = vmax.f32 %v3624, 0.0
    %v3644 = vmax.f32 %v3416, 0.0
    %v3645 = vmax.f32 %v3430, 0.0
    %v3646 = vmax.f32 %v3444, 0.0
    %v3647 = vmax.f32 %v3458, 0.0
    %v3648 = vmax.f32 %v3472, 0.0
    %v3649 = vmax.f32 %v3486, 0.0
    %v3650 = vmax.f32 %v3500, 0.0
    %v3651 = vmax.f32 %v3514, 0.0
    %v3652 = vmax.f32 %v3528, 0.0
    %v3653 = vmax.f32 %v3542, 0.0
    %v3654 = vmax.f32 %v3556, 0.0
    %v3655 = vmax.f32 %v3570, 0.0
    %v3656 = vmax.f32 %v3584, 0.0
    %v3657 = vmax.f32 %v3598, 0.0
    %v3658 = vmax.f32 %v3612, 0.0
    %v3659 = vmax.f32 %v3626, 0.0
    %s3660 = scalar_lea.vmem %s9, 1024
    %v3661 = vld [vmem:[%s3660] sm:$0xf]
    %v3662 = vld [vmem:[%s3660 + $0x4] sm:$0xf]
    %v3663 = vld [vmem:[%s3660 + $0x8] sm:$0xf]
    %v3664 = vld [vmem:[%s3660 + $0xc] sm:$0xf]
    %v3665 = vld [vmem:[%s3660 + $0x10] sm:$0xf]
    %v3666 = vld [vmem:[%s3660 + $0x14] sm:$0xf]
    %v3667 = vld [vmem:[%s3660 + $0x18] sm:$0xf]
    %v3668 = vld [vmem:[%s3660 + $0x1c] sm:$0xf]
    %v3669 = vld [vmem:[%s3660 + $0x20] sm:$0xf]
    %v3670 = vld [vmem:[%s3660 + $0x24] sm:$0xf]
    %v3671 = vld [vmem:[%s3660 + $0x28] sm:$0xf]
    %v3672 = vld [vmem:[%s3660 + $0x2c] sm:$0xf]
    %v3673 = vld [vmem:[%s3660 + $0x30] sm:$0xf]
    %v3674 = vld [vmem:[%s3660 + $0x34] sm:$0xf]
    %v3675 = vld [vmem:[%s3660 + $0x38] sm:$0xf]
    %v3676 = vld [vmem:[%s3660 + $0x3c] sm:$0xf]
    %v3677 = vld [vmem:[%s3660 + $0x40] sm:$0xf]
    %v3678 = vld [vmem:[%s3660 + $0x44] sm:$0xf]
    %v3679 = vld [vmem:[%s3660 + $0x48] sm:$0xf]
    %v3680 = vld [vmem:[%s3660 + $0x4c] sm:$0xf]
    %v3681 = vld [vmem:[%s3660 + $0x50] sm:$0xf]
    %v3682 = vld [vmem:[%s3660 + $0x54] sm:$0xf]
    %v3683 = vld [vmem:[%s3660 + $0x58] sm:$0xf]
    %v3684 = vld [vmem:[%s3660 + $0x5c] sm:$0xf]
    %v3685 = vld [vmem:[%s3660 + $0x60] sm:$0xf]
    %v3686 = vld [vmem:[%s3660 + $0x64] sm:$0xf]
    %v3687 = vld [vmem:[%s3660 + $0x68] sm:$0xf]
    %v3688 = vld [vmem:[%s3660 + $0x6c] sm:$0xf]
    %v3689 = vld [vmem:[%s3660 + $0x70] sm:$0xf]
    %v3690 = vld [vmem:[%s3660 + $0x74] sm:$0xf]
    %v3691 = vld [vmem:[%s3660 + $0x78] sm:$0xf]
    %v3692 = vld [vmem:[%s3660 + $0x7c] sm:$0xf]
    %v3693 = vld [vmem:[%s3660 + $0x80] sm:$0xf]
    %v3694 = vld [vmem:[%s3660 + $0x84] sm:$0xf]
    %v3695 = vld [vmem:[%s3660 + $0x88] sm:$0xf]
    %v3696 = vld [vmem:[%s3660 + $0x8c] sm:$0xf]
    %v3697 = vld [vmem:[%s3660 + $0x90] sm:$0xf]
    %v3698 = vld [vmem:[%s3660 + $0x94] sm:$0xf]
    %v3699 = vld [vmem:[%s3660 + $0x98] sm:$0xf]
    %v3700 = vld [vmem:[%s3660 + $0x9c] sm:$0xf]
    %v3701 = vld [vmem:[%s3660 + $0xa0] sm:$0xf]
    %v3702 = vld [vmem:[%s3660 + $0xa4] sm:$0xf]
    %v3703 = vld [vmem:[%s3660 + $0xa8] sm:$0xf]
    %v3704 = vld [vmem:[%s3660 + $0xac] sm:$0xf]
    %v3705 = vld [vmem:[%s3660 + $0xb0] sm:$0xf]
    %v3706 = vld [vmem:[%s3660 + $0xb4] sm:$0xf]
    %v3707 = vld [vmem:[%s3660 + $0xb8] sm:$0xf]
    %v3708 = vld [vmem:[%s3660 + $0xbc] sm:$0xf]
    %v3709 = vld [vmem:[%s3660 + $0xc0] sm:$0xf]
    %v3710 = vld [vmem:[%s3660 + $0xc4] sm:$0xf]
    %v3711 = vld [vmem:[%s3660 + $0xc8] sm:$0xf]
    %v3712 = vld [vmem:[%s3660 + $0xcc] sm:$0xf]
    %v3713 = vld [vmem:[%s3660 + $0xd0] sm:$0xf]
    %v3714 = vld [vmem:[%s3660 + $0xd4] sm:$0xf]
    %v3715 = vld [vmem:[%s3660 + $0xd8] sm:$0xf]
    %v3716 = vld [vmem:[%s3660 + $0xdc] sm:$0xf]
    %v3717 = vld [vmem:[%s3660 + $0xe0] sm:$0xf]
    %v3718 = vld [vmem:[%s3660 + $0xe4] sm:$0xf]
    %v3719 = vld [vmem:[%s3660 + $0xe8] sm:$0xf]
    %v3720 = vld [vmem:[%s3660 + $0xec] sm:$0xf]
    %v3721 = vld [vmem:[%s3660 + $0xf0] sm:$0xf]
    %v3722 = vld [vmem:[%s3660 + $0xf4] sm:$0xf]
    %v3723 = vld [vmem:[%s3660 + $0xf8] sm:$0xf]
    %v3724 = vld [vmem:[%s3660 + $0xfc] sm:$0xf]
    %v3725 = vld [vmem:[%s3660 + $0x100] sm:$0xf]
    %v3726 = vld [vmem:[%s3660 + $0x104] sm:$0xf]
    %v3727 = vld [vmem:[%s3660 + $0x108] sm:$0xf]
    %v3728 = vld [vmem:[%s3660 + $0x10c] sm:$0xf]
    %v3729 = vld [vmem:[%s3660 + $0x110] sm:$0xf]
    %v3730 = vld [vmem:[%s3660 + $0x114] sm:$0xf]
    %v3731 = vld [vmem:[%s3660 + $0x118] sm:$0xf]
    %v3732 = vld [vmem:[%s3660 + $0x11c] sm:$0xf]
    %v3733 = vld [vmem:[%s3660 + $0x120] sm:$0xf]
    %v3734 = vld [vmem:[%s3660 + $0x124] sm:$0xf]
    %v3735 = vld [vmem:[%s3660 + $0x128] sm:$0xf]
    %v3736 = vld [vmem:[%s3660 + $0x12c] sm:$0xf]
    %v3737 = vld [vmem:[%s3660 + $0x130] sm:$0xf]
    %v3738 = vld [vmem:[%s3660 + $0x134] sm:$0xf]
    %v3739 = vld [vmem:[%s3660 + $0x138] sm:$0xf]
    %v3740 = vld [vmem:[%s3660 + $0x13c] sm:$0xf]
    %v3741 = vld [vmem:[%s3660 + $0x140] sm:$0xf]
    %v3742 = vld [vmem:[%s3660 + $0x144] sm:$0xf]
    %v3743 = vld [vmem:[%s3660 + $0x148] sm:$0xf]
    %v3744 = vld [vmem:[%s3660 + $0x14c] sm:$0xf]
    %v3745 = vld [vmem:[%s3660 + $0x150] sm:$0xf]
    %v3746 = vld [vmem:[%s3660 + $0x154] sm:$0xf]
    %v3747 = vld [vmem:[%s3660 + $0x158] sm:$0xf]
    %v3748 = vld [vmem:[%s3660 + $0x15c] sm:$0xf]
    %v3749 = vld [vmem:[%s3660 + $0x160] sm:$0xf]
    %v3750 = vld [vmem:[%s3660 + $0x164] sm:$0xf]
    %v3751 = vld [vmem:[%s3660 + $0x168] sm:$0xf]
    %v3752 = vld [vmem:[%s3660 + $0x16c] sm:$0xf]
    %v3753 = vld [vmem:[%s3660 + $0x170] sm:$0xf]
    %v3754 = vld [vmem:[%s3660 + $0x174] sm:$0xf]
    %v3755 = vld [vmem:[%s3660 + $0x178] sm:$0xf]
    %v3756 = vld [vmem:[%s3660 + $0x17c] sm:$0xf]
    %v3757 = vld [vmem:[%s3660 + $0x180] sm:$0xf]
    %v3758 = vld [vmem:[%s3660 + $0x184] sm:$0xf]
    %v3759 = vld [vmem:[%s3660 + $0x188] sm:$0xf]
    %v3760 = vld [vmem:[%s3660 + $0x18c] sm:$0xf]
    %v3761 = vld [vmem:[%s3660 + $0x190] sm:$0xf]
    %v3762 = vld [vmem:[%s3660 + $0x194] sm:$0xf]
    %v3763 = vld [vmem:[%s3660 + $0x198] sm:$0xf]
    %v3764 = vld [vmem:[%s3660 + $0x19c] sm:$0xf]
    %v3765 = vld [vmem:[%s3660 + $0x1a0] sm:$0xf]
    %v3766 = vld [vmem:[%s3660 + $0x1a4] sm:$0xf]
    %v3767 = vld [vmem:[%s3660 + $0x1a8] sm:$0xf]
    %v3768 = vld [vmem:[%s3660 + $0x1ac] sm:$0xf]
    %v3769 = vld [vmem:[%s3660 + $0x1b0] sm:$0xf]
    %v3770 = vld [vmem:[%s3660 + $0x1b4] sm:$0xf]
    %v3771 = vld [vmem:[%s3660 + $0x1b8] sm:$0xf]
    %v3772 = vld [vmem:[%s3660 + $0x1bc] sm:$0xf]
    %v3773 = vld [vmem:[%s3660 + $0x1c0] sm:$0xf]
    %v3774 = vld [vmem:[%s3660 + $0x1c4] sm:$0xf]
    %v3775 = vld [vmem:[%s3660 + $0x1c8] sm:$0xf]
    %v3776 = vld [vmem:[%s3660 + $0x1cc] sm:$0xf]
    %v3777 = vld [vmem:[%s3660 + $0x1d0] sm:$0xf]
    %v3778 = vld [vmem:[%s3660 + $0x1d4] sm:$0xf]
    %v3779 = vld [vmem:[%s3660 + $0x1d8] sm:$0xf]
    %v3780 = vld [vmem:[%s3660 + $0x1dc] sm:$0xf]
    %v3781 = vld [vmem:[%s3660 + $0x1e0] sm:$0xf]
    %v3782 = vld [vmem:[%s3660 + $0x1e4] sm:$0xf]
    %v3783 = vld [vmem:[%s3660 + $0x1e8] sm:$0xf]
    %v3784 = vld [vmem:[%s3660 + $0x1ec] sm:$0xf]
    %v3785 = vld [vmem:[%s3660 + $0x1f0] sm:$0xf]
    %v3786 = vld [vmem:[%s3660 + $0x1f4] sm:$0xf]
    %v3787 = vld [vmem:[%s3660 + $0x1f8] sm:$0xf]
    %v3788 = vld [vmem:[%s3660 + $0x1fc] sm:$0xf]
    %v3789 = vld [vmem:[%s3660 + $0x200] sm:$0xf]
    %v3790 = vld [vmem:[%s3660 + $0x204] sm:$0xf]
    %v3791 = vld [vmem:[%s3660 + $0x208] sm:$0xf]
    %v3792 = vld [vmem:[%s3660 + $0x20c] sm:$0xf]
    %v3793 = vld [vmem:[%s3660 + $0x210] sm:$0xf]
    %v3794 = vld [vmem:[%s3660 + $0x214] sm:$0xf]
    %v3795 = vld [vmem:[%s3660 + $0x218] sm:$0xf]
    %v3796 = vld [vmem:[%s3660 + $0x21c] sm:$0xf]
    %v3797 = vld [vmem:[%s3660 + $0x220] sm:$0xf]
    %v3798 = vld [vmem:[%s3660 + $0x224] sm:$0xf]
    %v3799 = vld [vmem:[%s3660 + $0x228] sm:$0xf]
    %v3800 = vld [vmem:[%s3660 + $0x22c] sm:$0xf]
    %v3801 = vld [vmem:[%s3660 + $0x230] sm:$0xf]
    %v3802 = vld [vmem:[%s3660 + $0x234] sm:$0xf]
    %v3803 = vld [vmem:[%s3660 + $0x238] sm:$0xf]
    %v3804 = vld [vmem:[%s3660 + $0x23c] sm:$0xf]
    %v3805 = vld [vmem:[%s3660 + $0x240] sm:$0xf]
    %v3806 = vld [vmem:[%s3660 + $0x244] sm:$0xf]
    %v3807 = vld [vmem:[%s3660 + $0x248] sm:$0xf]
    %v3808 = vld [vmem:[%s3660 + $0x24c] sm:$0xf]
    %v3809 = vld [vmem:[%s3660 + $0x250] sm:$0xf]
    %v3810 = vld [vmem:[%s3660 + $0x254] sm:$0xf]
    %v3811 = vld [vmem:[%s3660 + $0x258] sm:$0xf]
    %v3812 = vld [vmem:[%s3660 + $0x25c] sm:$0xf]
    %v3813 = vld [vmem:[%s3660 + $0x260] sm:$0xf]
    %v3814 = vld [vmem:[%s3660 + $0x264] sm:$0xf]
    %v3815 = vld [vmem:[%s3660 + $0x268] sm:$0xf]
    %v3816 = vld [vmem:[%s3660 + $0x26c] sm:$0xf]
    %v3817 = vld [vmem:[%s3660 + $0x270] sm:$0xf]
    %v3818 = vld [vmem:[%s3660 + $0x274] sm:$0xf]
    %v3819 = vld [vmem:[%s3660 + $0x278] sm:$0xf]
    %v3820 = vld [vmem:[%s3660 + $0x27c] sm:$0xf]
    %v3821 = vld [vmem:[%s3660 + $0x280] sm:$0xf]
    %v3822 = vld [vmem:[%s3660 + $0x284] sm:$0xf]
    %v3823 = vld [vmem:[%s3660 + $0x288] sm:$0xf]
    %v3824 = vld [vmem:[%s3660 + $0x28c] sm:$0xf]
    %v3825 = vld [vmem:[%s3660 + $0x290] sm:$0xf]
    %v3826 = vld [vmem:[%s3660 + $0x294] sm:$0xf]
    %v3827 = vld [vmem:[%s3660 + $0x298] sm:$0xf]
    %v3828 = vld [vmem:[%s3660 + $0x29c] sm:$0xf]
    %v3829 = vld [vmem:[%s3660 + $0x2a0] sm:$0xf]
    %v3830 = vld [vmem:[%s3660 + $0x2a4] sm:$0xf]
    %v3831 = vld [vmem:[%s3660 + $0x2a8] sm:$0xf]
    %v3832 = vld [vmem:[%s3660 + $0x2ac] sm:$0xf]
    %v3833 = vld [vmem:[%s3660 + $0x2b0] sm:$0xf]
    %v3834 = vld [vmem:[%s3660 + $0x2b4] sm:$0xf]
    %v3835 = vld [vmem:[%s3660 + $0x2b8] sm:$0xf]
    %v3836 = vld [vmem:[%s3660 + $0x2bc] sm:$0xf]
    %v3837 = vld [vmem:[%s3660 + $0x2c0] sm:$0xf]
    %v3838 = vld [vmem:[%s3660 + $0x2c4] sm:$0xf]
    %v3839 = vld [vmem:[%s3660 + $0x2c8] sm:$0xf]
    %v3840 = vld [vmem:[%s3660 + $0x2cc] sm:$0xf]
    %v3841 = vld [vmem:[%s3660 + $0x2d0] sm:$0xf]
    %v3842 = vld [vmem:[%s3660 + $0x2d4] sm:$0xf]
    %v3843 = vld [vmem:[%s3660 + $0x2d8] sm:$0xf]
    %v3844 = vld [vmem:[%s3660 + $0x2dc] sm:$0xf]
    %v3845 = vld [vmem:[%s3660 + $0x2e0] sm:$0xf]
    %v3846 = vld [vmem:[%s3660 + $0x2e4] sm:$0xf]
    %v3847 = vld [vmem:[%s3660 + $0x2e8] sm:$0xf]
    %v3848 = vld [vmem:[%s3660 + $0x2ec] sm:$0xf]
    %v3849 = vld [vmem:[%s3660 + $0x2f0] sm:$0xf]
    %v3850 = vld [vmem:[%s3660 + $0x2f4] sm:$0xf]
    %v3851 = vld [vmem:[%s3660 + $0x2f8] sm:$0xf]
    %v3852 = vld [vmem:[%s3660 + $0x2fc] sm:$0xf]
    %v3853 = vld [vmem:[%s3660 + $0x300] sm:$0xf]
    %v3854 = vld [vmem:[%s3660 + $0x304] sm:$0xf]
    %v3855 = vld [vmem:[%s3660 + $0x308] sm:$0xf]
    %v3856 = vld [vmem:[%s3660 + $0x30c] sm:$0xf]
    %v3857 = vld [vmem:[%s3660 + $0x310] sm:$0xf]
    %v3858 = vld [vmem:[%s3660 + $0x314] sm:$0xf]
    %v3859 = vld [vmem:[%s3660 + $0x318] sm:$0xf]
    %v3860 = vld [vmem:[%s3660 + $0x31c] sm:$0xf]
    %v3861 = vld [vmem:[%s3660 + $0x320] sm:$0xf]
    %v3862 = vld [vmem:[%s3660 + $0x324] sm:$0xf]
    %v3863 = vld [vmem:[%s3660 + $0x328] sm:$0xf]
    %v3864 = vld [vmem:[%s3660 + $0x32c] sm:$0xf]
    %v3865 = vld [vmem:[%s3660 + $0x330] sm:$0xf]
    %v3866 = vld [vmem:[%s3660 + $0x334] sm:$0xf]
    %v3867 = vld [vmem:[%s3660 + $0x338] sm:$0xf]
    %v3868 = vld [vmem:[%s3660 + $0x33c] sm:$0xf]
    %v3869 = vld [vmem:[%s3660 + $0x340] sm:$0xf]
    %v3870 = vld [vmem:[%s3660 + $0x344] sm:$0xf]
    %v3871 = vld [vmem:[%s3660 + $0x348] sm:$0xf]
    %v3872 = vld [vmem:[%s3660 + $0x34c] sm:$0xf]
    %v3873 = vld [vmem:[%s3660 + $0x350] sm:$0xf]
    %v3874 = vld [vmem:[%s3660 + $0x354] sm:$0xf]
    %v3875 = vld [vmem:[%s3660 + $0x358] sm:$0xf]
    %v3876 = vld [vmem:[%s3660 + $0x35c] sm:$0xf]
    %v3877 = vld [vmem:[%s3660 + $0x360] sm:$0xf]
    %v3878 = vld [vmem:[%s3660 + $0x364] sm:$0xf]
    %v3879 = vld [vmem:[%s3660 + $0x368] sm:$0xf]
    %v3880 = vld [vmem:[%s3660 + $0x36c] sm:$0xf]
    %v3881 = vld [vmem:[%s3660 + $0x370] sm:$0xf]
    %v3882 = vld [vmem:[%s3660 + $0x374] sm:$0xf]
    %v3883 = vld [vmem:[%s3660 + $0x378] sm:$0xf]
    %v3884 = vld [vmem:[%s3660 + $0x37c] sm:$0xf]
    %v3885 = vld [vmem:[%s3660 + $0x380] sm:$0xf]
    %v3886 = vld [vmem:[%s3660 + $0x384] sm:$0xf]
    %v3887 = vld [vmem:[%s3660 + $0x388] sm:$0xf]
    %v3888 = vld [vmem:[%s3660 + $0x38c] sm:$0xf]
    %v3889 = vld [vmem:[%s3660 + $0x390] sm:$0xf]
    %v3890 = vld [vmem:[%s3660 + $0x394] sm:$0xf]
    %v3891 = vld [vmem:[%s3660 + $0x398] sm:$0xf]
    %v3892 = vld [vmem:[%s3660 + $0x39c] sm:$0xf]
    %v3893 = vld [vmem:[%s3660 + $0x3a0] sm:$0xf]
    %v3894 = vld [vmem:[%s3660 + $0x3a4] sm:$0xf]
    %v3895 = vld [vmem:[%s3660 + $0x3a8] sm:$0xf]
    %v3896 = vld [vmem:[%s3660 + $0x3ac] sm:$0xf]
    %v3897 = vld [vmem:[%s3660 + $0x3b0] sm:$0xf]
    %v3898 = vld [vmem:[%s3660 + $0x3b4] sm:$0xf]
    %v3899 = vld [vmem:[%s3660 + $0x3b8] sm:$0xf]
    %v3900 = vld [vmem:[%s3660 + $0x3bc] sm:$0xf]
    %v3901 = vld [vmem:[%s3660 + $0x3c0] sm:$0xf]
    %v3902 = vld [vmem:[%s3660 + $0x3c4] sm:$0xf]
    %v3903 = vld [vmem:[%s3660 + $0x3c8] sm:$0xf]
    %v3904 = vld [vmem:[%s3660 + $0x3cc] sm:$0xf]
    %v3905 = vld [vmem:[%s3660 + $0x3d0] sm:$0xf]
    %v3906 = vld [vmem:[%s3660 + $0x3d4] sm:$0xf]
    %v3907 = vld [vmem:[%s3660 + $0x3d8] sm:$0xf]
    %v3908 = vld [vmem:[%s3660 + $0x3dc] sm:$0xf]
    %v3909 = vld [vmem:[%s3660 + $0x3e0] sm:$0xf]
    %v3910 = vld [vmem:[%s3660 + $0x3e4] sm:$0xf]
    %v3911 = vld [vmem:[%s3660 + $0x3e8] sm:$0xf]
    %v3912 = vld [vmem:[%s3660 + $0x3ec] sm:$0xf]
    %v3913 = vld [vmem:[%s3660 + $0x3f0] sm:$0xf]
    %v3914 = vld [vmem:[%s3660 + $0x3f4] sm:$0xf]
    %v3915 = vld [vmem:[%s3660 + $0x3f8] sm:$0xf]
    %v3916 = vld [vmem:[%s3660 + $0x3fc] sm:$0xf]
    %s3917 = scalar_lea.vmem %s10, 1
    %v3918 = vld [vmem:[%s3917] sm:$0x1]
    %v3919 = vpack.c.bf16 %v3644, %v3628
    %v3920 = vpack.c.bf16 %v3645, %v3629
    %v3921 = vpack.c.bf16 %v3646, %v3630
    %v3922 = vpack.c.bf16 %v3647, %v3631
    %v3923 = vpack.c.bf16 %v3648, %v3632
    %v3924 = vpack.c.bf16 %v3649, %v3633
    %v3925 = vpack.c.bf16 %v3650, %v3634
    %v3926 = vpack.c.bf16 %v3651, %v3635
    %v3927 = vpack.c.bf16 %v3652, %v3636
    %v3928 = vpack.c.bf16 %v3653, %v3637
    %v3929 = vpack.c.bf16 %v3654, %v3638
    %v3930 = vpack.c.bf16 %v3655, %v3639
    %v3931 = vpack.c.bf16 %v3656, %v3640
    %v3932 = vpack.c.bf16 %v3657, %v3641
    %v3933 = vpack.c.bf16 %v3658, %v3642
    %v3934 = vpack.c.bf16 %v3659, %v3643
    %v3936 = vperm.slane %v3918, 0
    %v4194 = vunpack.c.l.b16 %v3661
    %v4195 = vunpack.c.l.b16 %v3662
    %v4196 = vunpack.c.l.b16 %v3663
    %v4197 = vunpack.c.l.b16 %v3664
    %v4198 = vunpack.c.l.b16 %v3665
    %v4199 = vunpack.c.l.b16 %v3666
    %v4200 = vunpack.c.l.b16 %v3667
    %v4201 = vunpack.c.l.b16 %v3668
    %v4202 = vunpack.c.l.b16 %v3669
    %v4203 = vunpack.c.l.b16 %v3670
    %v4204 = vunpack.c.l.b16 %v3671
    %v4205 = vunpack.c.l.b16 %v3672
    %v4206 = vunpack.c.l.b16 %v3673
    %v4207 = vunpack.c.l.b16 %v3674
    %v4208 = vunpack.c.l.b16 %v3675
    %v4209 = vunpack.c.l.b16 %v3676
    %v4210 = vunpack.c.l.b16 %v3677
    %v4211 = vunpack.c.l.b16 %v3678
    %v4212 = vunpack.c.l.b16 %v3679
    %v4213 = vunpack.c.l.b16 %v3680
    %v4214 = vunpack.c.l.b16 %v3681
    %v4215 = vunpack.c.l.b16 %v3682
    %v4216 = vunpack.c.l.b16 %v3683
    %v4217 = vunpack.c.l.b16 %v3684
    %v4218 = vunpack.c.l.b16 %v3685
    %v4219 = vunpack.c.l.b16 %v3686
    %v4220 = vunpack.c.l.b16 %v3687
    %v4221 = vunpack.c.l.b16 %v3688
    %v4222 = vunpack.c.l.b16 %v3689
    %v4223 = vunpack.c.l.b16 %v3690
    %v4224 = vunpack.c.l.b16 %v3691
    %v4225 = vunpack.c.l.b16 %v3692
    %v4226 = vunpack.c.l.b16 %v3693
    %v4227 = vunpack.c.l.b16 %v3694
    %v4228 = vunpack.c.l.b16 %v3695
    %v4229 = vunpack.c.l.b16 %v3696
    %v4230 = vunpack.c.l.b16 %v3697
    %v4231 = vunpack.c.l.b16 %v3698
    %v4232 = vunpack.c.l.b16 %v3699
    %v4233 = vunpack.c.l.b16 %v3700
    %v4234 = vunpack.c.l.b16 %v3701
    %v4235 = vunpack.c.l.b16 %v3702
    %v4236 = vunpack.c.l.b16 %v3703
    %v4237 = vunpack.c.l.b16 %v3704
    %v4238 = vunpack.c.l.b16 %v3705
    %v4239 = vunpack.c.l.b16 %v3706
    %v4240 = vunpack.c.l.b16 %v3707
    %v4241 = vunpack.c.l.b16 %v3708
    %v4242 = vunpack.c.l.b16 %v3709
    %v4243 = vunpack.c.l.b16 %v3710
    %v4244 = vunpack.c.l.b16 %v3711
    %v4245 = vunpack.c.l.b16 %v3712
    %v4246 = vunpack.c.l.b16 %v3713
    %v4247 = vunpack.c.l.b16 %v3714
    %v4248 = vunpack.c.l.b16 %v3715
    %v4249 = vunpack.c.l.b16 %v3716
    %v4250 = vunpack.c.l.b16 %v3717
    %v4251 = vunpack.c.l.b16 %v3718
    %v4252 = vunpack.c.l.b16 %v3719
    %v4253 = vunpack.c.l.b16 %v3720
    %v4254 = vunpack.c.l.b16 %v3721
    %v4255 = vunpack.c.l.b16 %v3722
    %v4256 = vunpack.c.l.b16 %v3723
    %v4257 = vunpack.c.l.b16 %v3724
    %v4258 = vunpack.c.l.b16 %v3725
    %v4259 = vunpack.c.l.b16 %v3726
    %v4260 = vunpack.c.l.b16 %v3727
    %v4261 = vunpack.c.l.b16 %v3728
    %v4262 = vunpack.c.l.b16 %v3729
    %v4263 = vunpack.c.l.b16 %v3730
    %v4264 = vunpack.c.l.b16 %v3731
    %v4265 = vunpack.c.l.b16 %v3732
    %v4266 = vunpack.c.l.b16 %v3733
    %v4267 = vunpack.c.l.b16 %v3734
    %v4268 = vunpack.c.l.b16 %v3735
    %v4269 = vunpack.c.l.b16 %v3736
    %v4270 = vunpack.c.l.b16 %v3737
    %v4271 = vunpack.c.l.b16 %v3738
    %v4272 = vunpack.c.l.b16 %v3739
    %v4273 = vunpack.c.l.b16 %v3740
    %v4274 = vunpack.c.l.b16 %v3741
    %v4275 = vunpack.c.l.b16 %v3742
    %v4276 = vunpack.c.l.b16 %v3743
    %v4277 = vunpack.c.l.b16 %v3744
    %v4278 = vunpack.c.l.b16 %v3745
    %v4279 = vunpack.c.l.b16 %v3746
    %v4280 = vunpack.c.l.b16 %v3747
    %v4281 = vunpack.c.l.b16 %v3748
    %v4282 = vunpack.c.l.b16 %v3749
    %v4283 = vunpack.c.l.b16 %v3750
    %v4284 = vunpack.c.l.b16 %v3751
    %v4285 = vunpack.c.l.b16 %v3752
    %v4286 = vunpack.c.l.b16 %v3753
    %v4287 = vunpack.c.l.b16 %v3754
    %v4288 = vunpack.c.l.b16 %v3755
    %v4289 = vunpack.c.l.b16 %v3756
    %v4290 = vunpack.c.l.b16 %v3757
    %v4291 = vunpack.c.l.b16 %v3758
    %v4292 = vunpack.c.l.b16 %v3759
    %v4293 = vunpack.c.l.b16 %v3760
    %v4294 = vunpack.c.l.b16 %v3761
    %v4295 = vunpack.c.l.b16 %v3762
    %v4296 = vunpack.c.l.b16 %v3763
    %v4297 = vunpack.c.l.b16 %v3764
    %v4298 = vunpack.c.l.b16 %v3765
    %v4299 = vunpack.c.l.b16 %v3766
    %v4300 = vunpack.c.l.b16 %v3767
    %v4301 = vunpack.c.l.b16 %v3768
    %v4302 = vunpack.c.l.b16 %v3769
    %v4303 = vunpack.c.l.b16 %v3770
    %v4304 = vunpack.c.l.b16 %v3771
    %v4305 = vunpack.c.l.b16 %v3772
    %v4306 = vunpack.c.l.b16 %v3773
    %v4307 = vunpack.c.l.b16 %v3774
    %v4308 = vunpack.c.l.b16 %v3775
    %v4309 = vunpack.c.l.b16 %v3776
    %v4310 = vunpack.c.l.b16 %v3777
    %v4311 = vunpack.c.l.b16 %v3778
    %v4312 = vunpack.c.l.b16 %v3779
    %v4313 = vunpack.c.l.b16 %v3780
    %v4314 = vunpack.c.l.b16 %v3781
    %v4315 = vunpack.c.l.b16 %v3782
    %v4316 = vunpack.c.l.b16 %v3783
    %v4317 = vunpack.c.l.b16 %v3784
    %v4318 = vunpack.c.l.b16 %v3785
    %v4319 = vunpack.c.l.b16 %v3786
    %v4320 = vunpack.c.l.b16 %v3787
    %v4321 = vunpack.c.l.b16 %v3788
    %v4322 = vunpack.c.l.b16 %v3789
    %v4323 = vunpack.c.l.b16 %v3790
    %v4324 = vunpack.c.l.b16 %v3791
    %v4325 = vunpack.c.l.b16 %v3792
    %v4326 = vunpack.c.l.b16 %v3793
    %v4327 = vunpack.c.l.b16 %v3794
    %v4328 = vunpack.c.l.b16 %v3795
    %v4329 = vunpack.c.l.b16 %v3796
    %v4330 = vunpack.c.l.b16 %v3797
    %v4331 = vunpack.c.l.b16 %v3798
    %v4332 = vunpack.c.l.b16 %v3799
    %v4333 = vunpack.c.l.b16 %v3800
    %v4334 = vunpack.c.l.b16 %v3801
    %v4335 = vunpack.c.l.b16 %v3802
    %v4336 = vunpack.c.l.b16 %v3803
    %v4337 = vunpack.c.l.b16 %v3804
    %v4338 = vunpack.c.l.b16 %v3805
    %v4339 = vunpack.c.l.b16 %v3806
    %v4340 = vunpack.c.l.b16 %v3807
    %v4341 = vunpack.c.l.b16 %v3808
    %v4342 = vunpack.c.l.b16 %v3809
    %v4343 = vunpack.c.l.b16 %v3810
    %v4344 = vunpack.c.l.b16 %v3811
    %v4345 = vunpack.c.l.b16 %v3812
    %v4346 = vunpack.c.l.b16 %v3813
    %v4347 = vunpack.c.l.b16 %v3814
    %v4348 = vunpack.c.l.b16 %v3815
    %v4349 = vunpack.c.l.b16 %v3816
    %v4350 = vunpack.c.l.b16 %v3817
    %v4351 = vunpack.c.l.b16 %v3818
    %v4352 = vunpack.c.l.b16 %v3819
    %v4353 = vunpack.c.l.b16 %v3820
    %v4354 = vunpack.c.l.b16 %v3821
    %v4355 = vunpack.c.l.b16 %v3822
    %v4356 = vunpack.c.l.b16 %v3823
    %v4357 = vunpack.c.l.b16 %v3824
    %v4358 = vunpack.c.l.b16 %v3825
    %v4359 = vunpack.c.l.b16 %v3826
    %v4360 = vunpack.c.l.b16 %v3827
    %v4361 = vunpack.c.l.b16 %v3828
    %v4362 = vunpack.c.l.b16 %v3829
    %v4363 = vunpack.c.l.b16 %v3830
    %v4364 = vunpack.c.l.b16 %v3831
    %v4365 = vunpack.c.l.b16 %v3832
    %v4366 = vunpack.c.l.b16 %v3833
    %v4367 = vunpack.c.l.b16 %v3834
    %v4368 = vunpack.c.l.b16 %v3835
    %v4369 = vunpack.c.l.b16 %v3836
    %v4370 = vunpack.c.l.b16 %v3837
    %v4371 = vunpack.c.l.b16 %v3838
    %v4372 = vunpack.c.l.b16 %v3839
    %v4373 = vunpack.c.l.b16 %v3840
    %v4374 = vunpack.c.l.b16 %v3841
    %v4375 = vunpack.c.l.b16 %v3842
    %v4376 = vunpack.c.l.b16 %v3843
    %v4377 = vunpack.c.l.b16 %v3844
    %v4378 = vunpack.c.l.b16 %v3845
    %v4379 = vunpack.c.l.b16 %v3846
    %v4380 = vunpack.c.l.b16 %v3847
    %v4381 = vunpack.c.l.b16 %v3848
    %v4382 = vunpack.c.l.b16 %v3849
    %v4383 = vunpack.c.l.b16 %v3850
    %v4384 = vunpack.c.l.b16 %v3851
    %v4385 = vunpack.c.l.b16 %v3852
    %v4386 = vunpack.c.l.b16 %v3853
    %v4387 = vunpack.c.l.b16 %v3854
    %v4388 = vunpack.c.l.b16 %v3855
    %v4389 = vunpack.c.l.b16 %v3856
    %v4390 = vunpack.c.l.b16 %v3857
    %v4391 = vunpack.c.l.b16 %v3858
    %v4392 = vunpack.c.l.b16 %v3859
    %v4393 = vunpack.c.l.b16 %v3860
    %v4394 = vunpack.c.l.b16 %v3861
    %v4395 = vunpack.c.l.b16 %v3862
    %v4396 = vunpack.c.l.b16 %v3863
    %v4397 = vunpack.c.l.b16 %v3864
    %v4398 = vunpack.c.l.b16 %v3865
    %v4399 = vunpack.c.l.b16 %v3866
    %v4400 = vunpack.c.l.b16 %v3867
    %v4401 = vunpack.c.l.b16 %v3868
    %v4402 = vunpack.c.l.b16 %v3869
    %v4403 = vunpack.c.l.b16 %v3870
    %v4404 = vunpack.c.l.b16 %v3871
    %v4405 = vunpack.c.l.b16 %v3872
    %v4406 = vunpack.c.l.b16 %v3873
    %v4407 = vunpack.c.l.b16 %v3874
    %v4408 = vunpack.c.l.b16 %v3875
    %v4409 = vunpack.c.l.b16 %v3876
    %v4410 = vunpack.c.l.b16 %v3877
    %v4411 = vunpack.c.l.b16 %v3878
    %v4412 = vunpack.c.l.b16 %v3879
    %v4413 = vunpack.c.l.b16 %v3880
    %v4414 = vunpack.c.l.b16 %v3881
    %v4415 = vunpack.c.l.b16 %v3882
    %v4416 = vunpack.c.l.b16 %v3883
    %v4417 = vunpack.c.l.b16 %v3884
    %v4418 = vunpack.c.l.b16 %v3885
    %v4419 = vunpack.c.l.b16 %v3886
    %v4420 = vunpack.c.l.b16 %v3887
    %v4421 = vunpack.c.l.b16 %v3888
    %v4422 = vunpack.c.l.b16 %v3889
    %v4423 = vunpack.c.l.b16 %v3890
    %v4424 = vunpack.c.l.b16 %v3891
    %v4425 = vunpack.c.l.b16 %v3892
    %v4426 = vunpack.c.l.b16 %v3893
    %v4427 = vunpack.c.l.b16 %v3894
    %v4428 = vunpack.c.l.b16 %v3895
    %v4429 = vunpack.c.l.b16 %v3896
    %v4430 = vunpack.c.l.b16 %v3897
    %v4431 = vunpack.c.l.b16 %v3898
    %v4432 = vunpack.c.l.b16 %v3899
    %v4433 = vunpack.c.l.b16 %v3900
    %v4434 = vunpack.c.l.b16 %v3901
    %v4435 = vunpack.c.l.b16 %v3902
    %v4436 = vunpack.c.l.b16 %v3903
    %v4437 = vunpack.c.l.b16 %v3904
    %v4438 = vunpack.c.l.b16 %v3905
    %v4439 = vunpack.c.l.b16 %v3906
    %v4440 = vunpack.c.l.b16 %v3907
    %v4441 = vunpack.c.l.b16 %v3908
    %v4442 = vunpack.c.l.b16 %v3909
    %v4443 = vunpack.c.l.b16 %v3910
    %v4444 = vunpack.c.l.b16 %v3911
    %v4445 = vunpack.c.l.b16 %v3912
    %v4446 = vunpack.c.l.b16 %v3913
    %v4447 = vunpack.c.l.b16 %v3914
    %v4448 = vunpack.c.l.b16 %v3915
    %v4449 = vunpack.c.l.b16 %v3916
    %v4450 = vpack.c.b16 %v4195, %v4194
    %v4451 = vpack.c.b16 %v4197, %v4196
    %v4452 = vpack.c.b16 %v4199, %v4198
    %v4453 = vpack.c.b16 %v4201, %v4200
    %v4454 = vpack.c.b16 %v4203, %v4202
    %v4455 = vpack.c.b16 %v4205, %v4204
    %v4456 = vpack.c.b16 %v4207, %v4206
    %v4457 = vpack.c.b16 %v4209, %v4208
    %v4458 = vpack.c.b16 %v4211, %v4210
    %v4459 = vpack.c.b16 %v4213, %v4212
    %v4460 = vpack.c.b16 %v4215, %v4214
    %v4461 = vpack.c.b16 %v4217, %v4216
    %v4462 = vpack.c.b16 %v4219, %v4218
    %v4463 = vpack.c.b16 %v4221, %v4220
    %v4464 = vpack.c.b16 %v4223, %v4222
    %v4465 = vpack.c.b16 %v4225, %v4224
    %v4466 = vpack.c.b16 %v4227, %v4226
    %v4467 = vpack.c.b16 %v4229, %v4228
    %v4468 = vpack.c.b16 %v4231, %v4230
    %v4469 = vpack.c.b16 %v4233, %v4232
    %v4470 = vpack.c.b16 %v4235, %v4234
    %v4471 = vpack.c.b16 %v4237, %v4236
    %v4472 = vpack.c.b16 %v4239, %v4238
    %v4473 = vpack.c.b16 %v4241, %v4240
    %v4474 = vpack.c.b16 %v4243, %v4242
    %v4475 = vpack.c.b16 %v4245, %v4244
    %v4476 = vpack.c.b16 %v4247, %v4246
    %v4477 = vpack.c.b16 %v4249, %v4248
    %v4478 = vpack.c.b16 %v4251, %v4250
    %v4479 = vpack.c.b16 %v4253, %v4252
    %v4480 = vpack.c.b16 %v4255, %v4254
    %v4481 = vpack.c.b16 %v4257, %v4256
    %v4482 = vpack.c.b16 %v4259, %v4258
    %v4483 = vpack.c.b16 %v4261, %v4260
    %v4484 = vpack.c.b16 %v4263, %v4262
    %v4485 = vpack.c.b16 %v4265, %v4264
    %v4486 = vpack.c.b16 %v4267, %v4266
    %v4487 = vpack.c.b16 %v4269, %v4268
    %v4488 = vpack.c.b16 %v4271, %v4270
    %v4489 = vpack.c.b16 %v4273, %v4272
    %v4490 = vpack.c.b16 %v4275, %v4274
    %v4491 = vpack.c.b16 %v4277, %v4276
    %v4492 = vpack.c.b16 %v4279, %v4278
    %v4493 = vpack.c.b16 %v4281, %v4280
    %v4494 = vpack.c.b16 %v4283, %v4282
    %v4495 = vpack.c.b16 %v4285, %v4284
    %v4496 = vpack.c.b16 %v4287, %v4286
    %v4497 = vpack.c.b16 %v4289, %v4288
    %v4498 = vpack.c.b16 %v4291, %v4290
    %v4499 = vpack.c.b16 %v4293, %v4292
    %v4500 = vpack.c.b16 %v4295, %v4294
    %v4501 = vpack.c.b16 %v4297, %v4296
    %v4502 = vpack.c.b16 %v4299, %v4298
    %v4503 = vpack.c.b16 %v4301, %v4300
    %v4504 = vpack.c.b16 %v4303, %v4302
    %v4505 = vpack.c.b16 %v4305, %v4304
    %v4506 = vpack.c.b16 %v4307, %v4306
    %v4507 = vpack.c.b16 %v4309, %v4308
    %v4508 = vpack.c.b16 %v4311, %v4310
    %v4509 = vpack.c.b16 %v4313, %v4312
    %v4510 = vpack.c.b16 %v4315, %v4314
    %v4511 = vpack.c.b16 %v4317, %v4316
    %v4512 = vpack.c.b16 %v4319, %v4318
    %v4513 = vpack.c.b16 %v4321, %v4320
    %v4514 = vpack.c.b16 %v4323, %v4322
    %v4515 = vpack.c.b16 %v4325, %v4324
    %v4516 = vpack.c.b16 %v4327, %v4326
    %v4517 = vpack.c.b16 %v4329, %v4328
    %v4518 = vpack.c.b16 %v4331, %v4330
    %v4519 = vpack.c.b16 %v4333, %v4332
    %v4520 = vpack.c.b16 %v4335, %v4334
    %v4521 = vpack.c.b16 %v4337, %v4336
    %v4522 = vpack.c.b16 %v4339, %v4338
    %v4523 = vpack.c.b16 %v4341, %v4340
    %v4524 = vpack.c.b16 %v4343, %v4342
    %v4525 = vpack.c.b16 %v4345, %v4344
    %v4526 = vpack.c.b16 %v4347, %v4346
    %v4527 = vpack.c.b16 %v4349, %v4348
    %v4528 = vpack.c.b16 %v4351, %v4350
    %v4529 = vpack.c.b16 %v4353, %v4352
    %v4530 = vpack.c.b16 %v4355, %v4354
    %v4531 = vpack.c.b16 %v4357, %v4356
    %v4532 = vpack.c.b16 %v4359, %v4358
    %v4533 = vpack.c.b16 %v4361, %v4360
    %v4534 = vpack.c.b16 %v4363, %v4362
    %v4535 = vpack.c.b16 %v4365, %v4364
    %v4536 = vpack.c.b16 %v4367, %v4366
    %v4537 = vpack.c.b16 %v4369, %v4368
    %v4538 = vpack.c.b16 %v4371, %v4370
    %v4539 = vpack.c.b16 %v4373, %v4372
    %v4540 = vpack.c.b16 %v4375, %v4374
    %v4541 = vpack.c.b16 %v4377, %v4376
    %v4542 = vpack.c.b16 %v4379, %v4378
    %v4543 = vpack.c.b16 %v4381, %v4380
    %v4544 = vpack.c.b16 %v4383, %v4382
    %v4545 = vpack.c.b16 %v4385, %v4384
    %v4546 = vpack.c.b16 %v4387, %v4386
    %v4547 = vpack.c.b16 %v4389, %v4388
    %v4548 = vpack.c.b16 %v4391, %v4390
    %v4549 = vpack.c.b16 %v4393, %v4392
    %v4550 = vpack.c.b16 %v4395, %v4394
    %v4551 = vpack.c.b16 %v4397, %v4396
    %v4552 = vpack.c.b16 %v4399, %v4398
    %v4553 = vpack.c.b16 %v4401, %v4400
    %v4554 = vpack.c.b16 %v4403, %v4402
    %v4555 = vpack.c.b16 %v4405, %v4404
    %v4556 = vpack.c.b16 %v4407, %v4406
    %v4557 = vpack.c.b16 %v4409, %v4408
    %v4558 = vpack.c.b16 %v4411, %v4410
    %v4559 = vpack.c.b16 %v4413, %v4412
    %v4560 = vpack.c.b16 %v4415, %v4414
    %v4561 = vpack.c.b16 %v4417, %v4416
    %v4562 = vpack.c.b16 %v4419, %v4418
    %v4563 = vpack.c.b16 %v4421, %v4420
    %v4564 = vpack.c.b16 %v4423, %v4422
    %v4565 = vpack.c.b16 %v4425, %v4424
    %v4566 = vpack.c.b16 %v4427, %v4426
    %v4567 = vpack.c.b16 %v4429, %v4428
    %v4568 = vpack.c.b16 %v4431, %v4430
    %v4569 = vpack.c.b16 %v4433, %v4432
    %v4570 = vpack.c.b16 %v4435, %v4434
    %v4571 = vpack.c.b16 %v4437, %v4436
    %v4572 = vpack.c.b16 %v4439, %v4438
    %v4573 = vpack.c.b16 %v4441, %v4440
    %v4574 = vpack.c.b16 %v4443, %v4442
    %v4575 = vpack.c.b16 %v4445, %v4444
    %v4576 = vpack.c.b16 %v4447, %v4446
    %v4577 = vpack.c.b16 %v4449, %v4448
    %4706 = vmatpush.bf16.msra.mxu0 %v4457
    %4707 = vmatpush.bf16.msra.mxu0 %v4456
    %4708 = vmatpush.bf16.msra.mxu0 %v4455
    %4709 = vmatpush.bf16.msra.mxu0 %v4454
    %4710 = vmatpush.bf16.msra.mxu0 %v4453
    %4711 = vmatpush.bf16.msra.mxu0 %v4452
    %4712 = vmatpush.bf16.msra.mxu0 %v4451
    %4713 = vmatpush.bf16.msra.mxu0 %v4450
    %4714 = vmatmul.bf16.gmra.mxu0 %v3919
    %v4715 = vpop.f32.mrf.mxu0
    %v4716 = vadd.f32 %v3936, %v4715
    %v4717 = vpop.f32.mrf.mxu0
    %v4718 = vadd.f32 %v3936, %v4717
    %4719 = vdwg.mxu0
    %4720 = vmatpush.bf16.msra.mxu0 %v4465
    %4721 = vmatpush.bf16.msra.mxu0 %v4464
    %4722 = vmatpush.bf16.msra.mxu0 %v4463
    %4723 = vmatpush.bf16.msra.mxu0 %v4462
    %4724 = vmatpush.bf16.msra.mxu0 %v4461
    %4725 = vmatpush.bf16.msra.mxu0 %v4460
    %4726 = vmatpush.bf16.msra.mxu0 %v4459
    %4727 = vmatpush.bf16.msra.mxu0 %v4458
    %4728 = vmatmul.bf16.gmra.mxu0 %v3920
    %v4729 = vpop.f32.mrf.mxu0
    %v4730 = vadd.f32 %v4716, %v4729
    %v4731 = vpop.f32.mrf.mxu0
    %v4732 = vadd.f32 %v4718, %v4731
    %4733 = vdwg.mxu0
    %4734 = vmatpush.bf16.msra.mxu0 %v4473
    %4735 = vmatpush.bf16.msra.mxu0 %v4472
    %4736 = vmatpush.bf16.msra.mxu0 %v4471
    %4737 = vmatpush.bf16.msra.mxu0 %v4470
    %4738 = vmatpush.bf16.msra.mxu0 %v4469
    %4739 = vmatpush.bf16.msra.mxu0 %v4468
    %4740 = vmatpush.bf16.msra.mxu0 %v4467
    %4741 = vmatpush.bf16.msra.mxu0 %v4466
    %4742 = vmatmul.bf16.gmra.mxu0 %v3921
    %v4743 = vpop.f32.mrf.mxu0
    %v4744 = vadd.f32 %v4730, %v4743
    %v4745 = vpop.f32.mrf.mxu0
    %v4746 = vadd.f32 %v4732, %v4745
    %4747 = vdwg.mxu0
    %4748 = vmatpush.bf16.msra.mxu0 %v4481
    %4749 = vmatpush.bf16.msra.mxu0 %v4480
    %4750 = vmatpush.bf16.msra.mxu0 %v4479
    %4751 = vmatpush.bf16.msra.mxu0 %v4478
    %4752 = vmatpush.bf16.msra.mxu0 %v4477
    %4753 = vmatpush.bf16.msra.mxu0 %v4476
    %4754 = vmatpush.bf16.msra.mxu0 %v4475
    %4755 = vmatpush.bf16.msra.mxu0 %v4474
    %4756 = vmatmul.bf16.gmra.mxu0 %v3922
    %v4757 = vpop.f32.mrf.mxu0
    %v4758 = vadd.f32 %v4744, %v4757
    %v4759 = vpop.f32.mrf.mxu0
    %v4760 = vadd.f32 %v4746, %v4759
    %4761 = vdwg.mxu0
    %4762 = vmatpush.bf16.msra.mxu0 %v4489
    %4763 = vmatpush.bf16.msra.mxu0 %v4488
    %4764 = vmatpush.bf16.msra.mxu0 %v4487
    %4765 = vmatpush.bf16.msra.mxu0 %v4486
    %4766 = vmatpush.bf16.msra.mxu0 %v4485
    %4767 = vmatpush.bf16.msra.mxu0 %v4484
    %4768 = vmatpush.bf16.msra.mxu0 %v4483
    %4769 = vmatpush.bf16.msra.mxu0 %v4482
    %4770 = vmatmul.bf16.gmra.mxu0 %v3923
    %v4771 = vpop.f32.mrf.mxu0
    %v4772 = vadd.f32 %v4758, %v4771
    %v4773 = vpop.f32.mrf.mxu0
    %v4774 = vadd.f32 %v4760, %v4773
    %4775 = vdwg.mxu0
    %4776 = vmatpush.bf16.msra.mxu0 %v4497
    %4777 = vmatpush.bf16.msra.mxu0 %v4496
    %4778 = vmatpush.bf16.msra.mxu0 %v4495
    %4779 = vmatpush.bf16.msra.mxu0 %v4494
    %4780 = vmatpush.bf16.msra.mxu0 %v4493
    %4781 = vmatpush.bf16.msra.mxu0 %v4492
    %4782 = vmatpush.bf16.msra.mxu0 %v4491
    %4783 = vmatpush.bf16.msra.mxu0 %v4490
    %4784 = vmatmul.bf16.gmra.mxu0 %v3924
    %v4785 = vpop.f32.mrf.mxu0
    %v4786 = vadd.f32 %v4772, %v4785
    %v4787 = vpop.f32.mrf.mxu0
    %v4788 = vadd.f32 %v4774, %v4787
    %4789 = vdwg.mxu0
    %4790 = vmatpush.bf16.msra.mxu0 %v4505
    %4791 = vmatpush.bf16.msra.mxu0 %v4504
    %4792 = vmatpush.bf16.msra.mxu0 %v4503
    %4793 = vmatpush.bf16.msra.mxu0 %v4502
    %4794 = vmatpush.bf16.msra.mxu0 %v4501
    %4795 = vmatpush.bf16.msra.mxu0 %v4500
    %4796 = vmatpush.bf16.msra.mxu0 %v4499
    %4797 = vmatpush.bf16.msra.mxu0 %v4498
    %4798 = vmatmul.bf16.gmra.mxu0 %v3925
    %v4799 = vpop.f32.mrf.mxu0
    %v4800 = vadd.f32 %v4786, %v4799
    %v4801 = vpop.f32.mrf.mxu0
    %v4802 = vadd.f32 %v4788, %v4801
    %4803 = vdwg.mxu0
    %4804 = vmatpush.bf16.msra.mxu0 %v4513
    %4805 = vmatpush.bf16.msra.mxu0 %v4512
    %4806 = vmatpush.bf16.msra.mxu0 %v4511
    %4807 = vmatpush.bf16.msra.mxu0 %v4510
    %4808 = vmatpush.bf16.msra.mxu0 %v4509
    %4809 = vmatpush.bf16.msra.mxu0 %v4508
    %4810 = vmatpush.bf16.msra.mxu0 %v4507
    %4811 = vmatpush.bf16.msra.mxu0 %v4506
    %4812 = vmatmul.bf16.gmra.mxu0 %v3926
    %v4813 = vpop.f32.mrf.mxu0
    %v4814 = vadd.f32 %v4800, %v4813
    %v4815 = vpop.f32.mrf.mxu0
    %v4816 = vadd.f32 %v4802, %v4815
    %4817 = vdwg.mxu0
    %4818 = vmatpush.bf16.msra.mxu0 %v4521
    %4819 = vmatpush.bf16.msra.mxu0 %v4520
    %4820 = vmatpush.bf16.msra.mxu0 %v4519
    %4821 = vmatpush.bf16.msra.mxu0 %v4518
    %4822 = vmatpush.bf16.msra.mxu0 %v4517
    %4823 = vmatpush.bf16.msra.mxu0 %v4516
    %4824 = vmatpush.bf16.msra.mxu0 %v4515
    %4825 = vmatpush.bf16.msra.mxu0 %v4514
    %4826 = vmatmul.bf16.gmra.mxu0 %v3927
    %v4827 = vpop.f32.mrf.mxu0
    %v4828 = vadd.f32 %v4814, %v4827
    %v4829 = vpop.f32.mrf.mxu0
    %v4830 = vadd.f32 %v4816, %v4829
    %4831 = vdwg.mxu0
    %4832 = vmatpush.bf16.msra.mxu0 %v4529
    %4833 = vmatpush.bf16.msra.mxu0 %v4528
    %4834 = vmatpush.bf16.msra.mxu0 %v4527
    %4835 = vmatpush.bf16.msra.mxu0 %v4526
    %4836 = vmatpush.bf16.msra.mxu0 %v4525
    %4837 = vmatpush.bf16.msra.mxu0 %v4524
    %4838 = vmatpush.bf16.msra.mxu0 %v4523
    %4839 = vmatpush.bf16.msra.mxu0 %v4522
    %4840 = vmatmul.bf16.gmra.mxu0 %v3928
    %v4841 = vpop.f32.mrf.mxu0
    %v4842 = vadd.f32 %v4828, %v4841
    %v4843 = vpop.f32.mrf.mxu0
    %v4844 = vadd.f32 %v4830, %v4843
    %4845 = vdwg.mxu0
    %4846 = vmatpush.bf16.msra.mxu0 %v4537
    %4847 = vmatpush.bf16.msra.mxu0 %v4536
    %4848 = vmatpush.bf16.msra.mxu0 %v4535
    %4849 = vmatpush.bf16.msra.mxu0 %v4534
    %4850 = vmatpush.bf16.msra.mxu0 %v4533
    %4851 = vmatpush.bf16.msra.mxu0 %v4532
    %4852 = vmatpush.bf16.msra.mxu0 %v4531
    %4853 = vmatpush.bf16.msra.mxu0 %v4530
    %4854 = vmatmul.bf16.gmra.mxu0 %v3929
    %v4855 = vpop.f32.mrf.mxu0
    %v4856 = vadd.f32 %v4842, %v4855
    %v4857 = vpop.f32.mrf.mxu0
    %v4858 = vadd.f32 %v4844, %v4857
    %4859 = vdwg.mxu0
    %4860 = vmatpush.bf16.msra.mxu0 %v4545
    %4861 = vmatpush.bf16.msra.mxu0 %v4544
    %4862 = vmatpush.bf16.msra.mxu0 %v4543
    %4863 = vmatpush.bf16.msra.mxu0 %v4542
    %4864 = vmatpush.bf16.msra.mxu0 %v4541
    %4865 = vmatpush.bf16.msra.mxu0 %v4540
    %4866 = vmatpush.bf16.msra.mxu0 %v4539
    %4867 = vmatpush.bf16.msra.mxu0 %v4538
    %4868 = vmatmul.bf16.gmra.mxu0 %v3930
    %v4869 = vpop.f32.mrf.mxu0
    %v4870 = vadd.f32 %v4856, %v4869
    %v4871 = vpop.f32.mrf.mxu0
    %v4872 = vadd.f32 %v4858, %v4871
    %4873 = vdwg.mxu0
    %4874 = vmatpush.bf16.msra.mxu0 %v4553
    %4875 = vmatpush.bf16.msra.mxu0 %v4552
    %4876 = vmatpush.bf16.msra.mxu0 %v4551
    %4877 = vmatpush.bf16.msra.mxu0 %v4550
    %4878 = vmatpush.bf16.msra.mxu0 %v4549
    %4879 = vmatpush.bf16.msra.mxu0 %v4548
    %4880 = vmatpush.bf16.msra.mxu0 %v4547
    %4881 = vmatpush.bf16.msra.mxu0 %v4546
    %4882 = vmatmul.bf16.gmra.mxu0 %v3931
    %v4883 = vpop.f32.mrf.mxu0
    %v4884 = vadd.f32 %v4870, %v4883
    %v4885 = vpop.f32.mrf.mxu0
    %v4886 = vadd.f32 %v4872, %v4885
    %4887 = vdwg.mxu0
    %4888 = vmatpush.bf16.msra.mxu0 %v4561
    %4889 = vmatpush.bf16.msra.mxu0 %v4560
    %4890 = vmatpush.bf16.msra.mxu0 %v4559
    %4891 = vmatpush.bf16.msra.mxu0 %v4558
    %4892 = vmatpush.bf16.msra.mxu0 %v4557
    %4893 = vmatpush.bf16.msra.mxu0 %v4556
    %4894 = vmatpush.bf16.msra.mxu0 %v4555
    %4895 = vmatpush.bf16.msra.mxu0 %v4554
    %4896 = vmatmul.bf16.gmra.mxu0 %v3932
    %v4897 = vpop.f32.mrf.mxu0
    %v4898 = vadd.f32 %v4884, %v4897
    %v4899 = vpop.f32.mrf.mxu0
    %v4900 = vadd.f32 %v4886, %v4899
    %4901 = vdwg.mxu0
    %4902 = vmatpush.bf16.msra.mxu0 %v4569
    %4903 = vmatpush.bf16.msra.mxu0 %v4568
    %4904 = vmatpush.bf16.msra.mxu0 %v4567
    %4905 = vmatpush.bf16.msra.mxu0 %v4566
    %4906 = vmatpush.bf16.msra.mxu0 %v4565
    %4907 = vmatpush.bf16.msra.mxu0 %v4564
    %4908 = vmatpush.bf16.msra.mxu0 %v4563
    %4909 = vmatpush.bf16.msra.mxu0 %v4562
    %4910 = vmatmul.bf16.gmra.mxu0 %v3933
    %v4911 = vpop.f32.mrf.mxu0
    %v4912 = vadd.f32 %v4898, %v4911
    %v4913 = vpop.f32.mrf.mxu0
    %v4914 = vadd.f32 %v4900, %v4913
    %4915 = vdwg.mxu0
    %4916 = vmatpush.bf16.msra.mxu0 %v4577
    %4917 = vmatpush.bf16.msra.mxu0 %v4576
    %4918 = vmatpush.bf16.msra.mxu0 %v4575
    %4919 = vmatpush.bf16.msra.mxu0 %v4574
    %4920 = vmatpush.bf16.msra.mxu0 %v4573
    %4921 = vmatpush.bf16.msra.mxu0 %v4572
    %4922 = vmatpush.bf16.msra.mxu0 %v4571
    %4923 = vmatpush.bf16.msra.mxu0 %v4570
    %4924 = vmatmul.bf16.gmra.mxu0 %v3934
    %v4925 = vpop.f32.mrf.mxu0
    %v4926 = vadd.f32 %v4912, %v4925
    %v4927 = vpop.f32.mrf.mxu0
    %v4928 = vadd.f32 %v4914, %v4927
    %4929 = vdwg.mxu0
    %s4930 = scalar_lea.vmem %s13, 1
    %v4931 = vld [vmem:[%s4930] sm:$0x1]
    %s4932 = scalar_lea.vmem %s14, 1
    %v4933 = vld [vmem:[%s4932] sm:$0x1]
    %v4934 = vadd.f32 %v3168, %v4926
    %v4935 = vadd.f32 %v3169, %v4928
    %v4936 = vsel %vm81, %v4934, 0.0
    %4937 = vadd.xlane.f32.xlu0 %v4936
    %v4938 = vpop.xlane.xlu0 %4937
    %v4939 = vsel %vm81, %v4935, 0.0
    %4940 = vadd.xlane.f32.xlu0 %v4939
    %v4941 = vpop.xlane.xlu0 %4940
    %v4942 = vmul.f32 %v4938, %v681
    %v4943 = vmul.f32 %v4941, %v681
    %v4944 = vsub.f32 %v4934, %v4942
    %v4945 = vsub.f32 %v4935, %v4943
    %v4946 = vmul.f32 %v4944, %v4944
    %v4947 = vmul.f32 %v4945, %v4945
    %v4948 = vsel %vm81, %v4946, 0.0
    %4949 = vadd.xlane.f32.xlu0 %v4948
    %v4950 = vpop.xlane.xlu0 %4949
    %v4951 = vsel %vm81, %v4947, 0.0
    %4952 = vadd.xlane.f32.xlu0 %v4951
    %v4953 = vpop.xlane.xlu0 %4952
    %v4954 = vmul.f32 %v4950, %v681
    %v4955 = vmul.f32 %v4953, %v681
    %v4956 = vadd.f32 %v4954, 1e-05
    %v4957 = vadd.f32 %v4955, 1e-05
    %v4958 = vrsqrt.pop %v4956
    %v4959 = vmul.f32 %v4958, %v4956
    %v4960 = vmul.f32 %v4959, %v4958
    %v4961 = vmul.f32 0.5, %v4960
    %v4962 = vsub.f32 1.5, %v4961
    %v4963 = vmul.f32 %v4958, %v4962
    %vm4964 = vweird.f32 %v4956
    %vm4965 = vweird.f32 %v4958
    %vm4966 = vmor %vm4964, %vm4965
    %v4967 = vsel %vm4966, %v4958, %v4963
    %v4968 = vrsqrt.pop %v4957
    %v4969 = vmul.f32 %v4968, %v4957
    %v4970 = vmul.f32 %v4969, %v4968
    %v4971 = vmul.f32 0.5, %v4970
    %v4972 = vsub.f32 1.5, %v4971
    %v4973 = vmul.f32 %v4968, %v4972
    %vm4974 = vweird.f32 %v4957
    %vm4975 = vweird.f32 %v4968
    %vm4976 = vmor %vm4974, %vm4975
    %v4977 = vsel %vm4976, %v4968, %v4973
    %v4978 = vmul.f32 %v4944, %v4967
    %v4979 = vmul.f32 %v4945, %v4977
    %v4981 = vperm.slane %v4931, 0
    %v4983 = vmul.f32 %v4978, %v4981
    %v4984 = vmul.f32 %v4979, %v4981
    %v4986 = vperm.slane %v4933, 0
    %v4988 = vadd.f32 %v4983, %v4986
    %v4989 = vadd.f32 %v4984, %v4986
    %v4990 = vadd.f32 %v4988, 0.0
    %v4991 = vadd.f32 %v4990, %v4989
    %v4992 = vmul.f32 %v4991, 0.5
    %v4993 = vld [vmem:[%s15] sm:$0xf]
    %v4994 = vld [vmem:[%s15 + $0x4] sm:$0xf]
    %v4995 = vld [vmem:[%s15 + $0x8] sm:$0xf]
    %v4996 = vld [vmem:[%s15 + $0xc] sm:$0xf]
    %v4997 = vld [vmem:[%s16] sm:$0x1]
    %v4998 = vpack.c.bf16 %v4992, %v4992
    %v5000 = vperm.slane %v4997, 0
    %v5006 = vunpack.c.l.b16 %v4993
    %v5007 = vunpack.c.l.b16 %v4994
    %v5008 = vunpack.c.l.b16 %v4995
    %v5009 = vunpack.c.l.b16 %v4996
    %v5010 = vpack.c.b16 %v5007, %v5006
    %v5011 = vpack.c.b16 %v5009, %v5008
    %v5015 = vsel %vm81, %v4998, 0
    %5017 = vmatpush.bf16.msra.mxu0 0
    %5018 = vmatpush.bf16.msra.mxu0 0
    %5019 = vmatpush.bf16.msra.mxu0 0
    %5020 = vmatpush.bf16.msra.mxu0 0
    %5021 = vmatpush.bf16.msra.mxu0 0
    %5022 = vmatpush.bf16.msra.mxu0 0
    %5023 = vmatpush.bf16.msra.mxu0 %v5011
    %5024 = vmatpush.bf16.msra.mxu0 %v5010
    %5025 = vmatmul.bf16.gmra.mxu0 %v5015
    %v5026 = vpop.f32.mrf.mxu0
    %v5027 = vadd.f32 %v5000, %v5026
    %v5028 = vpop.f32.mrf.mxu0
    %5029 = vdwg.mxu0
    %5030 = vst [vmem:[#allocation2] sm:$0xff] %v5027
    // Predicated region
    $region70: #{transformer_forward.1} parent=1 // pred_check
      _
    $region71: #{transformer_forward.1} parent=1 // pred_check_branch
      %5032 = sbr.rel (0) target = $region73
    $region72: #{transformer_forward.1} parent=1 // pred_region
      %5034 = vsyncadd [#allocation3], 0
      %s5036 = sshll.u32 [#allocation2], 4
      %s5037 = int_to_ptr.vmem [resolvable:$true] %s5036
      %s5038 = sshll.u32 %s17, 4
      %s5039 = int_to_ptr.hbm [resolvable:$true] %s5038
      %5041 = dma.vmem_to_hbm [thread:$0]  %s5037, 128, %s5039, [#allocation3]
    $region73: #{transformer_forward.1} parent=1 // pred_fallthru
      _
    // Predicated region
    $region74: #{transformer_forward.1} parent=1 // pred_check
      _
    $region75: #{transformer_forward.1} parent=1 // pred_check_branch
      %5043 = sbr.rel (0) target = $region77
    $region76: #{transformer_forward.1} parent=1 // pred_region
      %5045 = dma.done [#allocation3], 128
    $region77: #{transformer_forward.1} parent=1 // pred_fallthru
      _
    %5046 = vsyncpa [#allocation3], 1

</llo_original>
